<compile_context>
chip_gen: v7x
topology: tpu7x:2x2x1
jax: 0.10.0
libtpu: 0.0.40
codegen_flags: <defaults>
</compile_context>

<pallas_src>
import functools

import jax
import jax.numpy as jnp
from jax import lax
from jax.experimental import pallas as pl
from jax.experimental.pallas import tpu as pltpu


def _round_up(x, m):
    return (x + m - 1) // m * m


def _largest_divisor_leq(n, cap):
    cap = max(1, min(cap, n))
    for d in range(cap, 0, -1):
        if n % d == 0:
            return d
    return 1


def _vmem_limit_bytes():
    """Generation-aware scoped-VMEM budget (~85% of physical, headroom left)."""
    try:
        cap = int(pltpu.get_tpu_info().vmem_capacity_bytes)
    except Exception:
        cap = 128 * 1024 * 1024
    return max(32 * 1024 * 1024, int(cap * 0.85))


_VMEM_LIMIT = _vmem_limit_bytes()


def _const_spec(shape, index_map):
    """Grid-invariant block: single-buffered when supported (saves VMEM)."""
    try:
        return pl.BlockSpec(shape, index_map, pipeline_mode=pl.Buffered(1))
    except Exception:
        return pl.BlockSpec(shape, index_map)


def _row_tile(m, cap):
    """Row-tile size (multiple of 8, or == m) and padded row count."""
    if m <= cap:
        return m, m
    if m % 8 == 0:
        d = _largest_divisor_leq(m // 8, cap // 8) * 8
        if d >= 64:
            return d, m
    return cap, _round_up(m, cap)


# ----------------------------------------------------------------------------
# Kernel 1: encoder Linear+ReLU fused with both LSTM input-gate projections
#           (single concatenated (H, 8H) gate weight, bf16 outputs).
# ----------------------------------------------------------------------------
def _enc_gates_kernel(x_ref, we_ref, be_ref, wih_ref, bg_ref, gf_ref, gb_ref):
    x = x_ref[...].astype(jnp.bfloat16)
    enc = jnp.dot(x, we_ref[...], preferred_element_type=jnp.float32) + be_ref[...]
    enc = jnp.maximum(enc, 0.0).astype(jnp.bfloat16)
    g = jnp.dot(enc, wih_ref[...], preferred_element_type=jnp.float32) + bg_ref[...]
    gh = gf_ref.shape[1]
    gf_ref[...] = g[:, :gh].astype(gf_ref.dtype)
    gb_ref[...] = g[:, gh:].astype(gb_ref.dtype)


def encoder_and_gates(x_flat, params, *, tile_m=512):
    """x_flat: (M, F) time-major frames -> (gf, gb) bf16, each (M, 4H)."""
    M, F = x_flat.shape
    H = params["enc_w"].shape[1]
    G = 4 * H
    tm, Mp = _row_tile(M, tile_m)
    if Mp != M:
        x_flat = jnp.pad(x_flat, ((0, Mp - M), (0, 0)))

    gf, gb = pl.pallas_call(
        _enc_gates_kernel,
        out_shape=(jax.ShapeDtypeStruct((Mp, G), jnp.bfloat16),
                   jax.ShapeDtypeStruct((Mp, G), jnp.bfloat16)),
        grid_spec=pltpu.PrefetchScalarGridSpec(
            num_scalar_prefetch=0,
            grid=(Mp // tm,),
            in_specs=[
                pl.BlockSpec((tm, F), lambda i: (i, 0)),
                _const_spec((F, H), lambda i: (0, 0)),
                _const_spec((1, H), lambda i: (0, 0)),
                _const_spec((H, 2 * G), lambda i: (0, 0)),
                _const_spec((1, 2 * G), lambda i: (0, 0)),
            ],
            out_specs=[
                pl.BlockSpec((tm, G), lambda i: (i, 0)),
                pl.BlockSpec((tm, G), lambda i: (i, 0)),
            ],
        ),
        compiler_params=pltpu.CompilerParams(
            dimension_semantics=("parallel",),
            vmem_limit_bytes=_VMEM_LIMIT,
        ),
        cost_estimate=pl.CostEstimate(
            flops=2 * Mp * (F * H + H * 2 * G),
            transcendentals=0,
            bytes_accessed=(4 * Mp * F + 2 * (F * H + H * 2 * G)
                            + 2 * 2 * Mp * G),
        ),
    )(x_flat, params["enc_w"], params["enc_b"], params["w_ih"],
      params["b_gates"])

    if Mp != M:
        gf, gb = gf[:M], gb[:M]
    return gf, gb


# ----------------------------------------------------------------------------
# Kernel 2: fused bidirectional LSTM recurrence (timestep-blocked).
# ----------------------------------------------------------------------------
def _bilstm_kernel(xgf_ref, xgb_ref, whf_ref, whb_ref, hf_ref, hb_ref,
                   hf_s, cf_s, hb_s, cb_s, *, hidden, ts):
    # Re-init carried state whenever the time axis restarts (new batch block).
    @pl.when(pl.program_id(1) == 0)
    def _():
        hf_s[...] = jnp.zeros_like(hf_s)
        cf_s[...] = jnp.zeros_like(cf_s)
        hb_s[...] = jnp.zeros_like(hb_s)
        cb_s[...] = jnp.zeros_like(cb_s)

    whf = whf_ref[...]          # bf16 weights (pre-cast in HBM)
    whb = whb_ref[...]
    H = hidden

    def cell(xg, h, c, whh):
        # PyTorch gate order: i, f, g, o.  bf16 MXU/EUP operands, f32 state.
        # Note: keep H a multiple of 128 for lane-aligned gate slices.
        g = xg + jnp.dot(h.astype(jnp.bfloat16), whh,
                         preferred_element_type=jnp.float32)
        gl = g.astype(jnp.bfloat16)
        i_g = jax.nn.sigmoid(gl[:, 0 * H:1 * H])
        f_g = jax.nn.sigmoid(gl[:, 1 * H:2 * H])
        g_g = jnp.tanh(gl[:, 2 * H:3 * H])
        o_g = jax.nn.sigmoid(gl[:, 3 * H:4 * H])
        c_new = f_g * c + i_g * g_g                       # promotes to f32
        h_new = (o_g * jnp.tanh(c_new.astype(jnp.bfloat16))).astype(jnp.float32)
        return h_new, c_new

    def step(i, carry):
        # ---- forward direction: in-block time index i (low -> high) ----
        h_new, c_new = cell(xgf_ref[i], hf_s[...], cf_s[...], whf)
        hf_s[...] = h_new
        cf_s[...] = c_new
        hf_ref[i] = h_new.astype(hf_ref.dtype)
        # ---- backward direction: walk its block high -> low ----
        j = ts - 1 - i
        h_new, c_new = cell(xgb_ref[j], hb_s[...], cb_s[...], whb)
        hb_s[...] = h_new
        cb_s[...] = c_new
        hb_ref[j] = h_new.astype(hb_ref.dtype)
        return carry

    lax.fori_loop(0, ts, step, 0, unroll=True)


def bilstm(gf, gb, w_hh_f, w_hh_b, hidden, *, time_block=32, batch_blocks=1):
    """gf, gb: (T, B, 4H) bf16 time-major gate pre-activations.

    Returns hf, hb (Tp, B, H) bf16 plus the time padding `pad`; valid rows are
    hf[:T] and hb[pad:].
    """
    T, B, G = gf.shape
    ts = _largest_divisor_leq(T, time_block)
    if ts < min(8, T):
        # Awkward/prime T: pad the time axis instead of degenerating to tiny
        # blocks.  Forward pads at the end, backward pads at the start, so the
        # backward recurrence still starts at the true last frame.
        ts = min(time_block, T)
    Tp = _round_up(T, ts)
    pad = Tp - T
    if pad:
        gf = jnp.pad(gf, ((0, pad), (0, 0), (0, 0)))
        gb = jnp.pad(gb, ((pad, 0), (0, 0), (0, 0)))
    nblk = Tp // ts

    # Batch splitting only makes sense on multi-TC chips and with bb >= 8.
    nb = batch_blocks if (batch_blocks > 1 and B % batch_blocks == 0
                          and (B // batch_blocks) % 8 == 0) else 1
    bb = B // nb

    kernel = functools.partial(_bilstm_kernel, hidden=hidden, ts=ts)
    flops = 2 * 2 * Tp * B * hidden * (4 * hidden)      # h @ Whh, both dirs
    trans = 2 * 5 * Tp * B * hidden                     # 3 sigmoid + 2 tanh
    bytes_acc = (2 * 2 * Tp * B * G            # gf/gb read (bf16)
                 + 2 * 2 * Tp * B * hidden     # hf/hb write (bf16)
                 + 2 * 2 * hidden * G)         # recurrent weights (bf16)

    hf, hb = pl.pallas_call(
        kernel,
        out_shape=(jax.ShapeDtypeStruct((Tp, B, hidden), jnp.bfloat16),
                   jax.ShapeDtypeStruct((Tp, B, hidden), jnp.bfloat16)),
        grid_spec=pltpu.PrefetchScalarGridSpec(
            num_scalar_prefetch=0,
            grid=(nb, nblk),  # (batch blocks [parallel], time blocks [serial])
            in_specs=[
                pl.BlockSpec((ts, bb, G), lambda b, t: (t, b, 0)),
                # backward direction: reversed index map (no HBM reverse copy)
                pl.BlockSpec((ts, bb, G), lambda b, t: (nblk - 1 - t, b, 0)),
                _const_spec((hidden, G), lambda b, t: (0, 0)),
                _const_spec((hidden, G), lambda b, t: (0, 0)),
            ],
            out_specs=[
                pl.BlockSpec((ts, bb, hidden), lambda b, t: (t, b, 0)),
                pl.BlockSpec((ts, bb, hidden), lambda b, t: (nblk - 1 - t, b, 0)),
            ],
            scratch_shapes=[pltpu.VMEM((bb, hidden), jnp.float32)] * 4,
        ),
        compiler_params=pltpu.CompilerParams(
            dimension_semantics=("parallel", "arbitrary"),
            vmem_limit_bytes=_VMEM_LIMIT,
        ),
        cost_estimate=pl.CostEstimate(flops=flops, transcendentals=trans,
                                      bytes_accessed=bytes_acc),
    )(gf, gb, w_hh_f, w_hh_b)
    return hf, hb, pad


# ----------------------------------------------------------------------------
# Kernel 3: fused head  relu(hf)@W_top + relu(hb)@W_bot + b -> log_softmax.
# ----------------------------------------------------------------------------
def _head_kernel(hf_ref, hb_ref, wt_ref, wb_ref, b_ref, o_ref):
    xf = jnp.maximum(hf_ref[...], 0.0)                  # bf16 relu
    xb = jnp.maximum(hb_ref[...], 0.0)
    logits = (jnp.dot(xf, wt_ref[...], preferred_element_type=jnp.float32)
              + jnp.dot(xb, wb_ref[...], preferred_element_type=jnp.float32)
              + b_ref[...])
    m = jnp.max(logits, axis=-1, keepdims=True)
    z = logits - m
    lse = jnp.log(jnp.sum(jnp.exp(z), axis=-1, keepdims=True))
    o_ref[...] = (z - lse).astype(o_ref.dtype)


def head_logprobs(hf_flat, hb_flat, wt, wb, out_b, *, tile_m=512):
    """hf_flat, hb_flat: (M, H) bf16; wt/wb: (H, C) bf16; returns (M, C) f32."""
    M, H = hf_flat.shape
    n_class = wt.shape[1]
    C_pad = _round_up(n_class, 128)                     # lane-dense stores
    if C_pad != n_class:
        cpad = ((0, 0), (0, C_pad - n_class))
        wt = jnp.pad(wt, cpad)
        wb = jnp.pad(wb, cpad)
        b = jnp.pad(out_b, (0, C_pad - n_class), constant_values=-1e30)
    else:
        b = out_b
    tm, Mp = _row_tile(M, tile_m)
    if Mp != M:
        hf_flat = jnp.pad(hf_flat, ((0, Mp - M), (0, 0)))
        hb_flat = jnp.pad(hb_flat, ((0, Mp - M), (0, 0)))

    out = pl.pallas_call(
        _head_kernel,
        out_shape=jax.ShapeDtypeStruct((Mp, C_pad), jnp.float32),
        grid_spec=pltpu.PrefetchScalarGridSpec(
            num_scalar_prefetch=0,
            grid=(Mp // tm,),
            in_specs=[
                pl.BlockSpec((tm, H), lambda i: (i, 0)),
                pl.BlockSpec((tm, H), lambda i: (i, 0)),
                _const_spec((H, C_pad), lambda i: (0, 0)),
                _const_spec((H, C_pad), lambda i: (0, 0)),
                _const_spec((1, C_pad), lambda i: (0, 0)),
            ],
            out_specs=pl.BlockSpec((tm, C_pad), lambda i: (i, 0)),
        ),
        compiler_params=pltpu.CompilerParams(
            dimension_semantics=("parallel",),
            vmem_limit_bytes=_VMEM_LIMIT,
        ),
        cost_estimate=pl.CostEstimate(
            flops=4 * Mp * H * C_pad,
            transcendentals=Mp * C_pad,
            bytes_accessed=(2 * 2 * Mp * H + 2 * 2 * H * C_pad
                            + 4 * Mp * C_pad),
        ),
    )(hf_flat, hb_flat, wt, wb, b.reshape(1, C_pad))
    return out[:M, :n_class]


# ----------------------------------------------------------------------------
# Model
# ----------------------------------------------------------------------------
def init_params(key, input_dim, hidden, n_class):
    """Deterministic synthetic parameters (PyTorch-style uniform init), f32."""
    def u(key, shape, fan_in):
        s = 1.0 / jnp.sqrt(fan_in)
        return jax.random.uniform(key, shape, jnp.float32, -s, s)

    ks = jax.random.split(key, 14)
    H = hidden
    return {
        "enc_w": u(ks[0], (input_dim, H), input_dim),
        "enc_b": u(ks[1], (H,), input_dim),
        # LSTM weights stored already transposed for x @ W; gate order i,f,g,o
        "w_ih_f": u(ks[2], (H, 4 * H), H),
        "w_hh_f": u(ks[3], (H, 4 * H), H),
        "b_ih_f": u(ks[4], (4 * H,), H),
        "b_hh_f": u(ks[5], (4 * H,), H),
        "w_ih_b": u(ks[6], (H, 4 * H), H),
        "w_hh_b": u(ks[7], (H, 4 * H), H),
        "b_ih_b": u(ks[8], (4 * H,), H),
        "b_hh_b": u(ks[9], (4 * H,), H),
        "out_w": u(ks[10], (2 * H, n_class), 2 * H),
        "out_b": u(ks[11], (n_class,), 2 * H),
    }


def prepare_params(p):
    """One-time HBM prep: bf16 weight casts + fused (H, 8H) gate weight/bias.

    Call once outside jit; the kernels then never re-cast weights per step.
    """
    H = p["enc_w"].shape[1]
    w_ih = jnp.concatenate([p["w_ih_f"], p["w_ih_b"]], axis=1)          # (H, 8H)
    b_gates = jnp.concatenate([p["b_ih_f"] + p["b_hh_f"],
                               p["b_ih_b"] + p["b_hh_b"]]).reshape(1, 8 * H)
    return {
        "enc_w": p["enc_w"].astype(jnp.bfloat16),
        "enc_b": p["enc_b"].reshape(1, H).astype(jnp.float32),
        "w_ih": w_ih.astype(jnp.bfloat16),
        "b_gates": b_gates.astype(jnp.float32),
        "w_hh_f": p["w_hh_f"].astype(jnp.bfloat16),
        "w_hh_b": p["w_hh_b"].astype(jnp.bfloat16),
        "out_wt": p["out_w"][:H].astype(jnp.bfloat16),
        "out_wb": p["out_w"][H:].astype(jnp.bfloat16),
        "out_b": p["out_b"].astype(jnp.float32),
    }


def ctc_lstm_forward(params, inputs, input_lengths):
    """inputs: (B, T, F) float32; params from prepare_params()."""
    B, T, F = inputs.shape
    H = params["enc_w"].shape[1]
    n_class = params["out_b"].shape[0]

    # Time-major: only the narrow (B,T,F) input is transposed in HBM.
    # TODO(synk): fold this transpose into kernel 1's index_map (strided DMA).
    x_tm = inputs.transpose(1, 0, 2).reshape(T * B, F)

    gf_flat, gb_flat = encoder_and_gates(x_tm, params)          # bf16 (T*B, 4H)
    gf = gf_flat.reshape(T, B, 4 * H)
    gb = gb_flat.reshape(T, B, 4 * H)

    hf, hb, tpad = bilstm(gf, gb, params["w_hh_f"], params["w_hh_b"], H)
    if tpad:
        hf = hf[:T]        # forward padded at end
        hb = hb[tpad:]     # backward padded at start

    logp = head_logprobs(hf.reshape(T * B, H), hb.reshape(T * B, H),
                         params["out_wt"], params["out_wb"], params["out_b"])
    # TODO(synk): fold this final (T,B,C)->(B,T,C) transpose into the head
    # kernel's out_spec (free DMA addressing).
    logp = logp.reshape(T, B, n_class).transpose(1, 0, 2)       # (B, T, C)

    output_lengths = input_lengths  # identity length map for this encoder
    return logp, output_lengths

# TODO(synk): decode()/recognize() (greedy argmax CTC decoding to strings) are
# host-side inference utilities, not part of the forward hot path; not kernels.
# TODO(synk): input_lengths is not used inside the LSTM (matches the non-packed
# reference, but differs from PyTorch pack_padded_sequence semantics).


# ----------------------------------------------------------------------------
# Pure-JAX reference (f32) used only for a loose numerical self-check.
# ----------------------------------------------------------------------------
def ctc_lstm_reference(params, inputs, input_lengths):
    B, T, F = inputs.shape
    H = params["enc_w"].shape[1]
    enc = jax.nn.relu(inputs @ params["enc_w"] + params["enc_b"])   # (B,T,H)
    enc_tm = enc.transpose(1, 0, 2)                                  # (T,B,H)

    def run(xs, w_ih, w_hh, b):
        xg = xs @ w_ih + b

        def step(carry, g):
            h, c = carry
            g = g + h @ w_hh
            i = jax.nn.sigmoid(g[:, :H])
            f = jax.nn.sigmoid(g[:, H:2 * H])
            gg = jnp.tanh(g[:, 2 * H:3 * H])
            o = jax.nn.sigmoid(g[:, 3 * H:])
            c = f * c + i * gg
            h = o * jnp.tanh(c)
            return (h, c), h

        (_, _), hs = lax.scan(step, (jnp.zeros((B, H)), jnp.zeros((B, H))), xg)
        return hs

    hf = run(enc_tm, params["w_ih_f"], params["w_hh_f"],
             params["b_ih_f"] + params["b_hh_f"])
    hb = run(enc_tm[::-1], params["w_ih_b"], params["w_hh_b"],
             params["b_ih_b"] + params["b_hh_b"])[::-1]
    out = jax.nn.relu(jnp.concatenate([hf, hb], axis=-1))
    logits = out @ params["out_w"] + params["out_b"]
    logp = jax.nn.log_softmax(logits, axis=-1)
    return logp.transpose(1, 0, 2), input_lengths


# ----------------------------------------------------------------------------
if __name__ == "__main__":
    B, T, F, H, N_CLASS = 2, 8, 16, 32, 16

    key = jax.random.PRNGKey(0)
    k_in, k_par = jax.random.split(key)
    inputs = jax.random.normal(k_in, (B, T, F), jnp.float32)
    input_lengths = jnp.array([T, T - 2], jnp.int32)
    params = init_params(k_par, F, H, N_CLASS)
    prep = prepare_params(params)   # one-time bf16 weight prep in HBM

    logp, out_lens = jax.jit(ctc_lstm_forward)(prep, inputs, input_lengths)
    logp = jax.block_until_ready(logp)
    out_lens = jax.block_until_ready(out_lens)

    assert logp.shape == (B, T, N_CLASS)
    assert out_lens.shape == (B,)
    # log_softmax rows must exponentiate-sum to 1 and be finite
    assert bool(jnp.allclose(jnp.exp(logp).sum(-1), 1.0, atol=1e-4))
    assert bool(jnp.all(jnp.isfinite(logp)))

    # Loose check vs the f32 pure-JAX reference (kernels run bf16 MXU/EUP).
    ref_logp, _ = jax.jit(ctc_lstm_reference)(params, inputs, input_lengths)
    assert bool(jnp.allclose(logp, ref_logp, atol=5e-2))

    print("KERNEL_OK")
</pallas_src>

<mosaic_0001>
module attributes {stable_mosaic.version = 11 : i64} {
  func.func @_enc_gates_kernel(%arg0: i32, %arg1: memref<16x16xf32, #tpu.memory_space<vmem>>, %arg2: memref<16x32xbf16, #tpu.memory_space<vmem>>, %arg3: memref<1x32xf32, #tpu.memory_space<vmem>>, %arg4: memref<32x256xbf16, #tpu.memory_space<vmem>>, %arg5: memref<1x256xf32, #tpu.memory_space<vmem>>, %arg6: memref<16x128xbf16, #tpu.memory_space<vmem>>, %arg7: memref<16x128xbf16, #tpu.memory_space<vmem>>) attributes {dimension_semantics = [#tpu.dimension_semantics<parallel>], iteration_bounds = array<i64: 1>, scalar_prefetch = 0 : i64, scratch_operands = 0 : i64, tpu.core_type = #tpu.core_type<tc>, window_params = [{transform_indices = @transform_0, window_bounds = array<i64: 16, 16>}, {pipeline_mode = #tpu.pipeline_mode<synchronous>, transform_indices = @transform_1, window_bounds = array<i64: 16, 32>}, {pipeline_mode = #tpu.pipeline_mode<synchronous>, transform_indices = @transform_2, window_bounds = array<i64: 1, 32>}, {pipeline_mode = #tpu.pipeline_mode<synchronous>, transform_indices = @transform_3, window_bounds = array<i64: 32, 256>}, {pipeline_mode = #tpu.pipeline_mode<synchronous>, transform_indices = @transform_4, window_bounds = array<i64: 1, 256>}, {transform_indices = @transform_5, window_bounds = array<i64: 16, 128>}, {transform_indices = @transform_6, window_bounds = array<i64: 16, 128>}]} {
    %c0 = arith.constant 0 : index
    %c0_0 = arith.constant 0 : index
    %0 = vector.load %arg1[%c0, %c0_0] : memref<16x16xf32, #tpu.memory_space<vmem>>, vector<16x16xf32>
    %1 = arith.truncf %0 : vector<16x16xf32> to vector<16x16xbf16>
    %c0_1 = arith.constant 0 : index
    %c0_2 = arith.constant 0 : index
    %2 = vector.load %arg2[%c0_1, %c0_2] : memref<16x32xbf16, #tpu.memory_space<vmem>>, vector<16x32xbf16>
    %cst = arith.constant dense<0.000000e+00> : vector<16x32xf32>
    %3 = tpu.matmul %1, %2, %cst {dimension_numbers = #tpu.dot_dimension_numbers<[1], [0], [0], [1], [0, 0, 1, 1], [], []>} : vector<16x16xbf16>, vector<16x32xbf16>, vector<16x32xf32> -> vector<16x32xf32>
    %c0_3 = arith.constant 0 : index
    %c0_4 = arith.constant 0 : index
    %4 = vector.load %arg3[%c0_3, %c0_4] : memref<1x32xf32, #tpu.memory_space<vmem>>, vector<1x32xf32>
    %5 = vector.broadcast %4 : vector<1x32xf32> to vector<16x32xf32>
    %6 = arith.addf %3, %5 : vector<16x32xf32>
    %cst_5 = arith.constant 0.000000e+00 : f32
    %7 = vector.broadcast %cst_5 : f32 to vector<16x32xf32>
    %8 = arith.maximumf %6, %7 : vector<16x32xf32>
    %9 = arith.truncf %8 : vector<16x32xf32> to vector<16x32xbf16>
    %c0_6 = arith.constant 0 : index
    %c0_7 = arith.constant 0 : index
    %10 = vector.load %arg4[%c0_6, %c0_7] : memref<32x256xbf16, #tpu.memory_space<vmem>>, vector<32x256xbf16>
    %cst_8 = arith.constant dense<0.000000e+00> : vector<16x256xf32>
    %11 = tpu.matmul %9, %10, %cst_8 {dimension_numbers = #tpu.dot_dimension_numbers<[1], [0], [0], [1], [0, 0, 1, 1], [], []>} : vector<16x32xbf16>, vector<32x256xbf16>, vector<16x256xf32> -> vector<16x256xf32>
    %c0_9 = arith.constant 0 : index
    %c0_10 = arith.constant 0 : index
    %12 = vector.load %arg5[%c0_9, %c0_10] : memref<1x256xf32, #tpu.memory_space<vmem>>, vector<1x256xf32>
    %13 = vector.broadcast %12 : vector<1x256xf32> to vector<16x256xf32>
    %14 = arith.addf %11, %13 : vector<16x256xf32>
    %15 = vector.extract_strided_slice %14 {offsets = [0, 0], sizes = [16, 128], strides = [1, 1]} : vector<16x256xf32> to vector<16x128xf32>
    %16 = arith.truncf %15 : vector<16x128xf32> to vector<16x128xbf16>
    %c0_11 = arith.constant 0 : index
    %c0_12 = arith.constant 0 : index
    %17 = vector.load %arg6[%c0_11, %c0_12] : memref<16x128xbf16, #tpu.memory_space<vmem>>, vector<16x128xbf16>
    tpu.vector_store %arg6[%c0_11, %c0_12], %16 {strides = array<i32>} : memref<16x128xbf16, #tpu.memory_space<vmem>>, vector<16x128xbf16>,
    %18 = vector.extract_strided_slice %14 {offsets = [0, 128], sizes = [16, 128], strides = [1, 1]} : vector<16x256xf32> to vector<16x128xf32>
    %19 = arith.truncf %18 : vector<16x128xf32> to vector<16x128xbf16>
    %c0_13 = arith.constant 0 : index
    %c0_14 = arith.constant 0 : index
    %20 = vector.load %arg7[%c0_13, %c0_14] : memref<16x128xbf16, #tpu.memory_space<vmem>>, vector<16x128xbf16>
    tpu.vector_store %arg7[%c0_13, %c0_14], %19 {strides = array<i32>} : memref<16x128xbf16, #tpu.memory_space<vmem>>, vector<16x128xbf16>,
    return
  }
  func.func @transform_0(%arg0: i32) -> (i32, i32) {
    %c0_i32 = arith.constant 0 : i32
    %c0_i32_0 = arith.constant 0 : i32
    return %arg0, %c0_i32 : i32, i32
  }
  func.func @transform_1(%arg0: i32) -> (i32, i32) {
    %c0_i32 = arith.constant 0 : i32
    %c0_i32_0 = arith.constant 0 : i32
    %c0_i32_1 = arith.constant 0 : i32
    return %c0_i32, %c0_i32_0 : i32, i32
  }
  func.func @transform_2(%arg0: i32) -> (i32, i32) {
    %c0_i32 = arith.constant 0 : i32
    %c0_i32_0 = arith.constant 0 : i32
    %c0_i32_1 = arith.constant 0 : i32
    return %c0_i32, %c0_i32_0 : i32, i32
  }
  func.func @transform_3(%arg0: i32) -> (i32, i32) {
    %c0_i32 = arith.constant 0 : i32
    %c0_i32_0 = arith.constant 0 : i32
    %c0_i32_1 = arith.constant 0 : i32
    return %c0_i32, %c0_i32_0 : i32, i32
  }
  func.func @transform_4(%arg0: i32) -> (i32, i32) {
    %c0_i32 = arith.constant 0 : i32
    %c0_i32_0 = arith.constant 0 : i32
    %c0_i32_1 = arith.constant 0 : i32
    return %c0_i32, %c0_i32_0 : i32, i32
  }
  func.func @transform_5(%arg0: i32) -> (i32, i32) {
    %c0_i32 = arith.constant 0 : i32
    %c0_i32_0 = arith.constant 0 : i32
    return %arg0, %c0_i32 : i32, i32
  }
  func.func @transform_6(%arg0: i32) -> (i32, i32) {
    %c0_i32 = arith.constant 0 : i32
    %c0_i32_0 = arith.constant 0 : i32
    return %arg0, %c0_i32 : i32, i32
  }
}

module attributes {stable_mosaic.version = 11 : i64} {
  func.func @_bilstm_kernel(%arg0: i32, %arg1: i32, %arg2: memref<8x2x128xbf16, #tpu.memory_space<vmem>>, %arg3: memref<8x2x128xbf16, #tpu.memory_space<vmem>>, %arg4: memref<32x128xbf16, #tpu.memory_space<vmem>>, %arg5: memref<32x128xbf16, #tpu.memory_space<vmem>>, %arg6: memref<8x2x32xbf16, #tpu.memory_space<vmem>>, %arg7: memref<8x2x32xbf16, #tpu.memory_space<vmem>>, %arg8: memref<2x32xf32, #tpu.memory_space<vmem>>, %arg9: memref<2x32xf32, #tpu.memory_space<vmem>>, %arg10: memref<2x32xf32, #tpu.memory_space<vmem>>, %arg11: memref<2x32xf32, #tpu.memory_space<vmem>>) attributes {dimension_semantics = [#tpu.dimension_semantics<parallel>, #tpu.dimension_semantics<arbitrary>], iteration_bounds = array<i64: 1, 1>, scalar_prefetch = 0 : i64, scratch_operands = 4 : i64, tpu.core_type = #tpu.core_type<tc>, window_params = [{transform_indices = @transform_0, window_bounds = array<i64: 8, 2, 128>}, {transform_indices = @transform_1, window_bounds = array<i64: 8, 2, 128>}, {pipeline_mode = #tpu.pipeline_mode<synchronous>, transform_indices = @transform_2, window_bounds = array<i64: 32, 128>}, {pipeline_mode = #tpu.pipeline_mode<synchronous>, transform_indices = @transform_3, window_bounds = array<i64: 32, 128>}, {transform_indices = @transform_4, window_bounds = array<i64: 8, 2, 32>}, {transform_indices = @transform_5, window_bounds = array<i64: 8, 2, 32>}]} {
    %c0_i32 = arith.constant 0 : i32
    %0 = arith.cmpi eq, %arg1, %c0_i32 : i32
    %1 = arith.extui %0 : i1 to i32
    %c0_i32_0 = arith.constant 0 : i32
    %2 = arith.cmpi ne, %1, %c0_i32_0 : i32
    scf.if %2 {
      %cst_268 = arith.constant 0.000000e+00 : f32
      %749 = vector.broadcast %cst_268 : f32 to vector<2x32xf32>
      %c0_269 = arith.constant 0 : index
      %c0_270 = arith.constant 0 : index
      %750 = vector.load %arg8[%c0_269, %c0_270] : memref<2x32xf32, #tpu.memory_space<vmem>>, vector<2x32xf32>
      tpu.vector_store %arg8[%c0_269, %c0_270], %749 {strides = array<i32>} : memref<2x32xf32, #tpu.memory_space<vmem>>, vector<2x32xf32>,
      %cst_271 = arith.constant 0.000000e+00 : f32
      %751 = vector.broadcast %cst_271 : f32 to vector<2x32xf32>
      %c0_272 = arith.constant 0 : index
      %c0_273 = arith.constant 0 : index
      %752 = vector.load %arg9[%c0_272, %c0_273] : memref<2x32xf32, #tpu.memory_space<vmem>>, vector<2x32xf32>
      tpu.vector_store %arg9[%c0_272, %c0_273], %751 {strides = array<i32>} : memref<2x32xf32, #tpu.memory_space<vmem>>, vector<2x32xf32>,
      %cst_274 = arith.constant 0.000000e+00 : f32
      %753 = vector.broadcast %cst_274 : f32 to vector<2x32xf32>
      %c0_275 = arith.constant 0 : index
      %c0_276 = arith.constant 0 : index
      %754 = vector.load %arg10[%c0_275, %c0_276] : memref<2x32xf32, #tpu.memory_space<vmem>>, vector<2x32xf32>
      tpu.vector_store %arg10[%c0_275, %c0_276], %753 {strides = array<i32>} : memref<2x32xf32, #tpu.memory_space<vmem>>, vector<2x32xf32>,
      %cst_277 = arith.constant 0.000000e+00 : f32
      %755 = vector.broadcast %cst_277 : f32 to vector<2x32xf32>
      %c0_278 = arith.constant 0 : index
      %c0_279 = arith.constant 0 : index
      %756 = vector.load %arg11[%c0_278, %c0_279] : memref<2x32xf32, #tpu.memory_space<vmem>>, vector<2x32xf32>
      tpu.vector_store %arg11[%c0_278, %c0_279], %755 {strides = array<i32>} : memref<2x32xf32, #tpu.memory_space<vmem>>, vector<2x32xf32>,
    } else {
    }
    %c0 = arith.constant 0 : index
    %c0_1 = arith.constant 0 : index
    %3 = vector.load %arg4[%c0, %c0_1] : memref<32x128xbf16, #tpu.memory_space<vmem>>, vector<32x128xbf16>
    %c0_2 = arith.constant 0 : index
    %c0_3 = arith.constant 0 : index
    %4 = vector.load %arg5[%c0_2, %c0_3] : memref<32x128xbf16, #tpu.memory_space<vmem>>, vector<32x128xbf16>
    %c0_i32_4 = arith.constant 0 : i32
    %5 = arith.index_cast %c0_i32_4 : i32 to index
    %c0_5 = arith.constant 0 : index
    %c0_6 = arith.constant 0 : index
    %6 = vector.load %arg2[%5, %c0_5, %c0_6] : memref<8x2x128xbf16, #tpu.memory_space<vmem>>, vector<1x2x128xbf16>
    %7 = vector.shape_cast %6 : vector<1x2x128xbf16> to vector<2x128xbf16>
    %c0_7 = arith.constant 0 : index
    %c0_8 = arith.constant 0 : index
    %8 = vector.load %arg8[%c0_7, %c0_8] : memref<2x32xf32, #tpu.memory_space<vmem>>, vector<2x32xf32>
    %c0_9 = arith.constant 0 : index
    %c0_10 = arith.constant 0 : index
    %9 = vector.load %arg9[%c0_9, %c0_10] : memref<2x32xf32, #tpu.memory_space<vmem>>, vector<2x32xf32>
    %10 = arith.truncf %8 : vector<2x32xf32> to vector<2x32xbf16>
    %cst = arith.constant dense<0.000000e+00> : vector<2x128xf32>
    %11 = tpu.matmul %10, %3, %cst {dimension_numbers = #tpu.dot_dimension_numbers<[1], [0], [0], [1], [0, 0, 1, 1], [], []>} : vector<2x32xbf16>, vector<32x128xbf16>, vector<2x128xf32> -> vector<2x128xf32>
    %12 = arith.extf %7 : vector<2x128xbf16> to vector<2x128xf32>
    %13 = arith.addf %12, %11 : vector<2x128xf32>
    %14 = arith.truncf %13 : vector<2x128xf32> to vector<2x128xbf16>
    %15 = vector.extract_strided_slice %14 {offsets = [0, 0], sizes = [2, 32], strides = [1, 1]} : vector<2x128xbf16> to vector<2x32xbf16>
    %16 = arith.negf %15 : vector<2x32xbf16>
    %17 = math.exp %16 : vector<2x32xbf16>
    %cst_11 = arith.constant 1.000000e+00 : bf16
    %18 = vector.broadcast %cst_11 : bf16 to vector<2x32xbf16>
    %19 = arith.addf %18, %17 : vector<2x32xbf16>
    %20 = arith.divf %18, %19 : vector<2x32xbf16>
    %21 = vector.extract_strided_slice %14 {offsets = [0, 32], sizes = [2, 32], strides = [1, 1]} : vector<2x128xbf16> to vector<2x32xbf16>
    %22 = arith.negf %21 : vector<2x32xbf16>
    %23 = math.exp %22 : vector<2x32xbf16>
    %cst_12 = arith.constant 1.000000e+00 : bf16
    %24 = vector.broadcast %cst_12 : bf16 to vector<2x32xbf16>
    %25 = arith.addf %24, %23 : vector<2x32xbf16>
    %26 = arith.divf %24, %25 : vector<2x32xbf16>
    %27 = vector.extract_strided_slice %14 {offsets = [0, 64], sizes = [2, 32], strides = [1, 1]} : vector<2x128xbf16> to vector<2x32xbf16>
    %28 = math.tanh %27 : vector<2x32xbf16>
    %29 = vector.extract_strided_slice %14 {offsets = [0, 96], sizes = [2, 32], strides = [1, 1]} : vector<2x128xbf16> to vector<2x32xbf16>
    %30 = arith.negf %29 : vector<2x32xbf16>
    %31 = math.exp %30 : vector<2x32xbf16>
    %cst_13 = arith.constant 1.000000e+00 : bf16
    %32 = vector.broadcast %cst_13 : bf16 to vector<2x32xbf16>
    %33 = arith.addf %32, %31 : vector<2x32xbf16>
    %34 = arith.divf %32, %33 : vector<2x32xbf16>
    %35 = arith.extf %26 : vector<2x32xbf16> to vector<2x32xf32>
    %36 = arith.mulf %35, %9 : vector<2x32xf32>
    %37 = arith.mulf %20, %28 : vector<2x32xbf16>
    %38 = arith.extf %37 : vector<2x32xbf16> to vector<2x32xf32>
    %39 = arith.addf %36, %38 : vector<2x32xf32>
    %40 = arith.truncf %39 : vector<2x32xf32> to vector<2x32xbf16>
    %41 = math.tanh %40 : vector<2x32xbf16>
    %42 = arith.mulf %34, %41 : vector<2x32xbf16>
    %43 = arith.extf %42 : vector<2x32xbf16> to vector<2x32xf32>
    %c0_14 = arith.constant 0 : index
    %c0_15 = arith.constant 0 : index
    %44 = vector.load %arg8[%c0_14, %c0_15] : memref<2x32xf32, #tpu.memory_space<vmem>>, vector<2x32xf32>
    tpu.vector_store %arg8[%c0_14, %c0_15], %43 {strides = array<i32>} : memref<2x32xf32, #tpu.memory_space<vmem>>, vector<2x32xf32>,
    %c0_16 = arith.constant 0 : index
    %c0_17 = arith.constant 0 : index
    %45 = vector.load %arg9[%c0_16, %c0_17] : memref<2x32xf32, #tpu.memory_space<vmem>>, vector<2x32xf32>
    tpu.vector_store %arg9[%c0_16, %c0_17], %39 {strides = array<i32>} : memref<2x32xf32, #tpu.memory_space<vmem>>, vector<2x32xf32>,
    %46 = arith.truncf %43 : vector<2x32xf32> to vector<2x32xbf16>
    %47 = arith.index_cast %c0_i32_4 : i32 to index
    %c0_18 = arith.constant 0 : index
    %c0_19 = arith.constant 0 : index
    %48 = vector.load %arg6[%47, %c0_18, %c0_19] : memref<8x2x32xbf16, #tpu.memory_space<vmem>>, vector<1x2x32xbf16>
    %49 = vector.shape_cast %48 : vector<1x2x32xbf16> to vector<2x32xbf16>
    %50 = vector.shape_cast %46 : vector<2x32xbf16> to vector<1x2x32xbf16>
    tpu.vector_store %arg6[%47, %c0_18, %c0_19], %50 {strides = array<i32>} : memref<8x2x32xbf16, #tpu.memory_space<vmem>>, vector<1x2x32xbf16>,
    %c7_i32 = arith.constant 7 : i32
    %51 = arith.subi %c7_i32, %c0_i32_4 : i32
    %52 = arith.index_cast %51 : i32 to index
    %c0_20 = arith.constant 0 : index
    %c0_21 = arith.constant 0 : index
    %53 = vector.load %arg3[%52, %c0_20, %c0_21] : memref<8x2x128xbf16, #tpu.memory_space<vmem>>, vector<1x2x128xbf16>
    %54 = vector.shape_cast %53 : vector<1x2x128xbf16> to vector<2x128xbf16>
    %c0_22 = arith.constant 0 : index
    %c0_23 = arith.constant 0 : index
    %55 = vector.load %arg10[%c0_22, %c0_23] : memref<2x32xf32, #tpu.memory_space<vmem>>, vector<2x32xf32>
    %c0_24 = arith.constant 0 : index
    %c0_25 = arith.constant 0 : index
    %56 = vector.load %arg11[%c0_24, %c0_25] : memref<2x32xf32, #tpu.memory_space<vmem>>, vector<2x32xf32>
    %57 = arith.truncf %55 : vector<2x32xf32> to vector<2x32xbf16>
    %cst_26 = arith.constant dense<0.000000e+00> : vector<2x128xf32>
    %58 = tpu.matmul %57, %4, %cst_26 {dimension_numbers = #tpu.dot_dimension_numbers<[1], [0], [0], [1], [0, 0, 1, 1], [], []>} : vector<2x32xbf16>, vector<32x128xbf16>, vector<2x128xf32> -> vector<2x128xf32>
    %59 = arith.extf %54 : vector<2x128xbf16> to vector<2x128xf32>
    %60 = arith.addf %59, %58 : vector<2x128xf32>
    %61 = arith.truncf %60 : vector<2x128xf32> to vector<2x128xbf16>
    %62 = vector.extract_strided_slice %61 {offsets = [0, 0], sizes = [2, 32], strides = [1, 1]} : vector<2x128xbf16> to vector<2x32xbf16>
    %63 = arith.negf %62 : vector<2x32xbf16>
    %64 = math.exp %63 : vector<2x32xbf16>
    %cst_27 = arith.constant 1.000000e+00 : bf16
    %65 = vector.broadcast %cst_27 : bf16 to vector<2x32xbf16>
    %66 = arith.addf %65, %64 : vector<2x32xbf16>
    %67 = arith.divf %65, %66 : vector<2x32xbf16>
    %68 = vector.extract_strided_slice %61 {offsets = [0, 32], sizes = [2, 32], strides = [1, 1]} : vector<2x128xbf16> to vector<2x32xbf16>
    %69 = arith.negf %68 : vector<2x32xbf16>
    %70 = math.exp %69 : vector<2x32xbf16>
    %cst_28 = arith.constant 1.000000e+00 : bf16
    %71 = vector.broadcast %cst_28 : bf16 to vector<2x32xbf16>
    %72 = arith.addf %71, %70 : vector<2x32xbf16>
    %73 = arith.divf %71, %72 : vector<2x32xbf16>
    %74 = vector.extract_strided_slice %61 {offsets = [0, 64], sizes = [2, 32], strides = [1, 1]} : vector<2x128xbf16> to vector<2x32xbf16>
    %75 = math.tanh %74 : vector<2x32xbf16>
    %76 = vector.extract_strided_slice %61 {offsets = [0, 96], sizes = [2, 32], strides = [1, 1]} : vector<2x128xbf16> to vector<2x32xbf16>
    %77 = arith.negf %76 : vector<2x32xbf16>
    %78 = math.exp %77 : vector<2x32xbf16>
    %cst_29 = arith.constant 1.000000e+00 : bf16
    %79 = vector.broadcast %cst_29 : bf16 to vector<2x32xbf16>
    %80 = arith.addf %79, %78 : vector<2x32xbf16>
    %81 = arith.divf %79, %80 : vector<2x32xbf16>
    %82 = arith.extf %73 : vector<2x32xbf16> to vector<2x32xf32>
    %83 = arith.mulf %82, %56 : vector<2x32xf32>
    %84 = arith.mulf %67, %75 : vector<2x32xbf16>
    %85 = arith.extf %84 : vector<2x32xbf16> to vector<2x32xf32>
    %86 = arith.addf %83, %85 : vector<2x32xf32>
    %87 = arith.truncf %86 : vector<2x32xf32> to vector<2x32xbf16>
    %88 = math.tanh %87 : vector<2x32xbf16>
    %89 = arith.mulf %81, %88 : vector<2x32xbf16>
    %90 = arith.extf %89 : vector<2x32xbf16> to vector<2x32xf32>
    %c0_30 = arith.constant 0 : index
    %c0_31 = arith.constant 0 : index
    %91 = vector.load %arg10[%c0_30, %c0_31] : memref<2x32xf32, #tpu.memory_space<vmem>>, vector<2x32xf32>
    tpu.vector_store %arg10[%c0_30, %c0_31], %90 {strides = array<i32>} : memref<2x32xf32, #tpu.memory_space<vmem>>, vector<2x32xf32>,
    %c0_32 = arith.constant 0 : index
    %c0_33 = arith.constant 0 : index
    %92 = vector.load %arg11[%c0_32, %c0_33] : memref<2x32xf32, #tpu.memory_space<vmem>>, vector<2x32xf32>
    tpu.vector_store %arg11[%c0_32, %c0_33], %86 {strides = array<i32>} : memref<2x32xf32, #tpu.memory_space<vmem>>, vector<2x32xf32>,
    %93 = arith.truncf %90 : vector<2x32xf32> to vector<2x32xbf16>
    %94 = arith.index_cast %51 : i32 to index
    %c0_34 = arith.constant 0 : index
    %c0_35 = arith.constant 0 : index
    %95 = vector.load %arg7[%94, %c0_34, %c0_35] : memref<8x2x32xbf16, #tpu.memory_space<vmem>>, vector<1x2x32xbf16>
    %96 = vector.shape_cast %95 : vector<1x2x32xbf16> to vector<2x32xbf16>
    %97 = vector.shape_cast %93 : vector<2x32xbf16> to vector<1x2x32xbf16>
    tpu.vector_store %arg7[%94, %c0_34, %c0_35], %97 {strides = array<i32>} : memref<8x2x32xbf16, #tpu.memory_space<vmem>>, vector<1x2x32xbf16>,
    %c1_i32 = arith.constant 1 : i32
    %98 = arith.index_cast %c1_i32 : i32 to index
    %c0_36 = arith.constant 0 : index
    %c0_37 = arith.constant 0 : index
    %99 = vector.load %arg2[%98, %c0_36, %c0_37] : memref<8x2x128xbf16, #tpu.memory_space<vmem>>, vector<1x2x128xbf16>
    %100 = vector.shape_cast %99 : vector<1x2x128xbf16> to vector<2x128xbf16>
    %c0_38 = arith.constant 0 : index
    %c0_39 = arith.constant 0 : index
    %101 = vector.load %arg8[%c0_38, %c0_39] : memref<2x32xf32, #tpu.memory_space<vmem>>, vector<2x32xf32>
    %c0_40 = arith.constant 0 : index
    %c0_41 = arith.constant 0 : index
    %102 = vector.load %arg9[%c0_40, %c0_41] : memref<2x32xf32, #tpu.memory_space<vmem>>, vector<2x32xf32>
    %103 = arith.truncf %101 : vector<2x32xf32> to vector<2x32xbf16>
    %cst_42 = arith.constant dense<0.000000e+00> : vector<2x128xf32>
    %104 = tpu.matmul %103, %3, %cst_42 {dimension_numbers = #tpu.dot_dimension_numbers<[1], [0], [0], [1], [0, 0, 1, 1], [], []>} : vector<2x32xbf16>, vector<32x128xbf16>, vector<2x128xf32> -> vector<2x128xf32>
    %105 = arith.extf %100 : vector<2x128xbf16> to vector<2x128xf32>
    %106 = arith.addf %105, %104 : vector<2x128xf32>
    %107 = arith.truncf %106 : vector<2x128xf32> to vector<2x128xbf16>
    %108 = vector.extract_strided_slice %107 {offsets = [0, 0], sizes = [2, 32], strides = [1, 1]} : vector<2x128xbf16> to vector<2x32xbf16>
    %109 = arith.negf %108 : vector<2x32xbf16>
    %110 = math.exp %109 : vector<2x32xbf16>
    %cst_43 = arith.constant 1.000000e+00 : bf16
    %111 = vector.broadcast %cst_43 : bf16 to vector<2x32xbf16>
    %112 = arith.addf %111, %110 : vector<2x32xbf16>
    %113 = arith.divf %111, %112 : vector<2x32xbf16>
    %114 = vector.extract_strided_slice %107 {offsets = [0, 32], sizes = [2, 32], strides = [1, 1]} : vector<2x128xbf16> to vector<2x32xbf16>
    %115 = arith.negf %114 : vector<2x32xbf16>
    %116 = math.exp %115 : vector<2x32xbf16>
    %cst_44 = arith.constant 1.000000e+00 : bf16
    %117 = vector.broadcast %cst_44 : bf16 to vector<2x32xbf16>
    %118 = arith.addf %117, %116 : vector<2x32xbf16>
    %119 = arith.divf %117, %118 : vector<2x32xbf16>
    %120 = vector.extract_strided_slice %107 {offsets = [0, 64], sizes = [2, 32], strides = [1, 1]} : vector<2x128xbf16> to vector<2x32xbf16>
    %121 = math.tanh %120 : vector<2x32xbf16>
    %122 = vector.extract_strided_slice %107 {offsets = [0, 96], sizes = [2, 32], strides = [1, 1]} : vector<2x128xbf16> to vector<2x32xbf16>
    %123 = arith.negf %122 : vector<2x32xbf16>
    %124 = math.exp %123 : vector<2x32xbf16>
    %cst_45 = arith.constant 1.000000e+00 : bf16
    %125 = vector.broadcast %cst_45 : bf16 to vector<2x32xbf16>
    %126 = arith.addf %125, %124 : vector<2x32xbf16>
    %127 = arith.divf %125, %126 : vector<2x32xbf16>
    %128 = arith.extf %119 : vector<2x32xbf16> to vector<2x32xf32>
    %129 = arith.mulf %128, %102 : vector<2x32xf32>
    %130 = arith.mulf %113, %121 : vector<2x32xbf16>
    %131 = arith.extf %130 : vector<2x32xbf16> to vector<2x32xf32>
    %132 = arith.addf %129, %131 : vector<2x32xf32>
    %133 = arith.truncf %132 : vector<2x32xf32> to vector<2x32xbf16>
    %134 = math.tanh %133 : vector<2x32xbf16>
    %135 = arith.mulf %127, %134 : vector<2x32xbf16>
    %136 = arith.extf %135 : vector<2x32xbf16> to vector<2x32xf32>
    %c0_46 = arith.constant 0 : index
    %c0_47 = arith.constant 0 : index
    %137 = vector.load %arg8[%c0_46, %c0_47] : memref<2x32xf32, #tpu.memory_space<vmem>>, vector<2x32xf32>
    tpu.vector_store %arg8[%c0_46, %c0_47], %136 {strides = array<i32>} : memref<2x32xf32, #tpu.memory_space<vmem>>, vector<2x32xf32>,
    %c0_48 = arith.constant 0 : index
    %c0_49 = arith.constant 0 : index
    %138 = vector.load %arg9[%c0_48, %c0_49] : memref<2x32xf32, #tpu.memory_space<vmem>>, vector<2x32xf32>
    tpu.vector_store %arg9[%c0_48, %c0_49], %132 {strides = array<i32>} : memref<2x32xf32, #tpu.memory_space<vmem>>, vector<2x32xf32>,
    %139 = arith.truncf %136 : vector<2x32xf32> to vector<2x32xbf16>
    %140 = arith.index_cast %c1_i32 : i32 to index
    %c0_50 = arith.constant 0 : index
    %c0_51 = arith.constant 0 : index
    %141 = vector.load %arg6[%140, %c0_50, %c0_51] : memref<8x2x32xbf16, #tpu.memory_space<vmem>>, vector<1x2x32xbf16>
    %142 = vector.shape_cast %141 : vector<1x2x32xbf16> to vector<2x32xbf16>
    %143 = vector.shape_cast %139 : vector<2x32xbf16> to vector<1x2x32xbf16>
    tpu.vector_store %arg6[%140, %c0_50, %c0_51], %143 {strides = array<i32>} : memref<8x2x32xbf16, #tpu.memory_space<vmem>>, vector<1x2x32xbf16>,
    %c7_i32_52 = arith.constant 7 : i32
    %144 = arith.subi %c7_i32_52, %c1_i32 : i32
    %145 = arith.index_cast %144 : i32 to index
    %c0_53 = arith.constant 0 : index
    %c0_54 = arith.constant 0 : index
    %146 = vector.load %arg3[%145, %c0_53, %c0_54] : memref<8x2x128xbf16, #tpu.memory_space<vmem>>, vector<1x2x128xbf16>
    %147 = vector.shape_cast %146 : vector<1x2x128xbf16> to vector<2x128xbf16>
    %c0_55 = arith.constant 0 : index
    %c0_56 = arith.constant 0 : index
    %148 = vector.load %arg10[%c0_55, %c0_56] : memref<2x32xf32, #tpu.memory_space<vmem>>, vector<2x32xf32>
    %c0_57 = arith.constant 0 : index
    %c0_58 = arith.constant 0 : index
    %149 = vector.load %arg11[%c0_57, %c0_58] : memref<2x32xf32, #tpu.memory_space<vmem>>, vector<2x32xf32>
    %150 = arith.truncf %148 : vector<2x32xf32> to vector<2x32xbf16>
    %cst_59 = arith.constant dense<0.000000e+00> : vector<2x128xf32>
    %151 = tpu.matmul %150, %4, %cst_59 {dimension_numbers = #tpu.dot_dimension_numbers<[1], [0], [0], [1], [0, 0, 1, 1], [], []>} : vector<2x32xbf16>, vector<32x128xbf16>, vector<2x128xf32> -> vector<2x128xf32>
    %152 = arith.extf %147 : vector<2x128xbf16> to vector<2x128xf32>
    %153 = arith.addf %152, %151 : vector<2x128xf32>
    %154 = arith.truncf %153 : vector<2x128xf32> to vector<2x128xbf16>
    %155 = vector.extract_strided_slice %154 {offsets = [0, 0], sizes = [2, 32], strides = [1, 1]} : vector<2x128xbf16> to vector<2x32xbf16>
    %156 = arith.negf %155 : vector<2x32xbf16>
    %157 = math.exp %156 : vector<2x32xbf16>
    %cst_60 = arith.constant 1.000000e+00 : bf16
    %158 = vector.broadcast %cst_60 : bf16 to vector<2x32xbf16>
    %159 = arith.addf %158, %157 : vector<2x32xbf16>
    %160 = arith.divf %158, %159 : vector<2x32xbf16>
    %161 = vector.extract_strided_slice %154 {offsets = [0, 32], sizes = [2, 32], strides = [1, 1]} : vector<2x128xbf16> to vector<2x32xbf16>
    %162 = arith.negf %161 : vector<2x32xbf16>
    %163 = math.exp %162 : vector<2x32xbf16>
    %cst_61 = arith.constant 1.000000e+00 : bf16
    %164 = vector.broadcast %cst_61 : bf16 to vector<2x32xbf16>
    %165 = arith.addf %164, %163 : vector<2x32xbf16>
    %166 = arith.divf %164, %165 : vector<2x32xbf16>
    %167 = vector.extract_strided_slice %154 {offsets = [0, 64], sizes = [2, 32], strides = [1, 1]} : vector<2x128xbf16> to vector<2x32xbf16>
    %168 = math.tanh %167 : vector<2x32xbf16>
    %169 = vector.extract_strided_slice %154 {offsets = [0, 96], sizes = [2, 32], strides = [1, 1]} : vector<2x128xbf16> to vector<2x32xbf16>
    %170 = arith.negf %169 : vector<2x32xbf16>
    %171 = math.exp %170 : vector<2x32xbf16>
    %cst_62 = arith.constant 1.000000e+00 : bf16
    %172 = vector.broadcast %cst_62 : bf16 to vector<2x32xbf16>
    %173 = arith.addf %172, %171 : vector<2x32xbf16>
    %174 = arith.divf %172, %173 : vector<2x32xbf16>
    %175 = arith.extf %166 : vector<2x32xbf16> to vector<2x32xf32>
    %176 = arith.mulf %175, %149 : vector<2x32xf32>
    %177 = arith.mulf %160, %168 : vector<2x32xbf16>
    %178 = arith.extf %177 : vector<2x32xbf16> to vector<2x32xf32>
    %179 = arith.addf %176, %178 : vector<2x32xf32>
    %180 = arith.truncf %179 : vector<2x32xf32> to vector<2x32xbf16>
    %181 = math.tanh %180 : vector<2x32xbf16>
    %182 = arith.mulf %174, %181 : vector<2x32xbf16>
    %183 = arith.extf %182 : vector<2x32xbf16> to vector<2x32xf32>
    %c0_63 = arith.constant 0 : index
    %c0_64 = arith.constant 0 : index
    %184 = vector.load %arg10[%c0_63, %c0_64] : memref<2x32xf32, #tpu.memory_space<vmem>>, vector<2x32xf32>
    tpu.vector_store %arg10[%c0_63, %c0_64], %183 {strides = array<i32>} : memref<2x32xf32, #tpu.memory_space<vmem>>, vector<2x32xf32>,
    %c0_65 = arith.constant 0 : index
    %c0_66 = arith.constant 0 : index
    %185 = vector.load %arg11[%c0_65, %c0_66] : memref<2x32xf32, #tpu.memory_space<vmem>>, vector<2x32xf32>
    tpu.vector_store %arg11[%c0_65, %c0_66], %179 {strides = array<i32>} : memref<2x32xf32, #tpu.memory_space<vmem>>, vector<2x32xf32>,
    %186 = arith.truncf %183 : vector<2x32xf32> to vector<2x32xbf16>
    %187 = arith.index_cast %144 : i32 to index
    %c0_67 = arith.constant 0 : index
    %c0_68 = arith.constant 0 : index
    %188 = vector.load %arg7[%187, %c0_67, %c0_68] : memref<8x2x32xbf16, #tpu.memory_space<vmem>>, vector<1x2x32xbf16>
    %189 = vector.shape_cast %188 : vector<1x2x32xbf16> to vector<2x32xbf16>
    %190 = vector.shape_cast %186 : vector<2x32xbf16> to vector<1x2x32xbf16>
    tpu.vector_store %arg7[%187, %c0_67, %c0_68], %190 {strides = array<i32>} : memref<8x2x32xbf16, #tpu.memory_space<vmem>>, vector<1x2x32xbf16>,
    %c2_i32 = arith.constant 2 : i32
    %191 = arith.index_cast %c2_i32 : i32 to index
    %c0_69 = arith.constant 0 : index
    %c0_70 = arith.constant 0 : index
    %192 = vector.load %arg2[%191, %c0_69, %c0_70] : memref<8x2x128xbf16, #tpu.memory_space<vmem>>, vector<1x2x128xbf16>
    %193 = vector.shape_cast %192 : vector<1x2x128xbf16> to vector<2x128xbf16>
    %c0_71 = arith.constant 0 : index
    %c0_72 = arith.constant 0 : index
    %194 = vector.load %arg8[%c0_71, %c0_72] : memref<2x32xf32, #tpu.memory_space<vmem>>, vector<2x32xf32>
    %c0_73 = arith.constant 0 : index
    %c0_74 = arith.constant 0 : index
    %195 = vector.load %arg9[%c0_73, %c0_74] : memref<2x32xf32, #tpu.memory_space<vmem>>, vector<2x32xf32>
    %196 = arith.truncf %194 : vector<2x32xf32> to vector<2x32xbf16>
    %cst_75 = arith.constant dense<0.000000e+00> : vector<2x128xf32>
    %197 = tpu.matmul %196, %3, %cst_75 {dimension_numbers = #tpu.dot_dimension_numbers<[1], [0], [0], [1], [0, 0, 1, 1], [], []>} : vector<2x32xbf16>, vector<32x128xbf16>, vector<2x128xf32> -> vector<2x128xf32>
    %198 = arith.extf %193 : vector<2x128xbf16> to vector<2x128xf32>
    %199 = arith.addf %198, %197 : vector<2x128xf32>
    %200 = arith.truncf %199 : vector<2x128xf32> to vector<2x128xbf16>
    %201 = vector.extract_strided_slice %200 {offsets = [0, 0], sizes = [2, 32], strides = [1, 1]} : vector<2x128xbf16> to vector<2x32xbf16>
    %202 = arith.negf %201 : vector<2x32xbf16>
    %203 = math.exp %202 : vector<2x32xbf16>
    %cst_76 = arith.constant 1.000000e+00 : bf16
    %204 = vector.broadcast %cst_76 : bf16 to vector<2x32xbf16>
    %205 = arith.addf %204, %203 : vector<2x32xbf16>
    %206 = arith.divf %204, %205 : vector<2x32xbf16>
    %207 = vector.extract_strided_slice %200 {offsets = [0, 32], sizes = [2, 32], strides = [1, 1]} : vector<2x128xbf16> to vector<2x32xbf16>
    %208 = arith.negf %207 : vector<2x32xbf16>
    %209 = math.exp %208 : vector<2x32xbf16>
    %cst_77 = arith.constant 1.000000e+00 : bf16
    %210 = vector.broadcast %cst_77 : bf16 to vector<2x32xbf16>
    %211 = arith.addf %210, %209 : vector<2x32xbf16>
    %212 = arith.divf %210, %211 : vector<2x32xbf16>
    %213 = vector.extract_strided_slice %200 {offsets = [0, 64], sizes = [2, 32], strides = [1, 1]} : vector<2x128xbf16> to vector<2x32xbf16>
    %214 = math.tanh %213 : vector<2x32xbf16>
    %215 = vector.extract_strided_slice %200 {offsets = [0, 96], sizes = [2, 32], strides = [1, 1]} : vector<2x128xbf16> to vector<2x32xbf16>
    %216 = arith.negf %215 : vector<2x32xbf16>
    %217 = math.exp %216 : vector<2x32xbf16>
    %cst_78 = arith.constant 1.000000e+00 : bf16
    %218 = vector.broadcast %cst_78 : bf16 to vector<2x32xbf16>
    %219 = arith.addf %218, %217 : vector<2x32xbf16>
    %220 = arith.divf %218, %219 : vector<2x32xbf16>
    %221 = arith.extf %212 : vector<2x32xbf16> to vector<2x32xf32>
    %222 = arith.mulf %221, %195 : vector<2x32xf32>
    %223 = arith.mulf %206, %214 : vector<2x32xbf16>
    %224 = arith.extf %223 : vector<2x32xbf16> to vector<2x32xf32>
    %225 = arith.addf %222, %224 : vector<2x32xf32>
    %226 = arith.truncf %225 : vector<2x32xf32> to vector<2x32xbf16>
    %227 = math.tanh %226 : vector<2x32xbf16>
    %228 = arith.mulf %220, %227 : vector<2x32xbf16>
    %229 = arith.extf %228 : vector<2x32xbf16> to vector<2x32xf32>
    %c0_79 = arith.constant 0 : index
    %c0_80 = arith.constant 0 : index
    %230 = vector.load %arg8[%c0_79, %c0_80] : memref<2x32xf32, #tpu.memory_space<vmem>>, vector<2x32xf32>
    tpu.vector_store %arg8[%c0_79, %c0_80], %229 {strides = array<i32>} : memref<2x32xf32, #tpu.memory_space<vmem>>, vector<2x32xf32>,
    %c0_81 = arith.constant 0 : index
    %c0_82 = arith.constant 0 : index
    %231 = vector.load %arg9[%c0_81, %c0_82] : memref<2x32xf32, #tpu.memory_space<vmem>>, vector<2x32xf32>
    tpu.vector_store %arg9[%c0_81, %c0_82], %225 {strides = array<i32>} : memref<2x32xf32, #tpu.memory_space<vmem>>, vector<2x32xf32>,
    %232 = arith.truncf %229 : vector<2x32xf32> to vector<2x32xbf16>
    %233 = arith.index_cast %c2_i32 : i32 to index
    %c0_83 = arith.constant 0 : index
    %c0_84 = arith.constant 0 : index
    %234 = vector.load %arg6[%233, %c0_83, %c0_84] : memref<8x2x32xbf16, #tpu.memory_space<vmem>>, vector<1x2x32xbf16>
    %235 = vector.shape_cast %234 : vector<1x2x32xbf16> to vector<2x32xbf16>
    %236 = vector.shape_cast %232 : vector<2x32xbf16> to vector<1x2x32xbf16>
    tpu.vector_store %arg6[%233, %c0_83, %c0_84], %236 {strides = array<i32>} : memref<8x2x32xbf16, #tpu.memory_space<vmem>>, vector<1x2x32xbf16>,
    %c7_i32_85 = arith.constant 7 : i32
    %237 = arith.subi %c7_i32_85, %c2_i32 : i32
    %238 = arith.index_cast %237 : i32 to index
    %c0_86 = arith.constant 0 : index
    %c0_87 = arith.constant 0 : index
    %239 = vector.load %arg3[%238, %c0_86, %c0_87] : memref<8x2x128xbf16, #tpu.memory_space<vmem>>, vector<1x2x128xbf16>
    %240 = vector.shape_cast %239 : vector<1x2x128xbf16> to vector<2x128xbf16>
    %c0_88 = arith.constant 0 : index
    %c0_89 = arith.constant 0 : index
    %241 = vector.load %arg10[%c0_88, %c0_89] : memref<2x32xf32, #tpu.memory_space<vmem>>, vector<2x32xf32>
    %c0_90 = arith.constant 0 : index
    %c0_91 = arith.constant 0 : index
    %242 = vector.load %arg11[%c0_90, %c0_91] : memref<2x32xf32, #tpu.memory_space<vmem>>, vector<2x32xf32>
    %243 = arith.truncf %241 : vector<2x32xf32> to vector<2x32xbf16>
    %cst_92 = arith.constant dense<0.000000e+00> : vector<2x128xf32>
    %244 = tpu.matmul %243, %4, %cst_92 {dimension_numbers = #tpu.dot_dimension_numbers<[1], [0], [0], [1], [0, 0, 1, 1], [], []>} : vector<2x32xbf16>, vector<32x128xbf16>, vector<2x128xf32> -> vector<2x128xf32>
    %245 = arith.extf %240 : vector<2x128xbf16> to vector<2x128xf32>
    %246 = arith.addf %245, %244 : vector<2x128xf32>
    %247 = arith.truncf %246 : vector<2x128xf32> to vector<2x128xbf16>
    %248 = vector.extract_strided_slice %247 {offsets = [0, 0], sizes = [2, 32], strides = [1, 1]} : vector<2x128xbf16> to vector<2x32xbf16>
    %249 = arith.negf %248 : vector<2x32xbf16>
    %250 = math.exp %249 : vector<2x32xbf16>
    %cst_93 = arith.constant 1.000000e+00 : bf16
    %251 = vector.broadcast %cst_93 : bf16 to vector<2x32xbf16>
    %252 = arith.addf %251, %250 : vector<2x32xbf16>
    %253 = arith.divf %251, %252 : vector<2x32xbf16>
    %254 = vector.extract_strided_slice %247 {offsets = [0, 32], sizes = [2, 32], strides = [1, 1]} : vector<2x128xbf16> to vector<2x32xbf16>
    %255 = arith.negf %254 : vector<2x32xbf16>
    %256 = math.exp %255 : vector<2x32xbf16>
    %cst_94 = arith.constant 1.000000e+00 : bf16
    %257 = vector.broadcast %cst_94 : bf16 to vector<2x32xbf16>
    %258 = arith.addf %257, %256 : vector<2x32xbf16>
    %259 = arith.divf %257, %258 : vector<2x32xbf16>
    %260 = vector.extract_strided_slice %247 {offsets = [0, 64], sizes = [2, 32], strides = [1, 1]} : vector<2x128xbf16> to vector<2x32xbf16>
    %261 = math.tanh %260 : vector<2x32xbf16>
    %262 = vector.extract_strided_slice %247 {offsets = [0, 96], sizes = [2, 32], strides = [1, 1]} : vector<2x128xbf16> to vector<2x32xbf16>
    %263 = arith.negf %262 : vector<2x32xbf16>
    %264 = math.exp %263 : vector<2x32xbf16>
    %cst_95 = arith.constant 1.000000e+00 : bf16
    %265 = vector.broadcast %cst_95 : bf16 to vector<2x32xbf16>
    %266 = arith.addf %265, %264 : vector<2x32xbf16>
    %267 = arith.divf %265, %266 : vector<2x32xbf16>
    %268 = arith.extf %259 : vector<2x32xbf16> to vector<2x32xf32>
    %269 = arith.mulf %268, %242 : vector<2x32xf32>
    %270 = arith.mulf %253, %261 : vector<2x32xbf16>
    %271 = arith.extf %270 : vector<2x32xbf16> to vector<2x32xf32>
    %272 = arith.addf %269, %271 : vector<2x32xf32>
    %273 = arith.truncf %272 : vector<2x32xf32> to vector<2x32xbf16>
    %274 = math.tanh %273 : vector<2x32xbf16>
    %275 = arith.mulf %267, %274 : vector<2x32xbf16>
    %276 = arith.extf %275 : vector<2x32xbf16> to vector<2x32xf32>
    %c0_96 = arith.constant 0 : index
    %c0_97 = arith.constant 0 : index
    %277 = vector.load %arg10[%c0_96, %c0_97] : memref<2x32xf32, #tpu.memory_space<vmem>>, vector<2x32xf32>
    tpu.vector_store %arg10[%c0_96, %c0_97], %276 {strides = array<i32>} : memref<2x32xf32, #tpu.memory_space<vmem>>, vector<2x32xf32>,
    %c0_98 = arith.constant 0 : index
    %c0_99 = arith.constant 0 : index
    %278 = vector.load %arg11[%c0_98, %c0_99] : memref<2x32xf32, #tpu.memory_space<vmem>>, vector<2x32xf32>
    tpu.vector_store %arg11[%c0_98, %c0_99], %272 {strides = array<i32>} : memref<2x32xf32, #tpu.memory_space<vmem>>, vector<2x32xf32>,
    %279 = arith.truncf %276 : vector<2x32xf32> to vector<2x32xbf16>
    %280 = arith.index_cast %237 : i32 to index
    %c0_100 = arith.constant 0 : index
    %c0_101 = arith.constant 0 : index
    %281 = vector.load %arg7[%280, %c0_100, %c0_101] : memref<8x2x32xbf16, #tpu.memory_space<vmem>>, vector<1x2x32xbf16>
    %282 = vector.shape_cast %281 : vector<1x2x32xbf16> to vector<2x32xbf16>
    %283 = vector.shape_cast %279 : vector<2x32xbf16> to vector<1x2x32xbf16>
    tpu.vector_store %arg7[%280, %c0_100, %c0_101], %283 {strides = array<i32>} : memref<8x2x32xbf16, #tpu.memory_space<vmem>>, vector<1x2x32xbf16>,
    %c3_i32 = arith.constant 3 : i32
    %284 = arith.index_cast %c3_i32 : i32 to index
    %c0_102 = arith.constant 0 : index
    %c0_103 = arith.constant 0 : index
    %285 = vector.load %arg2[%284, %c0_102, %c0_103] : memref<8x2x128xbf16, #tpu.memory_space<vmem>>, vector<1x2x128xbf16>
    %286 = vector.shape_cast %285 : vector<1x2x128xbf16> to vector<2x128xbf16>
    %c0_104 = arith.constant 0 : index
    %c0_105 = arith.constant 0 : index
    %287 = vector.load %arg8[%c0_104, %c0_105] : memref<2x32xf32, #tpu.memory_space<vmem>>, vector<2x32xf32>
    %c0_106 = arith.constant 0 : index
    %c0_107 = arith.constant 0 : index
    %288 = vector.load %arg9[%c0_106, %c0_107] : memref<2x32xf32, #tpu.memory_space<vmem>>, vector<2x32xf32>
    %289 = arith.truncf %287 : vector<2x32xf32> to vector<2x32xbf16>
    %cst_108 = arith.constant dense<0.000000e+00> : vector<2x128xf32>
    %290 = tpu.matmul %289, %3, %cst_108 {dimension_numbers = #tpu.dot_dimension_numbers<[1], [0], [0], [1], [0, 0, 1, 1], [], []>} : vector<2x32xbf16>, vector<32x128xbf16>, vector<2x128xf32> -> vector<2x128xf32>
    %291 = arith.extf %286 : vector<2x128xbf16> to vector<2x128xf32>
    %292 = arith.addf %291, %290 : vector<2x128xf32>
    %293 = arith.truncf %292 : vector<2x128xf32> to vector<2x128xbf16>
    %294 = vector.extract_strided_slice %293 {offsets = [0, 0], sizes = [2, 32], strides = [1, 1]} : vector<2x128xbf16> to vector<2x32xbf16>
    %295 = arith.negf %294 : vector<2x32xbf16>
    %296 = math.exp %295 : vector<2x32xbf16>
    %cst_109 = arith.constant 1.000000e+00 : bf16
    %297 = vector.broadcast %cst_109 : bf16 to vector<2x32xbf16>
    %298 = arith.addf %297, %296 : vector<2x32xbf16>
    %299 = arith.divf %297, %298 : vector<2x32xbf16>
    %300 = vector.extract_strided_slice %293 {offsets = [0, 32], sizes = [2, 32], strides = [1, 1]} : vector<2x128xbf16> to vector<2x32xbf16>
    %301 = arith.negf %300 : vector<2x32xbf16>
    %302 = math.exp %301 : vector<2x32xbf16>
    %cst_110 = arith.constant 1.000000e+00 : bf16
    %303 = vector.broadcast %cst_110 : bf16 to vector<2x32xbf16>
    %304 = arith.addf %303, %302 : vector<2x32xbf16>
    %305 = arith.divf %303, %304 : vector<2x32xbf16>
    %306 = vector.extract_strided_slice %293 {offsets = [0, 64], sizes = [2, 32], strides = [1, 1]} : vector<2x128xbf16> to vector<2x32xbf16>
    %307 = math.tanh %306 : vector<2x32xbf16>
    %308 = vector.extract_strided_slice %293 {offsets = [0, 96], sizes = [2, 32], strides = [1, 1]} : vector<2x128xbf16> to vector<2x32xbf16>
    %309 = arith.negf %308 : vector<2x32xbf16>
    %310 = math.exp %309 : vector<2x32xbf16>
    %cst_111 = arith.constant 1.000000e+00 : bf16
    %311 = vector.broadcast %cst_111 : bf16 to vector<2x32xbf16>
    %312 = arith.addf %311, %310 : vector<2x32xbf16>
    %313 = arith.divf %311, %312 : vector<2x32xbf16>
    %314 = arith.extf %305 : vector<2x32xbf16> to vector<2x32xf32>
    %315 = arith.mulf %314, %288 : vector<2x32xf32>
    %316 = arith.mulf %299, %307 : vector<2x32xbf16>
    %317 = arith.extf %316 : vector<2x32xbf16> to vector<2x32xf32>
    %318 = arith.addf %315, %317 : vector<2x32xf32>
    %319 = arith.truncf %318 : vector<2x32xf32> to vector<2x32xbf16>
    %320 = math.tanh %319 : vector<2x32xbf16>
    %321 = arith.mulf %313, %320 : vector<2x32xbf16>
    %322 = arith.extf %321 : vector<2x32xbf16> to vector<2x32xf32>
    %c0_112 = arith.constant 0 : index
    %c0_113 = arith.constant 0 : index
    %323 = vector.load %arg8[%c0_112, %c0_113] : memref<2x32xf32, #tpu.memory_space<vmem>>, vector<2x32xf32>
    tpu.vector_store %arg8[%c0_112, %c0_113], %322 {strides = array<i32>} : memref<2x32xf32, #tpu.memory_space<vmem>>, vector<2x32xf32>,
    %c0_114 = arith.constant 0 : index
    %c0_115 = arith.constant 0 : index
    %324 = vector.load %arg9[%c0_114, %c0_115] : memref<2x32xf32, #tpu.memory_space<vmem>>, vector<2x32xf32>
    tpu.vector_store %arg9[%c0_114, %c0_115], %318 {strides = array<i32>} : memref<2x32xf32, #tpu.memory_space<vmem>>, vector<2x32xf32>,
    %325 = arith.truncf %322 : vector<2x32xf32> to vector<2x32xbf16>
    %326 = arith.index_cast %c3_i32 : i32 to index
    %c0_116 = arith.constant 0 : index
    %c0_117 = arith.constant 0 : index
    %327 = vector.load %arg6[%326, %c0_116, %c0_117] : memref<8x2x32xbf16, #tpu.memory_space<vmem>>, vector<1x2x32xbf16>
    %328 = vector.shape_cast %327 : vector<1x2x32xbf16> to vector<2x32xbf16>
    %329 = vector.shape_cast %325 : vector<2x32xbf16> to vector<1x2x32xbf16>
    tpu.vector_store %arg6[%326, %c0_116, %c0_117], %329 {strides = array<i32>} : memref<8x2x32xbf16, #tpu.memory_space<vmem>>, vector<1x2x32xbf16>,
    %c7_i32_118 = arith.constant 7 : i32
    %330 = arith.subi %c7_i32_118, %c3_i32 : i32
    %331 = arith.index_cast %330 : i32 to index
    %c0_119 = arith.constant 0 : index
    %c0_120 = arith.constant 0 : index
    %332 = vector.load %arg3[%331, %c0_119, %c0_120] : memref<8x2x128xbf16, #tpu.memory_space<vmem>>, vector<1x2x128xbf16>
    %333 = vector.shape_cast %332 : vector<1x2x128xbf16> to vector<2x128xbf16>
    %c0_121 = arith.constant 0 : index
    %c0_122 = arith.constant 0 : index
    %334 = vector.load %arg10[%c0_121, %c0_122] : memref<2x32xf32, #tpu.memory_space<vmem>>, vector<2x32xf32>
    %c0_123 = arith.constant 0 : index
    %c0_124 = arith.constant 0 : index
    %335 = vector.load %arg11[%c0_123, %c0_124] : memref<2x32xf32, #tpu.memory_space<vmem>>, vector<2x32xf32>
    %336 = arith.truncf %334 : vector<2x32xf32> to vector<2x32xbf16>
    %cst_125 = arith.constant dense<0.000000e+00> : vector<2x128xf32>
    %337 = tpu.matmul %336, %4, %cst_125 {dimension_numbers = #tpu.dot_dimension_numbers<[1], [0], [0], [1], [0, 0, 1, 1], [], []>} : vector<2x32xbf16>, vector<32x128xbf16>, vector<2x128xf32> -> vector<2x128xf32>
    %338 = arith.extf %333 : vector<2x128xbf16> to vector<2x128xf32>
    %339 = arith.addf %338, %337 : vector<2x128xf32>
    %340 = arith.truncf %339 : vector<2x128xf32> to vector<2x128xbf16>
    %341 = vector.extract_strided_slice %340 {offsets = [0, 0], sizes = [2, 32], strides = [1, 1]} : vector<2x128xbf16> to vector<2x32xbf16>
    %342 = arith.negf %341 : vector<2x32xbf16>
    %343 = math.exp %342 : vector<2x32xbf16>
    %cst_126 = arith.constant 1.000000e+00 : bf16
    %344 = vector.broadcast %cst_126 : bf16 to vector<2x32xbf16>
    %345 = arith.addf %344, %343 : vector<2x32xbf16>
    %346 = arith.divf %344, %345 : vector<2x32xbf16>
    %347 = vector.extract_strided_slice %340 {offsets = [0, 32], sizes = [2, 32], strides = [1, 1]} : vector<2x128xbf16> to vector<2x32xbf16>
    %348 = arith.negf %347 : vector<2x32xbf16>
    %349 = math.exp %348 : vector<2x32xbf16>
    %cst_127 = arith.constant 1.000000e+00 : bf16
    %350 = vector.broadcast %cst_127 : bf16 to vector<2x32xbf16>
    %351 = arith.addf %350, %349 : vector<2x32xbf16>
    %352 = arith.divf %350, %351 : vector<2x32xbf16>
    %353 = vector.extract_strided_slice %340 {offsets = [0, 64], sizes = [2, 32], strides = [1, 1]} : vector<2x128xbf16> to vector<2x32xbf16>
    %354 = math.tanh %353 : vector<2x32xbf16>
    %355 = vector.extract_strided_slice %340 {offsets = [0, 96], sizes = [2, 32], strides = [1, 1]} : vector<2x128xbf16> to vector<2x32xbf16>
    %356 = arith.negf %355 : vector<2x32xbf16>
    %357 = math.exp %356 : vector<2x32xbf16>
    %cst_128 = arith.constant 1.000000e+00 : bf16
    %358 = vector.broadcast %cst_128 : bf16 to vector<2x32xbf16>
    %359 = arith.addf %358, %357 : vector<2x32xbf16>
    %360 = arith.divf %358, %359 : vector<2x32xbf16>
    %361 = arith.extf %352 : vector<2x32xbf16> to vector<2x32xf32>
    %362 = arith.mulf %361, %335 : vector<2x32xf32>
    %363 = arith.mulf %346, %354 : vector<2x32xbf16>
    %364 = arith.extf %363 : vector<2x32xbf16> to vector<2x32xf32>
    %365 = arith.addf %362, %364 : vector<2x32xf32>
    %366 = arith.truncf %365 : vector<2x32xf32> to vector<2x32xbf16>
    %367 = math.tanh %366 : vector<2x32xbf16>
    %368 = arith.mulf %360, %367 : vector<2x32xbf16>
    %369 = arith.extf %368 : vector<2x32xbf16> to vector<2x32xf32>
    %c0_129 = arith.constant 0 : index
    %c0_130 = arith.constant 0 : index
    %370 = vector.load %arg10[%c0_129, %c0_130] : memref<2x32xf32, #tpu.memory_space<vmem>>, vector<2x32xf32>
    tpu.vector_store %arg10[%c0_129, %c0_130], %369 {strides = array<i32>} : memref<2x32xf32, #tpu.memory_space<vmem>>, vector<2x32xf32>,
    %c0_131 = arith.constant 0 : index
    %c0_132 = arith.constant 0 : index
    %371 = vector.load %arg11[%c0_131, %c0_132] : memref<2x32xf32, #tpu.memory_space<vmem>>, vector<2x32xf32>
    tpu.vector_store %arg11[%c0_131, %c0_132], %365 {strides = array<i32>} : memref<2x32xf32, #tpu.memory_space<vmem>>, vector<2x32xf32>,
    %372 = arith.truncf %369 : vector<2x32xf32> to vector<2x32xbf16>
    %373 = arith.index_cast %330 : i32 to index
    %c0_133 = arith.constant 0 : index
    %c0_134 = arith.constant 0 : index
    %374 = vector.load %arg7[%373, %c0_133, %c0_134] : memref<8x2x32xbf16, #tpu.memory_space<vmem>>, vector<1x2x32xbf16>
    %375 = vector.shape_cast %374 : vector<1x2x32xbf16> to vector<2x32xbf16>
    %376 = vector.shape_cast %372 : vector<2x32xbf16> to vector<1x2x32xbf16>
    tpu.vector_store %arg7[%373, %c0_133, %c0_134], %376 {strides = array<i32>} : memref<8x2x32xbf16, #tpu.memory_space<vmem>>, vector<1x2x32xbf16>,
    %c4_i32 = arith.constant 4 : i32
    %377 = arith.index_cast %c4_i32 : i32 to index
    %c0_135 = arith.constant 0 : index
    %c0_136 = arith.constant 0 : index
    %378 = vector.load %arg2[%377, %c0_135, %c0_136] : memref<8x2x128xbf16, #tpu.memory_space<vmem>>, vector<1x2x128xbf16>
    %379 = vector.shape_cast %378 : vector<1x2x128xbf16> to vector<2x128xbf16>
    %c0_137 = arith.constant 0 : index
    %c0_138 = arith.constant 0 : index
    %380 = vector.load %arg8[%c0_137, %c0_138] : memref<2x32xf32, #tpu.memory_space<vmem>>, vector<2x32xf32>
    %c0_139 = arith.constant 0 : index
    %c0_140 = arith.constant 0 : index
    %381 = vector.load %arg9[%c0_139, %c0_140] : memref<2x32xf32, #tpu.memory_space<vmem>>, vector<2x32xf32>
    %382 = arith.truncf %380 : vector<2x32xf32> to vector<2x32xbf16>
    %cst_141 = arith.constant dense<0.000000e+00> : vector<2x128xf32>
    %383 = tpu.matmul %382, %3, %cst_141 {dimension_numbers = #tpu.dot_dimension_numbers<[1], [0], [0], [1], [0, 0, 1, 1], [], []>} : vector<2x32xbf16>, vector<32x128xbf16>, vector<2x128xf32> -> vector<2x128xf32>
    %384 = arith.extf %379 : vector<2x128xbf16> to vector<2x128xf32>
    %385 = arith.addf %384, %383 : vector<2x128xf32>
    %386 = arith.truncf %385 : vector<2x128xf32> to vector<2x128xbf16>
    %387 = vector.extract_strided_slice %386 {offsets = [0, 0], sizes = [2, 32], strides = [1, 1]} : vector<2x128xbf16> to vector<2x32xbf16>
    %388 = arith.negf %387 : vector<2x32xbf16>
    %389 = math.exp %388 : vector<2x32xbf16>
    %cst_142 = arith.constant 1.000000e+00 : bf16
    %390 = vector.broadcast %cst_142 : bf16 to vector<2x32xbf16>
    %391 = arith.addf %390, %389 : vector<2x32xbf16>
    %392 = arith.divf %390, %391 : vector<2x32xbf16>
    %393 = vector.extract_strided_slice %386 {offsets = [0, 32], sizes = [2, 32], strides = [1, 1]} : vector<2x128xbf16> to vector<2x32xbf16>
    %394 = arith.negf %393 : vector<2x32xbf16>
    %395 = math.exp %394 : vector<2x32xbf16>
    %cst_143 = arith.constant 1.000000e+00 : bf16
    %396 = vector.broadcast %cst_143 : bf16 to vector<2x32xbf16>
    %397 = arith.addf %396, %395 : vector<2x32xbf16>
    %398 = arith.divf %396, %397 : vector<2x32xbf16>
    %399 = vector.extract_strided_slice %386 {offsets = [0, 64], sizes = [2, 32], strides = [1, 1]} : vector<2x128xbf16> to vector<2x32xbf16>
    %400 = math.tanh %399 : vector<2x32xbf16>
    %401 = vector.extract_strided_slice %386 {offsets = [0, 96], sizes = [2, 32], strides = [1, 1]} : vector<2x128xbf16> to vector<2x32xbf16>
    %402 = arith.negf %401 : vector<2x32xbf16>
    %403 = math.exp %402 : vector<2x32xbf16>
    %cst_144 = arith.constant 1.000000e+00 : bf16
    %404 = vector.broadcast %cst_144 : bf16 to vector<2x32xbf16>
    %405 = arith.addf %404, %403 : vector<2x32xbf16>
    %406 = arith.divf %404, %405 : vector<2x32xbf16>
    %407 = arith.extf %398 : vector<2x32xbf16> to vector<2x32xf32>
    %408 = arith.mulf %407, %381 : vector<2x32xf32>
    %409 = arith.mulf %392, %400 : vector<2x32xbf16>
    %410 = arith.extf %409 : vector<2x32xbf16> to vector<2x32xf32>
    %411 = arith.addf %408, %410 : vector<2x32xf32>
    %412 = arith.truncf %411 : vector<2x32xf32> to vector<2x32xbf16>
    %413 = math.tanh %412 : vector<2x32xbf16>
    %414 = arith.mulf %406, %413 : vector<2x32xbf16>
    %415 = arith.extf %414 : vector<2x32xbf16> to vector<2x32xf32>
    %c0_145 = arith.constant 0 : index
    %c0_146 = arith.constant 0 : index
    %416 = vector.load %arg8[%c0_145, %c0_146] : memref<2x32xf32, #tpu.memory_space<vmem>>, vector<2x32xf32>
    tpu.vector_store %arg8[%c0_145, %c0_146], %415 {strides = array<i32>} : memref<2x32xf32, #tpu.memory_space<vmem>>, vector<2x32xf32>,
    %c0_147 = arith.constant 0 : index
    %c0_148 = arith.constant 0 : index
    %417 = vector.load %arg9[%c0_147, %c0_148] : memref<2x32xf32, #tpu.memory_space<vmem>>, vector<2x32xf32>
    tpu.vector_store %arg9[%c0_147, %c0_148], %411 {strides = array<i32>} : memref<2x32xf32, #tpu.memory_space<vmem>>, vector<2x32xf32>,
    %418 = arith.truncf %415 : vector<2x32xf32> to vector<2x32xbf16>
    %419 = arith.index_cast %c4_i32 : i32 to index
    %c0_149 = arith.constant 0 : index
    %c0_150 = arith.constant 0 : index
    %420 = vector.load %arg6[%419, %c0_149, %c0_150] : memref<8x2x32xbf16, #tpu.memory_space<vmem>>, vector<1x2x32xbf16>
    %421 = vector.shape_cast %420 : vector<1x2x32xbf16> to vector<2x32xbf16>
    %422 = vector.shape_cast %418 : vector<2x32xbf16> to vector<1x2x32xbf16>
    tpu.vector_store %arg6[%419, %c0_149, %c0_150], %422 {strides = array<i32>} : memref<8x2x32xbf16, #tpu.memory_space<vmem>>, vector<1x2x32xbf16>,
    %c7_i32_151 = arith.constant 7 : i32
    %423 = arith.subi %c7_i32_151, %c4_i32 : i32
    %424 = arith.index_cast %423 : i32 to index
    %c0_152 = arith.constant 0 : index
    %c0_153 = arith.constant 0 : index
    %425 = vector.load %arg3[%424, %c0_152, %c0_153] : memref<8x2x128xbf16, #tpu.memory_space<vmem>>, vector<1x2x128xbf16>
    %426 = vector.shape_cast %425 : vector<1x2x128xbf16> to vector<2x128xbf16>
    %c0_154 = arith.constant 0 : index
    %c0_155 = arith.constant 0 : index
    %427 = vector.load %arg10[%c0_154, %c0_155] : memref<2x32xf32, #tpu.memory_space<vmem>>, vector<2x32xf32>
    %c0_156 = arith.constant 0 : index
    %c0_157 = arith.constant 0 : index
    %428 = vector.load %arg11[%c0_156, %c0_157] : memref<2x32xf32, #tpu.memory_space<vmem>>, vector<2x32xf32>
    %429 = arith.truncf %427 : vector<2x32xf32> to vector<2x32xbf16>
    %cst_158 = arith.constant dense<0.000000e+00> : vector<2x128xf32>
    %430 = tpu.matmul %429, %4, %cst_158 {dimension_numbers = #tpu.dot_dimension_numbers<[1], [0], [0], [1], [0, 0, 1, 1], [], []>} : vector<2x32xbf16>, vector<32x128xbf16>, vector<2x128xf32> -> vector<2x128xf32>
    %431 = arith.extf %426 : vector<2x128xbf16> to vector<2x128xf32>
    %432 = arith.addf %431, %430 : vector<2x128xf32>
    %433 = arith.truncf %432 : vector<2x128xf32> to vector<2x128xbf16>
    %434 = vector.extract_strided_slice %433 {offsets = [0, 0], sizes = [2, 32], strides = [1, 1]} : vector<2x128xbf16> to vector<2x32xbf16>
    %435 = arith.negf %434 : vector<2x32xbf16>
    %436 = math.exp %435 : vector<2x32xbf16>
    %cst_159 = arith.constant 1.000000e+00 : bf16
    %437 = vector.broadcast %cst_159 : bf16 to vector<2x32xbf16>
    %438 = arith.addf %437, %436 : vector<2x32xbf16>
    %439 = arith.divf %437, %438 : vector<2x32xbf16>
    %440 = vector.extract_strided_slice %433 {offsets = [0, 32], sizes = [2, 32], strides = [1, 1]} : vector<2x128xbf16> to vector<2x32xbf16>
    %441 = arith.negf %440 : vector<2x32xbf16>
    %442 = math.exp %441 : vector<2x32xbf16>
    %cst_160 = arith.constant 1.000000e+00 : bf16
    %443 = vector.broadcast %cst_160 : bf16 to vector<2x32xbf16>
    %444 = arith.addf %443, %442 : vector<2x32xbf16>
    %445 = arith.divf %443, %444 : vector<2x32xbf16>
    %446 = vector.extract_strided_slice %433 {offsets = [0, 64], sizes = [2, 32], strides = [1, 1]} : vector<2x128xbf16> to vector<2x32xbf16>
    %447 = math.tanh %446 : vector<2x32xbf16>
    %448 = vector.extract_strided_slice %433 {offsets = [0, 96], sizes = [2, 32], strides = [1, 1]} : vector<2x128xbf16> to vector<2x32xbf16>
    %449 = arith.negf %448 : vector<2x32xbf16>
    %450 = math.exp %449 : vector<2x32xbf16>
    %cst_161 = arith.constant 1.000000e+00 : bf16
    %451 = vector.broadcast %cst_161 : bf16 to vector<2x32xbf16>
    %452 = arith.addf %451, %450 : vector<2x32xbf16>
    %453 = arith.divf %451, %452 : vector<2x32xbf16>
    %454 = arith.extf %445 : vector<2x32xbf16> to vector<2x32xf32>
    %455 = arith.mulf %454, %428 : vector<2x32xf32>
    %456 = arith.mulf %439, %447 : vector<2x32xbf16>
    %457 = arith.extf %456 : vector<2x32xbf16> to vector<2x32xf32>
    %458 = arith.addf %455, %457 : vector<2x32xf32>
    %459 = arith.truncf %458 : vector<2x32xf32> to vector<2x32xbf16>
    %460 = math.tanh %459 : vector<2x32xbf16>
    %461 = arith.mulf %453, %460 : vector<2x32xbf16>
    %462 = arith.extf %461 : vector<2x32xbf16> to vector<2x32xf32>
    %c0_162 = arith.constant 0 : index
    %c0_163 = arith.constant 0 : index
    %463 = vector.load %arg10[%c0_162, %c0_163] : memref<2x32xf32, #tpu.memory_space<vmem>>, vector<2x32xf32>
    tpu.vector_store %arg10[%c0_162, %c0_163], %462 {strides = array<i32>} : memref<2x32xf32, #tpu.memory_space<vmem>>, vector<2x32xf32>,
    %c0_164 = arith.constant 0 : index
    %c0_165 = arith.constant 0 : index
    %464 = vector.load %arg11[%c0_164, %c0_165] : memref<2x32xf32, #tpu.memory_space<vmem>>, vector<2x32xf32>
    tpu.vector_store %arg11[%c0_164, %c0_165], %458 {strides = array<i32>} : memref<2x32xf32, #tpu.memory_space<vmem>>, vector<2x32xf32>,
    %465 = arith.truncf %462 : vector<2x32xf32> to vector<2x32xbf16>
    %466 = arith.index_cast %423 : i32 to index
    %c0_166 = arith.constant 0 : index
    %c0_167 = arith.constant 0 : index
    %467 = vector.load %arg7[%466, %c0_166, %c0_167] : memref<8x2x32xbf16, #tpu.memory_space<vmem>>, vector<1x2x32xbf16>
    %468 = vector.shape_cast %467 : vector<1x2x32xbf16> to vector<2x32xbf16>
    %469 = vector.shape_cast %465 : vector<2x32xbf16> to vector<1x2x32xbf16>
    tpu.vector_store %arg7[%466, %c0_166, %c0_167], %469 {strides = array<i32>} : memref<8x2x32xbf16, #tpu.memory_space<vmem>>, vector<1x2x32xbf16>,
    %c5_i32 = arith.constant 5 : i32
    %470 = arith.index_cast %c5_i32 : i32 to index
    %c0_168 = arith.constant 0 : index
    %c0_169 = arith.constant 0 : index
    %471 = vector.load %arg2[%470, %c0_168, %c0_169] : memref<8x2x128xbf16, #tpu.memory_space<vmem>>, vector<1x2x128xbf16>
    %472 = vector.shape_cast %471 : vector<1x2x128xbf16> to vector<2x128xbf16>
    %c0_170 = arith.constant 0 : index
    %c0_171 = arith.constant 0 : index
    %473 = vector.load %arg8[%c0_170, %c0_171] : memref<2x32xf32, #tpu.memory_space<vmem>>, vector<2x32xf32>
    %c0_172 = arith.constant 0 : index
    %c0_173 = arith.constant 0 : index
    %474 = vector.load %arg9[%c0_172, %c0_173] : memref<2x32xf32, #tpu.memory_space<vmem>>, vector<2x32xf32>
    %475 = arith.truncf %473 : vector<2x32xf32> to vector<2x32xbf16>
    %cst_174 = arith.constant dense<0.000000e+00> : vector<2x128xf32>
    %476 = tpu.matmul %475, %3, %cst_174 {dimension_numbers = #tpu.dot_dimension_numbers<[1], [0], [0], [1], [0, 0, 1, 1], [], []>} : vector<2x32xbf16>, vector<32x128xbf16>, vector<2x128xf32> -> vector<2x128xf32>
    %477 = arith.extf %472 : vector<2x128xbf16> to vector<2x128xf32>
    %478 = arith.addf %477, %476 : vector<2x128xf32>
    %479 = arith.truncf %478 : vector<2x128xf32> to vector<2x128xbf16>
    %480 = vector.extract_strided_slice %479 {offsets = [0, 0], sizes = [2, 32], strides = [1, 1]} : vector<2x128xbf16> to vector<2x32xbf16>
    %481 = arith.negf %480 : vector<2x32xbf16>
    %482 = math.exp %481 : vector<2x32xbf16>
    %cst_175 = arith.constant 1.000000e+00 : bf16
    %483 = vector.broadcast %cst_175 : bf16 to vector<2x32xbf16>
    %484 = arith.addf %483, %482 : vector<2x32xbf16>
    %485 = arith.divf %483, %484 : vector<2x32xbf16>
    %486 = vector.extract_strided_slice %479 {offsets = [0, 32], sizes = [2, 32], strides = [1, 1]} : vector<2x128xbf16> to vector<2x32xbf16>
    %487 = arith.negf %486 : vector<2x32xbf16>
    %488 = math.exp %487 : vector<2x32xbf16>
    %cst_176 = arith.constant 1.000000e+00 : bf16
    %489 = vector.broadcast %cst_176 : bf16 to vector<2x32xbf16>
    %490 = arith.addf %489, %488 : vector<2x32xbf16>
    %491 = arith.divf %489, %490 : vector<2x32xbf16>
    %492 = vector.extract_strided_slice %479 {offsets = [0, 64], sizes = [2, 32], strides = [1, 1]} : vector<2x128xbf16> to vector<2x32xbf16>
    %493 = math.tanh %492 : vector<2x32xbf16>
    %494 = vector.extract_strided_slice %479 {offsets = [0, 96], sizes = [2, 32], strides = [1, 1]} : vector<2x128xbf16> to vector<2x32xbf16>
    %495 = arith.negf %494 : vector<2x32xbf16>
    %496 = math.exp %495 : vector<2x32xbf16>
    %cst_177 = arith.constant 1.000000e+00 : bf16
    %497 = vector.broadcast %cst_177 : bf16 to vector<2x32xbf16>
    %498 = arith.addf %497, %496 : vector<2x32xbf16>
    %499 = arith.divf %497, %498 : vector<2x32xbf16>
    %500 = arith.extf %491 : vector<2x32xbf16> to vector<2x32xf32>
    %501 = arith.mulf %500, %474 : vector<2x32xf32>
    %502 = arith.mulf %485, %493 : vector<2x32xbf16>
    %503 = arith.extf %502 : vector<2x32xbf16> to vector<2x32xf32>
    %504 = arith.addf %501, %503 : vector<2x32xf32>
    %505 = arith.truncf %504 : vector<2x32xf32> to vector<2x32xbf16>
    %506 = math.tanh %505 : vector<2x32xbf16>
    %507 = arith.mulf %499, %506 : vector<2x32xbf16>
    %508 = arith.extf %507 : vector<2x32xbf16> to vector<2x32xf32>
    %c0_178 = arith.constant 0 : index
    %c0_179 = arith.constant 0 : index
    %509 = vector.load %arg8[%c0_178, %c0_179] : memref<2x32xf32, #tpu.memory_space<vmem>>, vector<2x32xf32>
    tpu.vector_store %arg8[%c0_178, %c0_179], %508 {strides = array<i32>} : memref<2x32xf32, #tpu.memory_space<vmem>>, vector<2x32xf32>,
    %c0_180 = arith.constant 0 : index
    %c0_181 = arith.constant 0 : index
    %510 = vector.load %arg9[%c0_180, %c0_181] : memref<2x32xf32, #tpu.memory_space<vmem>>, vector<2x32xf32>
    tpu.vector_store %arg9[%c0_180, %c0_181], %504 {strides = array<i32>} : memref<2x32xf32, #tpu.memory_space<vmem>>, vector<2x32xf32>,
    %511 = arith.truncf %508 : vector<2x32xf32> to vector<2x32xbf16>
    %512 = arith.index_cast %c5_i32 : i32 to index
    %c0_182 = arith.constant 0 : index
    %c0_183 = arith.constant 0 : index
    %513 = vector.load %arg6[%512, %c0_182, %c0_183] : memref<8x2x32xbf16, #tpu.memory_space<vmem>>, vector<1x2x32xbf16>
    %514 = vector.shape_cast %513 : vector<1x2x32xbf16> to vector<2x32xbf16>
    %515 = vector.shape_cast %511 : vector<2x32xbf16> to vector<1x2x32xbf16>
    tpu.vector_store %arg6[%512, %c0_182, %c0_183], %515 {strides = array<i32>} : memref<8x2x32xbf16, #tpu.memory_space<vmem>>, vector<1x2x32xbf16>,
    %c7_i32_184 = arith.constant 7 : i32
    %516 = arith.subi %c7_i32_184, %c5_i32 : i32
    %517 = arith.index_cast %516 : i32 to index
    %c0_185 = arith.constant 0 : index
    %c0_186 = arith.constant 0 : index
    %518 = vector.load %arg3[%517, %c0_185, %c0_186] : memref<8x2x128xbf16, #tpu.memory_space<vmem>>, vector<1x2x128xbf16>
    %519 = vector.shape_cast %518 : vector<1x2x128xbf16> to vector<2x128xbf16>
    %c0_187 = arith.constant 0 : index
    %c0_188 = arith.constant 0 : index
    %520 = vector.load %arg10[%c0_187, %c0_188] : memref<2x32xf32, #tpu.memory_space<vmem>>, vector<2x32xf32>
    %c0_189 = arith.constant 0 : index
    %c0_190 = arith.constant 0 : index
    %521 = vector.load %arg11[%c0_189, %c0_190] : memref<2x32xf32, #tpu.memory_space<vmem>>, vector<2x32xf32>
    %522 = arith.truncf %520 : vector<2x32xf32> to vector<2x32xbf16>
    %cst_191 = arith.constant dense<0.000000e+00> : vector<2x128xf32>
    %523 = tpu.matmul %522, %4, %cst_191 {dimension_numbers = #tpu.dot_dimension_numbers<[1], [0], [0], [1], [0, 0, 1, 1], [], []>} : vector<2x32xbf16>, vector<32x128xbf16>, vector<2x128xf32> -> vector<2x128xf32>
    %524 = arith.extf %519 : vector<2x128xbf16> to vector<2x128xf32>
    %525 = arith.addf %524, %523 : vector<2x128xf32>
    %526 = arith.truncf %525 : vector<2x128xf32> to vector<2x128xbf16>
    %527 = vector.extract_strided_slice %526 {offsets = [0, 0], sizes = [2, 32], strides = [1, 1]} : vector<2x128xbf16> to vector<2x32xbf16>
    %528 = arith.negf %527 : vector<2x32xbf16>
    %529 = math.exp %528 : vector<2x32xbf16>
    %cst_192 = arith.constant 1.000000e+00 : bf16
    %530 = vector.broadcast %cst_192 : bf16 to vector<2x32xbf16>
    %531 = arith.addf %530, %529 : vector<2x32xbf16>
    %532 = arith.divf %530, %531 : vector<2x32xbf16>
    %533 = vector.extract_strided_slice %526 {offsets = [0, 32], sizes = [2, 32], strides = [1, 1]} : vector<2x128xbf16> to vector<2x32xbf16>
    %534 = arith.negf %533 : vector<2x32xbf16>
    %535 = math.exp %534 : vector<2x32xbf16>
    %cst_193 = arith.constant 1.000000e+00 : bf16
    %536 = vector.broadcast %cst_193 : bf16 to vector<2x32xbf16>
    %537 = arith.addf %536, %535 : vector<2x32xbf16>
    %538 = arith.divf %536, %537 : vector<2x32xbf16>
    %539 = vector.extract_strided_slice %526 {offsets = [0, 64], sizes = [2, 32], strides = [1, 1]} : vector<2x128xbf16> to vector<2x32xbf16>
    %540 = math.tanh %539 : vector<2x32xbf16>
    %541 = vector.extract_strided_slice %526 {offsets = [0, 96], sizes = [2, 32], strides = [1, 1]} : vector<2x128xbf16> to vector<2x32xbf16>
    %542 = arith.negf %541 : vector<2x32xbf16>
    %543 = math.exp %542 : vector<2x32xbf16>
    %cst_194 = arith.constant 1.000000e+00 : bf16
    %544 = vector.broadcast %cst_194 : bf16 to vector<2x32xbf16>
    %545 = arith.addf %544, %543 : vector<2x32xbf16>
    %546 = arith.divf %544, %545 : vector<2x32xbf16>
    %547 = arith.extf %538 : vector<2x32xbf16> to vector<2x32xf32>
    %548 = arith.mulf %547, %521 : vector<2x32xf32>
    %549 = arith.mulf %532, %540 : vector<2x32xbf16>
    %550 = arith.extf %549 : vector<2x32xbf16> to vector<2x32xf32>
    %551 = arith.addf %548, %550 : vector<2x32xf32>
    %552 = arith.truncf %551 : vector<2x32xf32> to vector<2x32xbf16>
    %553 = math.tanh %552 : vector<2x32xbf16>
    %554 = arith.mulf %546, %553 : vector<2x32xbf16>
    %555 = arith.extf %554 : vector<2x32xbf16> to vector<2x32xf32>
    %c0_195 = arith.constant 0 : index
    %c0_196 = arith.constant 0 : index
    %556 = vector.load %arg10[%c0_195, %c0_196] : memref<2x32xf32, #tpu.memory_space<vmem>>, vector<2x32xf32>
    tpu.vector_store %arg10[%c0_195, %c0_196], %555 {strides = array<i32>} : memref<2x32xf32, #tpu.memory_space<vmem>>, vector<2x32xf32>,
    %c0_197 = arith.constant 0 : index
    %c0_198 = arith.constant 0 : index
    %557 = vector.load %arg11[%c0_197, %c0_198] : memref<2x32xf32, #tpu.memory_space<vmem>>, vector<2x32xf32>
    tpu.vector_store %arg11[%c0_197, %c0_198], %551 {strides = array<i32>} : memref<2x32xf32, #tpu.memory_space<vmem>>, vector<2x32xf32>,
    %558 = arith.truncf %555 : vector<2x32xf32> to vector<2x32xbf16>
    %559 = arith.index_cast %516 : i32 to index
    %c0_199 = arith.constant 0 : index
    %c0_200 = arith.constant 0 : index
    %560 = vector.load %arg7[%559, %c0_199, %c0_200] : memref<8x2x32xbf16, #tpu.memory_space<vmem>>, vector<1x2x32xbf16>
    %561 = vector.shape_cast %560 : vector<1x2x32xbf16> to vector<2x32xbf16>
    %562 = vector.shape_cast %558 : vector<2x32xbf16> to vector<1x2x32xbf16>
    tpu.vector_store %arg7[%559, %c0_199, %c0_200], %562 {strides = array<i32>} : memref<8x2x32xbf16, #tpu.memory_space<vmem>>, vector<1x2x32xbf16>,
    %c6_i32 = arith.constant 6 : i32
    %563 = arith.index_cast %c6_i32 : i32 to index
    %c0_201 = arith.constant 0 : index
    %c0_202 = arith.constant 0 : index
    %564 = vector.load %arg2[%563, %c0_201, %c0_202] : memref<8x2x128xbf16, #tpu.memory_space<vmem>>, vector<1x2x128xbf16>
    %565 = vector.shape_cast %564 : vector<1x2x128xbf16> to vector<2x128xbf16>
    %c0_203 = arith.constant 0 : index
    %c0_204 = arith.constant 0 : index
    %566 = vector.load %arg8[%c0_203, %c0_204] : memref<2x32xf32, #tpu.memory_space<vmem>>, vector<2x32xf32>
    %c0_205 = arith.constant 0 : index
    %c0_206 = arith.constant 0 : index
    %567 = vector.load %arg9[%c0_205, %c0_206] : memref<2x32xf32, #tpu.memory_space<vmem>>, vector<2x32xf32>
    %568 = arith.truncf %566 : vector<2x32xf32> to vector<2x32xbf16>
    %cst_207 = arith.constant dense<0.000000e+00> : vector<2x128xf32>
    %569 = tpu.matmul %568, %3, %cst_207 {dimension_numbers = #tpu.dot_dimension_numbers<[1], [0], [0], [1], [0, 0, 1, 1], [], []>} : vector<2x32xbf16>, vector<32x128xbf16>, vector<2x128xf32> -> vector<2x128xf32>
    %570 = arith.extf %565 : vector<2x128xbf16> to vector<2x128xf32>
    %571 = arith.addf %570, %569 : vector<2x128xf32>
    %572 = arith.truncf %571 : vector<2x128xf32> to vector<2x128xbf16>
    %573 = vector.extract_strided_slice %572 {offsets = [0, 0], sizes = [2, 32], strides = [1, 1]} : vector<2x128xbf16> to vector<2x32xbf16>
    %574 = arith.negf %573 : vector<2x32xbf16>
    %575 = math.exp %574 : vector<2x32xbf16>
    %cst_208 = arith.constant 1.000000e+00 : bf16
    %576 = vector.broadcast %cst_208 : bf16 to vector<2x32xbf16>
    %577 = arith.addf %576, %575 : vector<2x32xbf16>
    %578 = arith.divf %576, %577 : vector<2x32xbf16>
    %579 = vector.extract_strided_slice %572 {offsets = [0, 32], sizes = [2, 32], strides = [1, 1]} : vector<2x128xbf16> to vector<2x32xbf16>
    %580 = arith.negf %579 : vector<2x32xbf16>
    %581 = math.exp %580 : vector<2x32xbf16>
    %cst_209 = arith.constant 1.000000e+00 : bf16
    %582 = vector.broadcast %cst_209 : bf16 to vector<2x32xbf16>
    %583 = arith.addf %582, %581 : vector<2x32xbf16>
    %584 = arith.divf %582, %583 : vector<2x32xbf16>
    %585 = vector.extract_strided_slice %572 {offsets = [0, 64], sizes = [2, 32], strides = [1, 1]} : vector<2x128xbf16> to vector<2x32xbf16>
    %586 = math.tanh %585 : vector<2x32xbf16>
    %587 = vector.extract_strided_slice %572 {offsets = [0, 96], sizes = [2, 32], strides = [1, 1]} : vector<2x128xbf16> to vector<2x32xbf16>
    %588 = arith.negf %587 : vector<2x32xbf16>
    %589 = math.exp %588 : vector<2x32xbf16>
    %cst_210 = arith.constant 1.000000e+00 : bf16
    %590 = vector.broadcast %cst_210 : bf16 to vector<2x32xbf16>
    %591 = arith.addf %590, %589 : vector<2x32xbf16>
    %592 = arith.divf %590, %591 : vector<2x32xbf16>
    %593 = arith.extf %584 : vector<2x32xbf16> to vector<2x32xf32>
    %594 = arith.mulf %593, %567 : vector<2x32xf32>
    %595 = arith.mulf %578, %586 : vector<2x32xbf16>
    %596 = arith.extf %595 : vector<2x32xbf16> to vector<2x32xf32>
    %597 = arith.addf %594, %596 : vector<2x32xf32>
    %598 = arith.truncf %597 : vector<2x32xf32> to vector<2x32xbf16>
    %599 = math.tanh %598 : vector<2x32xbf16>
    %600 = arith.mulf %592, %599 : vector<2x32xbf16>
    %601 = arith.extf %600 : vector<2x32xbf16> to vector<2x32xf32>
    %c0_211 = arith.constant 0 : index
    %c0_212 = arith.constant 0 : index
    %602 = vector.load %arg8[%c0_211, %c0_212] : memref<2x32xf32, #tpu.memory_space<vmem>>, vector<2x32xf32>
    tpu.vector_store %arg8[%c0_211, %c0_212], %601 {strides = array<i32>} : memref<2x32xf32, #tpu.memory_space<vmem>>, vector<2x32xf32>,
    %c0_213 = arith.constant 0 : index
    %c0_214 = arith.constant 0 : index
    %603 = vector.load %arg9[%c0_213, %c0_214] : memref<2x32xf32, #tpu.memory_space<vmem>>, vector<2x32xf32>
    tpu.vector_store %arg9[%c0_213, %c0_214], %597 {strides = array<i32>} : memref<2x32xf32, #tpu.memory_space<vmem>>, vector<2x32xf32>,
    %604 = arith.truncf %601 : vector<2x32xf32> to vector<2x32xbf16>
    %605 = arith.index_cast %c6_i32 : i32 to index
    %c0_215 = arith.constant 0 : index
    %c0_216 = arith.constant 0 : index
    %606 = vector.load %arg6[%605, %c0_215, %c0_216] : memref<8x2x32xbf16, #tpu.memory_space<vmem>>, vector<1x2x32xbf16>
    %607 = vector.shape_cast %606 : vector<1x2x32xbf16> to vector<2x32xbf16>
    %608 = vector.shape_cast %604 : vector<2x32xbf16> to vector<1x2x32xbf16>
    tpu.vector_store %arg6[%605, %c0_215, %c0_216], %608 {strides = array<i32>} : memref<8x2x32xbf16, #tpu.memory_space<vmem>>, vector<1x2x32xbf16>,
    %c7_i32_217 = arith.constant 7 : i32
    %609 = arith.subi %c7_i32_217, %c6_i32 : i32
    %610 = arith.index_cast %609 : i32 to index
    %c0_218 = arith.constant 0 : index
    %c0_219 = arith.constant 0 : index
    %611 = vector.load %arg3[%610, %c0_218, %c0_219] : memref<8x2x128xbf16, #tpu.memory_space<vmem>>, vector<1x2x128xbf16>
    %612 = vector.shape_cast %611 : vector<1x2x128xbf16> to vector<2x128xbf16>
    %c0_220 = arith.constant 0 : index
    %c0_221 = arith.constant 0 : index
    %613 = vector.load %arg10[%c0_220, %c0_221] : memref<2x32xf32, #tpu.memory_space<vmem>>, vector<2x32xf32>
    %c0_222 = arith.constant 0 : index
    %c0_223 = arith.constant 0 : index
    %614 = vector.load %arg11[%c0_222, %c0_223] : memref<2x32xf32, #tpu.memory_space<vmem>>, vector<2x32xf32>
    %615 = arith.truncf %613 : vector<2x32xf32> to vector<2x32xbf16>
    %cst_224 = arith.constant dense<0.000000e+00> : vector<2x128xf32>
    %616 = tpu.matmul %615, %4, %cst_224 {dimension_numbers = #tpu.dot_dimension_numbers<[1], [0], [0], [1], [0, 0, 1, 1], [], []>} : vector<2x32xbf16>, vector<32x128xbf16>, vector<2x128xf32> -> vector<2x128xf32>
    %617 = arith.extf %612 : vector<2x128xbf16> to vector<2x128xf32>
    %618 = arith.addf %617, %616 : vector<2x128xf32>
    %619 = arith.truncf %618 : vector<2x128xf32> to vector<2x128xbf16>
    %620 = vector.extract_strided_slice %619 {offsets = [0, 0], sizes = [2, 32], strides = [1, 1]} : vector<2x128xbf16> to vector<2x32xbf16>
    %621 = arith.negf %620 : vector<2x32xbf16>
    %622 = math.exp %621 : vector<2x32xbf16>
    %cst_225 = arith.constant 1.000000e+00 : bf16
    %623 = vector.broadcast %cst_225 : bf16 to vector<2x32xbf16>
    %624 = arith.addf %623, %622 : vector<2x32xbf16>
    %625 = arith.divf %623, %624 : vector<2x32xbf16>
    %626 = vector.extract_strided_slice %619 {offsets = [0, 32], sizes = [2, 32], strides = [1, 1]} : vector<2x128xbf16> to vector<2x32xbf16>
    %627 = arith.negf %626 : vector<2x32xbf16>
    %628 = math.exp %627 : vector<2x32xbf16>
    %cst_226 = arith.constant 1.000000e+00 : bf16
    %629 = vector.broadcast %cst_226 : bf16 to vector<2x32xbf16>
    %630 = arith.addf %629, %628 : vector<2x32xbf16>
    %631 = arith.divf %629, %630 : vector<2x32xbf16>
    %632 = vector.extract_strided_slice %619 {offsets = [0, 64], sizes = [2, 32], strides = [1, 1]} : vector<2x128xbf16> to vector<2x32xbf16>
    %633 = math.tanh %632 : vector<2x32xbf16>
    %634 = vector.extract_strided_slice %619 {offsets = [0, 96], sizes = [2, 32], strides = [1, 1]} : vector<2x128xbf16> to vector<2x32xbf16>
    %635 = arith.negf %634 : vector<2x32xbf16>
    %636 = math.exp %635 : vector<2x32xbf16>
    %cst_227 = arith.constant 1.000000e+00 : bf16
    %637 = vector.broadcast %cst_227 : bf16 to vector<2x32xbf16>
    %638 = arith.addf %637, %636 : vector<2x32xbf16>
    %639 = arith.divf %637, %638 : vector<2x32xbf16>
    %640 = arith.extf %631 : vector<2x32xbf16> to vector<2x32xf32>
    %641 = arith.mulf %640, %614 : vector<2x32xf32>
    %642 = arith.mulf %625, %633 : vector<2x32xbf16>
    %643 = arith.extf %642 : vector<2x32xbf16> to vector<2x32xf32>
    %644 = arith.addf %641, %643 : vector<2x32xf32>
    %645 = arith.truncf %644 : vector<2x32xf32> to vector<2x32xbf16>
    %646 = math.tanh %645 : vector<2x32xbf16>
    %647 = arith.mulf %639, %646 : vector<2x32xbf16>
    %648 = arith.extf %647 : vector<2x32xbf16> to vector<2x32xf32>
    %c0_228 = arith.constant 0 : index
    %c0_229 = arith.constant 0 : index
    %649 = vector.load %arg10[%c0_228, %c0_229] : memref<2x32xf32, #tpu.memory_space<vmem>>, vector<2x32xf32>
    tpu.vector_store %arg10[%c0_228, %c0_229], %648 {strides = array<i32>} : memref<2x32xf32, #tpu.memory_space<vmem>>, vector<2x32xf32>,
    %c0_230 = arith.constant 0 : index
    %c0_231 = arith.constant 0 : index
    %650 = vector.load %arg11[%c0_230, %c0_231] : memref<2x32xf32, #tpu.memory_space<vmem>>, vector<2x32xf32>
    tpu.vector_store %arg11[%c0_230, %c0_231], %644 {strides = array<i32>} : memref<2x32xf32, #tpu.memory_space<vmem>>, vector<2x32xf32>,
    %651 = arith.truncf %648 : vector<2x32xf32> to vector<2x32xbf16>
    %652 = arith.index_cast %609 : i32 to index
    %c0_232 = arith.constant 0 : index
    %c0_233 = arith.constant 0 : index
    %653 = vector.load %arg7[%652, %c0_232, %c0_233] : memref<8x2x32xbf16, #tpu.memory_space<vmem>>, vector<1x2x32xbf16>
    %654 = vector.shape_cast %653 : vector<1x2x32xbf16> to vector<2x32xbf16>
    %655 = vector.shape_cast %651 : vector<2x32xbf16> to vector<1x2x32xbf16>
    tpu.vector_store %arg7[%652, %c0_232, %c0_233], %655 {strides = array<i32>} : memref<8x2x32xbf16, #tpu.memory_space<vmem>>, vector<1x2x32xbf16>,
    %c7_i32_234 = arith.constant 7 : i32
    %656 = arith.index_cast %c7_i32_234 : i32 to index
    %c0_235 = arith.constant 0 : index
    %c0_236 = arith.constant 0 : index
    %657 = vector.load %arg2[%656, %c0_235, %c0_236] : memref<8x2x128xbf16, #tpu.memory_space<vmem>>, vector<1x2x128xbf16>
    %658 = vector.shape_cast %657 : vector<1x2x128xbf16> to vector<2x128xbf16>
    %c0_237 = arith.constant 0 : index
    %c0_238 = arith.constant 0 : index
    %659 = vector.load %arg8[%c0_237, %c0_238] : memref<2x32xf32, #tpu.memory_space<vmem>>, vector<2x32xf32>
    %c0_239 = arith.constant 0 : index
    %c0_240 = arith.constant 0 : index
    %660 = vector.load %arg9[%c0_239, %c0_240] : memref<2x32xf32, #tpu.memory_space<vmem>>, vector<2x32xf32>
    %661 = arith.truncf %659 : vector<2x32xf32> to vector<2x32xbf16>
    %cst_241 = arith.constant dense<0.000000e+00> : vector<2x128xf32>
    %662 = tpu.matmul %661, %3, %cst_241 {dimension_numbers = #tpu.dot_dimension_numbers<[1], [0], [0], [1], [0, 0, 1, 1], [], []>} : vector<2x32xbf16>, vector<32x128xbf16>, vector<2x128xf32> -> vector<2x128xf32>
    %663 = arith.extf %658 : vector<2x128xbf16> to vector<2x128xf32>
    %664 = arith.addf %663, %662 : vector<2x128xf32>
    %665 = arith.truncf %664 : vector<2x128xf32> to vector<2x128xbf16>
    %666 = vector.extract_strided_slice %665 {offsets = [0, 0], sizes = [2, 32], strides = [1, 1]} : vector<2x128xbf16> to vector<2x32xbf16>
    %667 = arith.negf %666 : vector<2x32xbf16>
    %668 = math.exp %667 : vector<2x32xbf16>
    %cst_242 = arith.constant 1.000000e+00 : bf16
    %669 = vector.broadcast %cst_242 : bf16 to vector<2x32xbf16>
    %670 = arith.addf %669, %668 : vector<2x32xbf16>
    %671 = arith.divf %669, %670 : vector<2x32xbf16>
    %672 = vector.extract_strided_slice %665 {offsets = [0, 32], sizes = [2, 32], strides = [1, 1]} : vector<2x128xbf16> to vector<2x32xbf16>
    %673 = arith.negf %672 : vector<2x32xbf16>
    %674 = math.exp %673 : vector<2x32xbf16>
    %cst_243 = arith.constant 1.000000e+00 : bf16
    %675 = vector.broadcast %cst_243 : bf16 to vector<2x32xbf16>
    %676 = arith.addf %675, %674 : vector<2x32xbf16>
    %677 = arith.divf %675, %676 : vector<2x32xbf16>
    %678 = vector.extract_strided_slice %665 {offsets = [0, 64], sizes = [2, 32], strides = [1, 1]} : vector<2x128xbf16> to vector<2x32xbf16>
    %679 = math.tanh %678 : vector<2x32xbf16>
    %680 = vector.extract_strided_slice %665 {offsets = [0, 96], sizes = [2, 32], strides = [1, 1]} : vector<2x128xbf16> to vector<2x32xbf16>
    %681 = arith.negf %680 : vector<2x32xbf16>
    %682 = math.exp %681 : vector<2x32xbf16>
    %cst_244 = arith.constant 1.000000e+00 : bf16
    %683 = vector.broadcast %cst_244 : bf16 to vector<2x32xbf16>
    %684 = arith.addf %683, %682 : vector<2x32xbf16>
    %685 = arith.divf %683, %684 : vector<2x32xbf16>
    %686 = arith.extf %677 : vector<2x32xbf16> to vector<2x32xf32>
    %687 = arith.mulf %686, %660 : vector<2x32xf32>
    %688 = arith.mulf %671, %679 : vector<2x32xbf16>
    %689 = arith.extf %688 : vector<2x32xbf16> to vector<2x32xf32>
    %690 = arith.addf %687, %689 : vector<2x32xf32>
    %691 = arith.truncf %690 : vector<2x32xf32> to vector<2x32xbf16>
    %692 = math.tanh %691 : vector<2x32xbf16>
    %693 = arith.mulf %685, %692 : vector<2x32xbf16>
    %694 = arith.extf %693 : vector<2x32xbf16> to vector<2x32xf32>
    %c0_245 = arith.constant 0 : index
    %c0_246 = arith.constant 0 : index
    %695 = vector.load %arg8[%c0_245, %c0_246] : memref<2x32xf32, #tpu.memory_space<vmem>>, vector<2x32xf32>
    tpu.vector_store %arg8[%c0_245, %c0_246], %694 {strides = array<i32>} : memref<2x32xf32, #tpu.memory_space<vmem>>, vector<2x32xf32>,
    %c0_247 = arith.constant 0 : index
    %c0_248 = arith.constant 0 : index
    %696 = vector.load %arg9[%c0_247, %c0_248] : memref<2x32xf32, #tpu.memory_space<vmem>>, vector<2x32xf32>
    tpu.vector_store %arg9[%c0_247, %c0_248], %690 {strides = array<i32>} : memref<2x32xf32, #tpu.memory_space<vmem>>, vector<2x32xf32>,
    %697 = arith.truncf %694 : vector<2x32xf32> to vector<2x32xbf16>
    %698 = arith.index_cast %c7_i32_234 : i32 to index
    %c0_249 = arith.constant 0 : index
    %c0_250 = arith.constant 0 : index
    %699 = vector.load %arg6[%698, %c0_249, %c0_250] : memref<8x2x32xbf16, #tpu.memory_space<vmem>>, vector<1x2x32xbf16>
    %700 = vector.shape_cast %699 : vector<1x2x32xbf16> to vector<2x32xbf16>
    %701 = vector.shape_cast %697 : vector<2x32xbf16> to vector<1x2x32xbf16>
    tpu.vector_store %arg6[%698, %c0_249, %c0_250], %701 {strides = array<i32>} : memref<8x2x32xbf16, #tpu.memory_space<vmem>>, vector<1x2x32xbf16>,
    %c7_i32_251 = arith.constant 7 : i32
    %702 = arith.subi %c7_i32_251, %c7_i32_234 : i32
    %703 = arith.index_cast %702 : i32 to index
    %c0_252 = arith.constant 0 : index
    %c0_253 = arith.constant 0 : index
    %704 = vector.load %arg3[%703, %c0_252, %c0_253] : memref<8x2x128xbf16, #tpu.memory_space<vmem>>, vector<1x2x128xbf16>
    %705 = vector.shape_cast %704 : vector<1x2x128xbf16> to vector<2x128xbf16>
    %c0_254 = arith.constant 0 : index
    %c0_255 = arith.constant 0 : index
    %706 = vector.load %arg10[%c0_254, %c0_255] : memref<2x32xf32, #tpu.memory_space<vmem>>, vector<2x32xf32>
    %c0_256 = arith.constant 0 : index
    %c0_257 = arith.constant 0 : index
    %707 = vector.load %arg11[%c0_256, %c0_257] : memref<2x32xf32, #tpu.memory_space<vmem>>, vector<2x32xf32>
    %708 = arith.truncf %706 : vector<2x32xf32> to vector<2x32xbf16>
    %cst_258 = arith.constant dense<0.000000e+00> : vector<2x128xf32>
    %709 = tpu.matmul %708, %4, %cst_258 {dimension_numbers = #tpu.dot_dimension_numbers<[1], [0], [0], [1], [0, 0, 1, 1], [], []>} : vector<2x32xbf16>, vector<32x128xbf16>, vector<2x128xf32> -> vector<2x128xf32>
    %710 = arith.extf %705 : vector<2x128xbf16> to vector<2x128xf32>
    %711 = arith.addf %710, %709 : vector<2x128xf32>
    %712 = arith.truncf %711 : vector<2x128xf32> to vector<2x128xbf16>
    %713 = vector.extract_strided_slice %712 {offsets = [0, 0], sizes = [2, 32], strides = [1, 1]} : vector<2x128xbf16> to vector<2x32xbf16>
    %714 = arith.negf %713 : vector<2x32xbf16>
    %715 = math.exp %714 : vector<2x32xbf16>
    %cst_259 = arith.constant 1.000000e+00 : bf16
    %716 = vector.broadcast %cst_259 : bf16 to vector<2x32xbf16>
    %717 = arith.addf %716, %715 : vector<2x32xbf16>
    %718 = arith.divf %716, %717 : vector<2x32xbf16>
    %719 = vector.extract_strided_slice %712 {offsets = [0, 32], sizes = [2, 32], strides = [1, 1]} : vector<2x128xbf16> to vector<2x32xbf16>
    %720 = arith.negf %719 : vector<2x32xbf16>
    %721 = math.exp %720 : vector<2x32xbf16>
    %cst_260 = arith.constant 1.000000e+00 : bf16
    %722 = vector.broadcast %cst_260 : bf16 to vector<2x32xbf16>
    %723 = arith.addf %722, %721 : vector<2x32xbf16>
    %724 = arith.divf %722, %723 : vector<2x32xbf16>
    %725 = vector.extract_strided_slice %712 {offsets = [0, 64], sizes = [2, 32], strides = [1, 1]} : vector<2x128xbf16> to vector<2x32xbf16>
    %726 = math.tanh %725 : vector<2x32xbf16>
    %727 = vector.extract_strided_slice %712 {offsets = [0, 96], sizes = [2, 32], strides = [1, 1]} : vector<2x128xbf16> to vector<2x32xbf16>
    %728 = arith.negf %727 : vector<2x32xbf16>
    %729 = math.exp %728 : vector<2x32xbf16>
    %cst_261 = arith.constant 1.000000e+00 : bf16
    %730 = vector.broadcast %cst_261 : bf16 to vector<2x32xbf16>
    %731 = arith.addf %730, %729 : vector<2x32xbf16>
    %732 = arith.divf %730, %731 : vector<2x32xbf16>
    %733 = arith.extf %724 : vector<2x32xbf16> to vector<2x32xf32>
    %734 = arith.mulf %733, %707 : vector<2x32xf32>
    %735 = arith.mulf %718, %726 : vector<2x32xbf16>
    %736 = arith.extf %735 : vector<2x32xbf16> to vector<2x32xf32>
    %737 = arith.addf %734, %736 : vector<2x32xf32>
    %738 = arith.truncf %737 : vector<2x32xf32> to vector<2x32xbf16>
    %739 = math.tanh %738 : vector<2x32xbf16>
    %740 = arith.mulf %732, %739 : vector<2x32xbf16>
    %741 = arith.extf %740 : vector<2x32xbf16> to vector<2x32xf32>
    %c0_262 = arith.constant 0 : index
    %c0_263 = arith.constant 0 : index
    %742 = vector.load %arg10[%c0_262, %c0_263] : memref<2x32xf32, #tpu.memory_space<vmem>>, vector<2x32xf32>
    tpu.vector_store %arg10[%c0_262, %c0_263], %741 {strides = array<i32>} : memref<2x32xf32, #tpu.memory_space<vmem>>, vector<2x32xf32>,
    %c0_264 = arith.constant 0 : index
    %c0_265 = arith.constant 0 : index
    %743 = vector.load %arg11[%c0_264, %c0_265] : memref<2x32xf32, #tpu.memory_space<vmem>>, vector<2x32xf32>
    tpu.vector_store %arg11[%c0_264, %c0_265], %737 {strides = array<i32>} : memref<2x32xf32, #tpu.memory_space<vmem>>, vector<2x32xf32>,
    %744 = arith.truncf %741 : vector<2x32xf32> to vector<2x32xbf16>
    %745 = arith.index_cast %702 : i32 to index
    %c0_266 = arith.constant 0 : index
    %c0_267 = arith.constant 0 : index
    %746 = vector.load %arg7[%745, %c0_266, %c0_267] : memref<8x2x32xbf16, #tpu.memory_space<vmem>>, vector<1x2x32xbf16>
    %747 = vector.shape_cast %746 : vector<1x2x32xbf16> to vector<2x32xbf16>
    %748 = vector.shape_cast %744 : vector<2x32xbf16> to vector<1x2x32xbf16>
    tpu.vector_store %arg7[%745, %c0_266, %c0_267], %748 {strides = array<i32>} : memref<8x2x32xbf16, #tpu.memory_space<vmem>>, vector<1x2x32xbf16>,
    %c8_i32 = arith.constant 8 : i32
    return
  }
  func.func @transform_0(%arg0: i32, %arg1: i32) -> (i32, i32, i32) {
    %c0_i32 = arith.constant 0 : i32
    %c0_i32_0 = arith.constant 0 : i32
    return %arg1, %arg0, %c0_i32 : i32, i32, i32
  }
  func.func @transform_1(%arg0: i32, %arg1: i32) -> (i32, i32, i32) {
    %c0_i32 = arith.constant 0 : i32
    %0 = arith.subi %c0_i32, %arg1 : i32
    %c0_i32_0 = arith.constant 0 : i32
    %c0_i32_1 = arith.constant 0 : i32
    return %0, %arg0, %c0_i32_0 : i32, i32, i32
  }
  func.func @transform_2(%arg0: i32, %arg1: i32) -> (i32, i32) {
    %c0_i32 = arith.constant 0 : i32
    %c0_i32_0 = arith.constant 0 : i32
    %c0_i32_1 = arith.constant 0 : i32
    return %c0_i32, %c0_i32_0 : i32, i32
  }
  func.func @transform_3(%arg0: i32, %arg1: i32) -> (i32, i32) {
    %c0_i32 = arith.constant 0 : i32
    %c0_i32_0 = arith.constant 0 : i32
    %c0_i32_1 = arith.constant 0 : i32
    return %c0_i32, %c0_i32_0 : i32, i32
  }
  func.func @transform_4(%arg0: i32, %arg1: i32) -> (i32, i32, i32) {
    %c0_i32 = arith.constant 0 : i32
    %c0_i32_0 = arith.constant 0 : i32
    return %arg1, %arg0, %c0_i32 : i32, i32, i32
  }
  func.func @transform_5(%arg0: i32, %arg1: i32) -> (i32, i32, i32) {
    %c0_i32 = arith.constant 0 : i32
    %0 = arith.subi %c0_i32, %arg1 : i32
    %c0_i32_0 = arith.constant 0 : i32
    %c0_i32_1 = arith.constant 0 : i32
    return %0, %arg0, %c0_i32_0 : i32, i32, i32
  }
}

module attributes {stable_mosaic.version = 11 : i64} {
  func.func @_head_kernel(%arg0: i32, %arg1: memref<16x32xbf16, #tpu.memory_space<vmem>>, %arg2: memref<16x32xbf16, #tpu.memory_space<vmem>>, %arg3: memref<32x128xbf16, #tpu.memory_space<vmem>>, %arg4: memref<32x128xbf16, #tpu.memory_space<vmem>>, %arg5: memref<1x128xf32, #tpu.memory_space<vmem>>, %arg6: memref<16x128xf32, #tpu.memory_space<vmem>>) attributes {dimension_semantics = [#tpu.dimension_semantics<parallel>], iteration_bounds = array<i64: 1>, scalar_prefetch = 0 : i64, scratch_operands = 0 : i64, tpu.core_type = #tpu.core_type<tc>, window_params = [{transform_indices = @transform_0, window_bounds = array<i64: 16, 32>}, {transform_indices = @transform_1, window_bounds = array<i64: 16, 32>}, {pipeline_mode = #tpu.pipeline_mode<synchronous>, transform_indices = @transform_2, window_bounds = array<i64: 32, 128>}, {pipeline_mode = #tpu.pipeline_mode<synchronous>, transform_indices = @transform_3, window_bounds = array<i64: 32, 128>}, {pipeline_mode = #tpu.pipeline_mode<synchronous>, transform_indices = @transform_4, window_bounds = array<i64: 1, 128>}, {transform_indices = @transform_5, window_bounds = array<i64: 16, 128>}]} {
    %c0 = arith.constant 0 : index
    %c0_0 = arith.constant 0 : index
    %0 = vector.load %arg1[%c0, %c0_0] : memref<16x32xbf16, #tpu.memory_space<vmem>>, vector<16x32xbf16>
    %cst = arith.constant 0.000000e+00 : bf16
    %1 = vector.broadcast %cst : bf16 to vector<16x32xbf16>
    %2 = arith.maximumf %0, %1 : vector<16x32xbf16>
    %c0_1 = arith.constant 0 : index
    %c0_2 = arith.constant 0 : index
    %3 = vector.load %arg2[%c0_1, %c0_2] : memref<16x32xbf16, #tpu.memory_space<vmem>>, vector<16x32xbf16>
    %cst_3 = arith.constant 0.000000e+00 : bf16
    %4 = vector.broadcast %cst_3 : bf16 to vector<16x32xbf16>
    %5 = arith.maximumf %3, %4 : vector<16x32xbf16>
    %c0_4 = arith.constant 0 : index
    %c0_5 = arith.constant 0 : index
    %6 = vector.load %arg3[%c0_4, %c0_5] : memref<32x128xbf16, #tpu.memory_space<vmem>>, vector<32x128xbf16>
    %cst_6 = arith.constant dense<0.000000e+00> : vector<16x128xf32>
    %7 = tpu.matmul %2, %6, %cst_6 {dimension_numbers = #tpu.dot_dimension_numbers<[1], [0], [0], [1], [0, 0, 1, 1], [], []>} : vector<16x32xbf16>, vector<32x128xbf16>, vector<16x128xf32> -> vector<16x128xf32>
    %c0_7 = arith.constant 0 : index
    %c0_8 = arith.constant 0 : index
    %8 = vector.load %arg4[%c0_7, %c0_8] : memref<32x128xbf16, #tpu.memory_space<vmem>>, vector<32x128xbf16>
    %cst_9 = arith.constant dense<0.000000e+00> : vector<16x128xf32>
    %9 = tpu.matmul %5, %8, %cst_9 {dimension_numbers = #tpu.dot_dimension_numbers<[1], [0], [0], [1], [0, 0, 1, 1], [], []>} : vector<16x32xbf16>, vector<32x128xbf16>, vector<16x128xf32> -> vector<16x128xf32>
    %10 = arith.addf %7, %9 : vector<16x128xf32>
    %c0_10 = arith.constant 0 : index
    %c0_11 = arith.constant 0 : index
    %11 = vector.load %arg5[%c0_10, %c0_11] : memref<1x128xf32, #tpu.memory_space<vmem>>, vector<1x128xf32>
    %12 = vector.broadcast %11 : vector<1x128xf32> to vector<16x128xf32>
    %13 = arith.addf %10, %12 : vector<16x128xf32>
    %cst_12 = arith.constant dense<0xFF800000> : vector<16xf32>
    %14 = vector.multi_reduction <maximumf>, %13, %cst_12 [1] : vector<16x128xf32> to vector<16xf32>
    %15 = vector.shape_cast %14 : vector<16xf32> to vector<16x1xf32>
    %16 = vector.broadcast %15 : vector<16x1xf32> to vector<16x128xf32>
    %17 = arith.subf %13, %16 : vector<16x128xf32>
    %18 = math.exp %17 : vector<16x128xf32>
    %cst_13 = arith.constant dense<0.000000e+00> : vector<16xf32>
    %19 = vector.multi_reduction <add>, %18, %cst_13 [1] : vector<16x128xf32> to vector<16xf32>
    %20 = vector.shape_cast %19 : vector<16xf32> to vector<16x1xf32>
    %21 = math.log %20 : vector<16x1xf32>
    %22 = vector.broadcast %21 : vector<16x1xf32> to vector<16x128xf32>
    %23 = arith.subf %17, %22 : vector<16x128xf32>
    %c0_14 = arith.constant 0 : index
    %c0_15 = arith.constant 0 : index
    %24 = vector.load %arg6[%c0_14, %c0_15] : memref<16x128xf32, #tpu.memory_space<vmem>>, vector<16x128xf32>
    tpu.vector_store %arg6[%c0_14, %c0_15], %23 {strides = array<i32>} : memref<16x128xf32, #tpu.memory_space<vmem>>, vector<16x128xf32>,
    return
  }
  func.func @transform_0(%arg0: i32) -> (i32, i32) {
    %c0_i32 = arith.constant 0 : i32
    %c0_i32_0 = arith.constant 0 : i32
    return %arg0, %c0_i32 : i32, i32
  }
  func.func @transform_1(%arg0: i32) -> (i32, i32) {
    %c0_i32 = arith.constant 0 : i32
    %c0_i32_0 = arith.constant 0 : i32
    return %arg0, %c0_i32 : i32, i32
  }
  func.func @transform_2(%arg0: i32) -> (i32, i32) {
    %c0_i32 = arith.constant 0 : i32
    %c0_i32_0 = arith.constant 0 : i32
    %c0_i32_1 = arith.constant 0 : i32
    return %c0_i32, %c0_i32_0 : i32, i32
  }
  func.func @transform_3(%arg0: i32) -> (i32, i32) {
    %c0_i32 = arith.constant 0 : i32
    %c0_i32_0 = arith.constant 0 : i32
    %c0_i32_1 = arith.constant 0 : i32
    return %c0_i32, %c0_i32_0 : i32, i32
  }
  func.func @transform_4(%arg0: i32) -> (i32, i32) {
    %c0_i32 = arith.constant 0 : i32
    %c0_i32_0 = arith.constant 0 : i32
    %c0_i32_1 = arith.constant 0 : i32
    return %c0_i32, %c0_i32_0 : i32, i32
  }
  func.func @transform_5(%arg0: i32) -> (i32, i32) {
    %c0_i32 = arith.constant 0 : i32
    %c0_i32_0 = arith.constant 0 : i32
    return %arg0, %c0_i32 : i32, i32
  }
}

</mosaic_0001>

<llo_original>
// kernel: ctc_lstm_forward.3
$region0: #{ctc_lstm_forward.3}
  #allocation0 [shape = 'u32[]', space=smem, size = 0x4, offset = 0x4, fixed_abs, tag = 'smem constant byte address 0x4 - core index']
  #allocation1 [shape = 'u32[144,128]{1,0:T(1,128)}', space=vmem, size = 0x12000, scoped, tag = 'internal scratch']
  %s0 = inlined_call_operand.hbm [shape: f32[16,16], index: 0, kind: input, shape index: {}]
  %s1 = inlined_call_operand.hbm [shape: bf16[16,32], index: 1, kind: input, shape index: {}]
  %s2 = inlined_call_operand.hbm [shape: f32[1,32], index: 2, kind: input, shape index: {}]
  %s3 = inlined_call_operand.hbm [shape: bf16[32,256], index: 3, kind: input, shape index: {}]
  %s4 = inlined_call_operand.hbm [shape: f32[1,256], index: 4, kind: input, shape index: {}]
  %s5 = inlined_call_operand.hbm [shape: bf16[16,128], index: 5, kind: output, shape index: {0}]
  %s6 = inlined_call_operand.hbm [shape: bf16[16,128], index: 6, kind: output, shape index: {1}]
  %7 = xla_tuple %s5, %s6
  %s8 = sld [smem:[#allocation0]]
  $region58: #{ctc_lstm_forward.3} parent=0
    _
  %s10 = ssub.s32 1, %s8
  %s11 = scalar_select 0, %s10, %s8
  $region1: #{ctc_lstm_forward.3} parent=0
    #allocation2 [shape = 'u8[8192]{0}', space=vmem, size = 0x2000, scoped, tag = 'input window, operand 0, single buffered']
    #allocation3 [shape = 's32[1]{0}', space=sflag, size = 0x4, scoped, tag = 'scoped memory for ctc_lstm_forward.3']
    #allocation4 [shape = 's32[1]{0}', space=sflag, size = 0x4, scoped, tag = 'scoped memory for ctc_lstm_forward.3']
    #allocation5 [shape = 'u8[4096]{0}', space=vmem, size = 0x1000, scoped, tag = 'input window, operand 1, single buffered']
    #allocation6 [shape = 's32[1]{0}', space=sflag, size = 0x4, scoped, tag = 'scoped memory for ctc_lstm_forward.3']
    #allocation7 [shape = 'u8[512]{0}', space=vmem, size = 0x400, scoped, tag = 'input window, operand 2, single buffered']
    #allocation8 [shape = 'u8[16384]{0}', space=vmem, size = 0x4000, scoped, tag = 'input window, operand 3, single buffered']
    #allocation9 [shape = 's32[1]{0}', space=sflag, size = 0x4, scoped, tag = 'scoped memory for ctc_lstm_forward.3']
    #allocation10 [shape = 'u8[1024]{0}', space=vmem, size = 0x400, scoped, tag = 'input window, operand 4, single buffered']
    #allocation11 [shape = 'u8[4096]{0}', space=vmem, size = 0x1000, scoped, tag = 'output window, operand 0, single buffered']
    #allocation12 [shape = 'u8[4096]{0}', space=vmem, size = 0x1000, scoped, tag = 'output window, operand 1, single buffered']
    #allocation13 [shape = 's32[1]{0}', space=sflag, size = 0x4, scoped, tag = 'scoped memory for ctc_lstm_forward.3']
    %12 = vsyncpa [#allocation3], 0
    %13 = vsyncpa [#allocation6], 0
    %14 = vsyncpa [#allocation9], 0
    %15 = vsyncpa [#allocation4], 0
    %16 = vsyncpa [#allocation13], 0
    // Predicated region
    $region2: #{ctc_lstm_forward.3} parent=1 // pred_check
      _
    $region3: #{ctc_lstm_forward.3} parent=1 // pred_check_branch
      %18 = sbr.rel (0) target = $region5
    $region4: #{ctc_lstm_forward.3} parent=1 // pred_region
      %s20 = ssub.s32 256, 256
      %21 = vsyncadd [#allocation3], %s20
      %s22 = sshll.u32 [#allocation2], 4
      %s23 = int_to_ptr.vmem [resolvable:$true] %s22
      %28 = dma.hbm_to_vmem [thread:$0]  %s0, 256, %s23, [#allocation3], 128, 128, 8
    $region5: #{ctc_lstm_forward.3} parent=1 // pred_fallthru
      _
    // Predicated region
    $region6: #{ctc_lstm_forward.3} parent=1 // pred_check
      _
    $region7: #{ctc_lstm_forward.3} parent=1 // pred_check_branch
      %30 = sbr.rel (0) target = $region9
    $region8: #{ctc_lstm_forward.3} parent=1 // pred_region
      %s32 = ssub.s32 128, 128
      %33 = vsyncadd [#allocation6], %s32
      %s34 = sshll.u32 [#allocation5], 4
      %s35 = int_to_ptr.vmem [resolvable:$true] %s34
      %40 = dma.hbm_to_vmem [thread:$0]  %s1, 128, %s35, [#allocation6], 64, 64, 4
    $region9: #{ctc_lstm_forward.3} parent=1 // pred_fallthru
      _
    // Predicated region
    $region10: #{ctc_lstm_forward.3} parent=1 // pred_check
      _
    $region11: #{ctc_lstm_forward.3} parent=1 // pred_check_branch
      %42 = sbr.rel (0) target = $region13
    $region12: #{ctc_lstm_forward.3} parent=1 // pred_region
      %s44 = ssub.s32 16, 16
      %45 = vsyncadd [#allocation6], %s44
      %s47 = sshll.u32 [#allocation7], 4
      %s48 = int_to_ptr.vmem [resolvable:$true] %s47
      %50 = dma.hbm_to_vmem [thread:$0]  %s2, 16, %s48, [#allocation6]
    $region13: #{ctc_lstm_forward.3} parent=1 // pred_fallthru
      _
    // Predicated region
    $region14: #{ctc_lstm_forward.3} parent=1 // pred_check
      _
    $region15: #{ctc_lstm_forward.3} parent=1 // pred_check_branch
      %52 = sbr.rel (0) target = $region17
    $region16: #{ctc_lstm_forward.3} parent=1 // pred_region
      %s54 = ssub.s32 512, 512
      %55 = vsyncadd [#allocation9], %s54
      %s56 = sshll.u32 [#allocation8], 4
      %s57 = int_to_ptr.vmem [resolvable:$true] %s56
      %62 = dma.hbm_to_vmem [thread:$0]  %s3, 512, %s57, [#allocation9], 128, 128, 8
    $region17: #{ctc_lstm_forward.3} parent=1 // pred_fallthru
      _
    // Predicated region
    $region18: #{ctc_lstm_forward.3} parent=1 // pred_check
      _
    $region19: #{ctc_lstm_forward.3} parent=1 // pred_check_branch
      %64 = sbr.rel (0) target = $region21
    $region20: #{ctc_lstm_forward.3} parent=1 // pred_region
      %s66 = ssub.s32 32, 32
      %67 = vsyncadd [#allocation9], %s66
      %s69 = sshll.u32 [#allocation10], 4
      %s70 = int_to_ptr.vmem [resolvable:$true] %s69
      %72 = dma.hbm_to_vmem [thread:$0]  %s4, 32, %s70, [#allocation9]
    $region21: #{ctc_lstm_forward.3} parent=1 // pred_fallthru
      _
    // Predicated region
    $region22: #{ctc_lstm_forward.3} parent=1 // pred_check
      _
    $region23: #{ctc_lstm_forward.3} parent=1 // pred_check_branch
      %74 = sbr.rel (0) target = $region25
    $region24: #{ctc_lstm_forward.3} parent=1 // pred_region
      %75 = dma.done [#allocation3], 256
    $region25: #{ctc_lstm_forward.3} parent=1 // pred_fallthru
      _
    // Predicated region
    $region26: #{ctc_lstm_forward.3} parent=1 // pred_check
      _
    $region27: #{ctc_lstm_forward.3} parent=1 // pred_check_branch
      %77 = sbr.rel (0) target = $region29
    $region28: #{ctc_lstm_forward.3} parent=1 // pred_region
      %78 = dma.done [#allocation6], 128
    $region29: #{ctc_lstm_forward.3} parent=1 // pred_fallthru
      _
    // Predicated region
    $region30: #{ctc_lstm_forward.3} parent=1 // pred_check
      _
    $region31: #{ctc_lstm_forward.3} parent=1 // pred_check_branch
      %80 = sbr.rel (0) target = $region33
    $region32: #{ctc_lstm_forward.3} parent=1 // pred_region
      %81 = dma.done [#allocation6], 16
    $region33: #{ctc_lstm_forward.3} parent=1 // pred_fallthru
      _
    // Predicated region
    $region34: #{ctc_lstm_forward.3} parent=1 // pred_check
      _
    $region35: #{ctc_lstm_forward.3} parent=1 // pred_check_branch
      %83 = sbr.rel (0) target = $region37
    $region36: #{ctc_lstm_forward.3} parent=1 // pred_region
      %84 = dma.done [#allocation9], 512
    $region37: #{ctc_lstm_forward.3} parent=1 // pred_fallthru
      _
    // Predicated region
    $region38: #{ctc_lstm_forward.3} parent=1 // pred_check
      _
    $region39: #{ctc_lstm_forward.3} parent=1 // pred_check_branch
      %86 = sbr.rel (0) target = $region41
    $region40: #{ctc_lstm_forward.3} parent=1 // pred_region
      %87 = dma.done [#allocation9], 32
    $region41: #{ctc_lstm_forward.3} parent=1 // pred_fallthru
      _
    %v89 = vld [vmem:[#allocation2] sm:$0xff]
    %v90 = vld [vmem:[#allocation2 + $0x8] sm:$0xff]
    %v91 = vpack.c.bf16 %v90, %v89
    %v92 = vld [vmem:[#allocation5] sm:$0xf]
    %v93 = vld [vmem:[#allocation5 + $0x4] sm:$0xf]
    %v94 = vld [vmem:[#allocation7] sm:$0x1]
    %v96 = vlaneseq
    %v97 = vshrl.u32 %v96, 7
    %v98 = vsub.s32 0, %v97
    %v99 = vrot.slane %v94, %v98
    %v103 = vunpack.c.l.b16 %v92
    %v104 = vunpack.c.l.b16 %v93
    %v105 = vpack.c.b16 %v104, %v103
    %vm107 = vcmask 130048
    %v109 = vsel %vm107, %v91, 0
    %111 = vmatprep.subr.bf16.mxu0 0
    %112 = vmatpush1.bf16.msra.mxu0 %v105
    %113 = vmatprep.subr.bf16.mxu0 0
    %114 = vmatpush1.bf16.msra.mxu0 0
    %115 = vmatprep.subr.bf16.mxu0 0
    %116 = vmatpush1.bf16.msra.mxu0 0
    %117 = vmatprep.subr.bf16.mxu0 0
    %118 = vmatpush1.bf16.msra.mxu0 0
    %119 = vmatprep.subr.bf16.mxu0 0
    %120 = vmatpush1.bf16.msra.mxu0 0
    %121 = vmatprep.subr.bf16.mxu0 0
    %122 = vmatpush1.bf16.msra.mxu0 0
    %123 = vmatprep.subr.bf16.mxu0 0
    %124 = vmatpush1.bf16.msra.mxu0 0
    %125 = vmatprep.subr.bf16.mxu0 0
    %126 = vmatpush1.bf16.msra.mxu0 0
    %127 = vmatprep.subr.bf16.mxu0 0
    %128 = vmatpush1.bf16.msra.mxu0 0
    %129 = vmatprep.subr.bf16.mxu0 0
    %130 = vmatpush1.bf16.msra.mxu0 0
    %131 = vmatprep.subr.bf16.mxu0 0
    %132 = vmatpush1.bf16.msra.mxu0 0
    %133 = vmatprep.subr.bf16.mxu0 0
    %134 = vmatpush1.bf16.msra.mxu0 0
    %135 = vmatprep.subr.bf16.mxu0 0
    %136 = vmatpush1.bf16.msra.mxu0 0
    %137 = vmatprep.subr.bf16.mxu0 0
    %138 = vmatpush1.bf16.msra.mxu0 0
    %139 = vmatprep.subr.bf16.mxu0 0
    %140 = vmatpush1.bf16.msra.mxu0 0
    %141 = vmatprep.subr.bf16.mxu0 0
    %142 = vmatpush1.bf16.msra.mxu0 0
    %143 = vmatprep.mubr.bf16.mxu0 0
    %144 = vmatmul.mubr.bf16.gmra.mrb[0].mxu0 %v109
    %v145 = vpop.f32.mrb[0].mxu0
    %v146 = vadd.f32 %v99, %v145
    %v147 = vpop.f32.mrb[0].mxu0
    %v148 = vpop.f32.mrb[0].mxu0
    %v149 = vadd.f32 %v99, %v148
    %v150 = vpop.f32.mrb[0].mxu0
    %151 = vdwg.mxu0
    %v152 = vmax.f32 %v146, 0.0
    %v153 = vmax.f32 %v149, 0.0
    %v154 = vpack.c.bf16 %v153, %v152
    %v155 = vld [vmem:[#allocation8] sm:$0xff]
    %v156 = vld [vmem:[#allocation8 + $0x8] sm:$0xff]
    %v157 = vld [vmem:[#allocation8 + $0x10] sm:$0xff]
    %v158 = vld [vmem:[#allocation8 + $0x18] sm:$0xff]
    %v159 = vld [vmem:[#allocation10] sm:$0x3]
    %v161 = vlaneseq
    %v162 = vshrl.u32 %v161, 7
    %v163 = vsub.s32 0, %v162
    %v164 = vrot.slane %v159, %v163
    %v165 = vlaneseq
    %v166 = vshrl.u32 %v165, 7
    %v167 = vsub.s32 1, %v166
    %v168 = vrot.slane %v159, %v167
    %v175 = vunpack.c.l.b16 %v155
    %v176 = vunpack.c.h.b16 %v155
    %v177 = vunpack.c.l.b16 %v156
    %v178 = vunpack.c.h.b16 %v156
    %v179 = vunpack.c.l.b16 %v157
    %v180 = vunpack.c.h.b16 %v157
    %v181 = vunpack.c.l.b16 %v158
    %v182 = vunpack.c.h.b16 %v158
    %v183 = vpack.c.b16 %v177, %v175
    %v184 = vpack.c.b16 %v178, %v176
    %v185 = vpack.c.b16 %v181, %v179
    %v186 = vpack.c.b16 %v182, %v180
    %vm191 = vcmask 261120
    %v193 = vsel %vm191, %v154, 0
    %195 = vmatprep.subr.bf16.mxu0 %v184
    %196 = vmatpush1.bf16.msra.mxu0 %v183
    %197 = vmatprep.subr.bf16.mxu0 %v186
    %198 = vmatpush1.bf16.msra.mxu0 %v185
    %199 = vmatprep.subr.bf16.mxu0 0
    %200 = vmatpush1.bf16.msra.mxu0 0
    %201 = vmatprep.subr.bf16.mxu0 0
    %202 = vmatpush1.bf16.msra.mxu0 0
    %203 = vmatprep.subr.bf16.mxu0 0
    %204 = vmatpush1.bf16.msra.mxu0 0
    %205 = vmatprep.subr.bf16.mxu0 0
    %206 = vmatpush1.bf16.msra.mxu0 0
    %207 = vmatprep.subr.bf16.mxu0 0
    %208 = vmatpush1.bf16.msra.mxu0 0
    %209 = vmatprep.subr.bf16.mxu0 0
    %210 = vmatpush1.bf16.msra.mxu0 0
    %211 = vmatprep.subr.bf16.mxu0 0
    %212 = vmatpush1.bf16.msra.mxu0 0
    %213 = vmatprep.subr.bf16.mxu0 0
    %214 = vmatpush1.bf16.msra.mxu0 0
    %215 = vmatprep.subr.bf16.mxu0 0
    %216 = vmatpush1.bf16.msra.mxu0 0
    %217 = vmatprep.subr.bf16.mxu0 0
    %218 = vmatpush1.bf16.msra.mxu0 0
    %219 = vmatprep.subr.bf16.mxu0 0
    %220 = vmatpush1.bf16.msra.mxu0 0
    %221 = vmatprep.subr.bf16.mxu0 0
    %222 = vmatpush1.bf16.msra.mxu0 0
    %223 = vmatprep.subr.bf16.mxu0 0
    %224 = vmatpush1.bf16.msra.mxu0 0
    %225 = vmatprep.subr.bf16.mxu0 0
    %226 = vmatpush1.bf16.msra.mxu0 0
    %227 = vmatprep.mubr.bf16.mxu0 0
    %228 = vmatmul.mubr.bf16.gmra.mrb[0].mxu0 %v193
    %v229 = vpop.f32.mrb[0].mxu0
    %v230 = vadd.f32 %v164, %v229
    %v231 = vpop.f32.mrb[0].mxu0
    %v232 = vadd.f32 %v168, %v231
    %v233 = vpop.f32.mrb[0].mxu0
    %v234 = vadd.f32 %v164, %v233
    %v235 = vpop.f32.mrb[0].mxu0
    %v236 = vadd.f32 %v168, %v235
    %237 = vdwg.mxu0
    %v238 = vpack.c.bf16 %v234, %v230
    %v240 = vunpack.c.l.b16 %v238
    %v241 = vunpack.c.h.b16 %v238
    %v242 = vpack.c.b16 %v240, %v240
    %v243 = vpack.c.b16 %v241, %v241
    %246 = vst [vmem:[#allocation11] sm:$0xf] %v242
    %247 = vst [vmem:[#allocation11 + $0x4] sm:$0xf] %v243
    %v248 = vpack.c.bf16 %v236, %v232
    %v250 = vunpack.c.l.b16 %v248
    %v251 = vunpack.c.h.b16 %v248
    %v252 = vpack.c.b16 %v250, %v250
    %v253 = vpack.c.b16 %v251, %v251
    %256 = vst [vmem:[#allocation12] sm:$0xf] %v252
    %257 = vst [vmem:[#allocation12 + $0x4] sm:$0xf] %v253
    // Predicated region
    $region42: #{ctc_lstm_forward.3} parent=1 // pred_check
      _
    $region43: #{ctc_lstm_forward.3} parent=1 // pred_check_branch
      %259 = sbr.rel (0) target = $region45
    $region44: #{ctc_lstm_forward.3} parent=1 // pred_region
      %s261 = ssub.s32 128, 128
      %262 = vsyncadd [#allocation4], %s261
      %s263 = sshll.u32 [#allocation11], 4
      %s264 = int_to_ptr.vmem [resolvable:$true] %s263
      %269 = dma.vmem_to_hbm [thread:$0]  %s264, 128, %s5, [#allocation4], 64, 64, 4
    $region45: #{ctc_lstm_forward.3} parent=1 // pred_fallthru
      _
    // Predicated region
    $region46: #{ctc_lstm_forward.3} parent=1 // pred_check
      _
    $region47: #{ctc_lstm_forward.3} parent=1 // pred_check_branch
      %271 = sbr.rel (0) target = $region49
    $region48: #{ctc_lstm_forward.3} parent=1 // pred_region
      %s273 = ssub.s32 128, 128
      %274 = vsyncadd [#allocation13], %s273
      %s275 = sshll.u32 [#allocation12], 4
      %s276 = int_to_ptr.vmem [resolvable:$true] %s275
      %281 = dma.vmem_to_hbm [thread:$0]  %s276, 128, %s6, [#allocation13], 64, 64, 4
    $region49: #{ctc_lstm_forward.3} parent=1 // pred_fallthru
      _
    // Predicated region
    $region50: #{ctc_lstm_forward.3} parent=1 // pred_check
      _
    $region51: #{ctc_lstm_forward.3} parent=1 // pred_check_branch
      %283 = sbr.rel (0) target = $region53
    $region52: #{ctc_lstm_forward.3} parent=1 // pred_region
      %284 = dma.done [#allocation4], 128
    $region53: #{ctc_lstm_forward.3} parent=1 // pred_fallthru
      _
    // Predicated region
    $region54: #{ctc_lstm_forward.3} parent=1 // pred_check
      _
    $region55: #{ctc_lstm_forward.3} parent=1 // pred_check_branch
      %286 = sbr.rel (0) target = $region57
    $region56: #{ctc_lstm_forward.3} parent=1 // pred_region
      %287 = dma.done [#allocation13], 128
    $region57: #{ctc_lstm_forward.3} parent=1 // pred_fallthru
      _
    %288 = vsyncpa [#allocation3], 1
    %289 = vsyncpa [#allocation6], 1
    %290 = vsyncpa [#allocation9], 1
    %291 = vsyncpa [#allocation4], 1
    %292 = vsyncpa [#allocation13], 1

// kernel: ctc_lstm_forward.5
$region0: #{ctc_lstm_forward.5}
  #allocation0 [shape = 'u32[]', space=smem, size = 0x4, offset = 0x4, fixed_abs, tag = 'smem constant byte address 0x4 - core index']
  #allocation1 [shape = 'u32[144,128]{1,0:T(1,128)}', space=vmem, size = 0x12000, scoped, tag = 'internal scratch']
  %s0 = inlined_call_operand.hbm [shape: bf16[16,32], index: 0, kind: input, shape index: {}]
  %s1 = inlined_call_operand.hbm [shape: bf16[16,32], index: 1, kind: input, shape index: {}]
  %s2 = inlined_call_operand.hbm [shape: bf16[32,128], index: 2, kind: input, shape index: {}]
  %s3 = inlined_call_operand.hbm [shape: bf16[32,128], index: 3, kind: input, shape index: {}]
  %s4 = inlined_call_operand.hbm [shape: f32[1,128], index: 4, kind: input, shape index: {}]
  %s5 = inlined_call_operand.hbm [shape: f32[16,128], index: 5, kind: output, shape index: {}]
  %s6 = sld [smem:[#allocation0]]
  $region50: #{ctc_lstm_forward.5} parent=0
    _
  %s8 = ssub.s32 1, %s6
  %s9 = scalar_select 0, %s8, %s6
  $region1: #{ctc_lstm_forward.5} parent=0
    #allocation2 [shape = 'u8[4096]{0}', space=vmem, size = 0x1000, scoped, tag = 'input window, operand 0, single buffered']
    #allocation3 [shape = 's32[1]{0}', space=sflag, size = 0x4, scoped, tag = 'scoped memory for ctc_lstm_forward.5']
    #allocation4 [shape = 's32[1]{0}', space=sflag, size = 0x4, scoped, tag = 'scoped memory for ctc_lstm_forward.5']
    #allocation5 [shape = 'u8[4096]{0}', space=vmem, size = 0x1000, scoped, tag = 'input window, operand 1, single buffered']
    #allocation6 [shape = 's32[1]{0}', space=sflag, size = 0x4, scoped, tag = 'scoped memory for ctc_lstm_forward.5']
    #allocation7 [shape = 'u8[8192]{0}', space=vmem, size = 0x2000, scoped, tag = 'input window, operand 2, single buffered']
    #allocation8 [shape = 'u8[8192]{0}', space=vmem, size = 0x2000, scoped, tag = 'input window, operand 3, single buffered']
    #allocation9 [shape = 's32[1]{0}', space=sflag, size = 0x4, scoped, tag = 'scoped memory for ctc_lstm_forward.5']
    #allocation10 [shape = 'u8[512]{0}', space=vmem, size = 0x400, scoped, tag = 'input window, operand 4, single buffered']
    #allocation11 [shape = 'u8[8192]{0}', space=vmem, size = 0x2000, scoped, tag = 'output window, operand 0, single buffered']
    %10 = vsyncpa [#allocation3], 0
    %11 = vsyncpa [#allocation6], 0
    %12 = vsyncpa [#allocation9], 0
    %13 = vsyncpa [#allocation4], 0
    // Predicated region
    $region2: #{ctc_lstm_forward.5} parent=1 // pred_check
      _
    $region3: #{ctc_lstm_forward.5} parent=1 // pred_check_branch
      %15 = sbr.rel (0) target = $region5
    $region4: #{ctc_lstm_forward.5} parent=1 // pred_region
      %s17 = ssub.s32 128, 128
      %18 = vsyncadd [#allocation3], %s17
      %s19 = sshll.u32 [#allocation2], 4
      %s20 = int_to_ptr.vmem [resolvable:$true] %s19
      %25 = dma.hbm_to_vmem [thread:$0]  %s0, 128, %s20, [#allocation3], 64, 64, 4
    $region5: #{ctc_lstm_forward.5} parent=1 // pred_fallthru
      _
    // Predicated region
    $region6: #{ctc_lstm_forward.5} parent=1 // pred_check
      _
    $region7: #{ctc_lstm_forward.5} parent=1 // pred_check_branch
      %27 = sbr.rel (0) target = $region9
    $region8: #{ctc_lstm_forward.5} parent=1 // pred_region
      %s29 = ssub.s32 128, 128
      %30 = vsyncadd [#allocation6], %s29
      %s31 = sshll.u32 [#allocation5], 4
      %s32 = int_to_ptr.vmem [resolvable:$true] %s31
      %37 = dma.hbm_to_vmem [thread:$0]  %s1, 128, %s32, [#allocation6], 64, 64, 4
    $region9: #{ctc_lstm_forward.5} parent=1 // pred_fallthru
      _
    // Predicated region
    $region10: #{ctc_lstm_forward.5} parent=1 // pred_check
      _
    $region11: #{ctc_lstm_forward.5} parent=1 // pred_check_branch
      %39 = sbr.rel (0) target = $region13
    $region12: #{ctc_lstm_forward.5} parent=1 // pred_region
      %s41 = ssub.s32 256, 256
      %42 = vsyncadd [#allocation6], %s41
      %s43 = sshll.u32 [#allocation7], 4
      %s44 = int_to_ptr.vmem [resolvable:$true] %s43
      %49 = dma.hbm_to_vmem [thread:$0]  %s2, 256, %s44, [#allocation6], 64, 64, 4
    $region13: #{ctc_lstm_forward.5} parent=1 // pred_fallthru
      _
    // Predicated region
    $region14: #{ctc_lstm_forward.5} parent=1 // pred_check
      _
    $region15: #{ctc_lstm_forward.5} parent=1 // pred_check_branch
      %51 = sbr.rel (0) target = $region17
    $region16: #{ctc_lstm_forward.5} parent=1 // pred_region
      %s53 = ssub.s32 256, 256
      %54 = vsyncadd [#allocation9], %s53
      %s55 = sshll.u32 [#allocation8], 4
      %s56 = int_to_ptr.vmem [resolvable:$true] %s55
      %61 = dma.hbm_to_vmem [thread:$0]  %s3, 256, %s56, [#allocation9], 64, 64, 4
    $region17: #{ctc_lstm_forward.5} parent=1 // pred_fallthru
      _
    // Predicated region
    $region18: #{ctc_lstm_forward.5} parent=1 // pred_check
      _
    $region19: #{ctc_lstm_forward.5} parent=1 // pred_check_branch
      %63 = sbr.rel (0) target = $region21
    $region20: #{ctc_lstm_forward.5} parent=1 // pred_region
      %s65 = ssub.s32 16, 16
      %66 = vsyncadd [#allocation9], %s65
      %s68 = sshll.u32 [#allocation10], 4
      %s69 = int_to_ptr.vmem [resolvable:$true] %s68
      %71 = dma.hbm_to_vmem [thread:$0]  %s4, 16, %s69, [#allocation9]
    $region21: #{ctc_lstm_forward.5} parent=1 // pred_fallthru
      _
    // Predicated region
    $region22: #{ctc_lstm_forward.5} parent=1 // pred_check
      _
    $region23: #{ctc_lstm_forward.5} parent=1 // pred_check_branch
      %73 = sbr.rel (0) target = $region25
    $region24: #{ctc_lstm_forward.5} parent=1 // pred_region
      %74 = dma.done [#allocation3], 128
    $region25: #{ctc_lstm_forward.5} parent=1 // pred_fallthru
      _
    // Predicated region
    $region26: #{ctc_lstm_forward.5} parent=1 // pred_check
      _
    $region27: #{ctc_lstm_forward.5} parent=1 // pred_check_branch
      %76 = sbr.rel (0) target = $region29
    $region28: #{ctc_lstm_forward.5} parent=1 // pred_region
      %77 = dma.done [#allocation6], 128
    $region29: #{ctc_lstm_forward.5} parent=1 // pred_fallthru
      _
    // Predicated region
    $region30: #{ctc_lstm_forward.5} parent=1 // pred_check
      _
    $region31: #{ctc_lstm_forward.5} parent=1 // pred_check_branch
      %79 = sbr.rel (0) target = $region33
    $region32: #{ctc_lstm_forward.5} parent=1 // pred_region
      %80 = dma.done [#allocation6], 256
    $region33: #{ctc_lstm_forward.5} parent=1 // pred_fallthru
      _
    // Predicated region
    $region34: #{ctc_lstm_forward.5} parent=1 // pred_check
      _
    $region35: #{ctc_lstm_forward.5} parent=1 // pred_check_branch
      %82 = sbr.rel (0) target = $region37
    $region36: #{ctc_lstm_forward.5} parent=1 // pred_region
      %83 = dma.done [#allocation9], 256
    $region37: #{ctc_lstm_forward.5} parent=1 // pred_fallthru
      _
    // Predicated region
    $region38: #{ctc_lstm_forward.5} parent=1 // pred_check
      _
    $region39: #{ctc_lstm_forward.5} parent=1 // pred_check_branch
      %85 = sbr.rel (0) target = $region41
    $region40: #{ctc_lstm_forward.5} parent=1 // pred_region
      %86 = dma.done [#allocation9], 16
    $region41: #{ctc_lstm_forward.5} parent=1 // pred_fallthru
      _
    %v88 = vld [vmem:[#allocation2] sm:$0xf]
    %v89 = vld [vmem:[#allocation2 + $0x4] sm:$0xf]
    %v90 = vmax.bf16 %v88, 0
    %v91 = vmax.bf16 %v89, 0
    %v92 = vld [vmem:[#allocation5] sm:$0xf]
    %v93 = vld [vmem:[#allocation5 + $0x4] sm:$0xf]
    %v94 = vmax.bf16 %v92, 0
    %v95 = vmax.bf16 %v93, 0
    %v96 = vld [vmem:[#allocation7] sm:$0xf]
    %v97 = vld [vmem:[#allocation7 + $0x4] sm:$0xf]
    %v98 = vld [vmem:[#allocation7 + $0x8] sm:$0xf]
    %v99 = vld [vmem:[#allocation7 + $0xc] sm:$0xf]
    %v100 = vld [vmem:[#allocation8] sm:$0xf]
    %v101 = vld [vmem:[#allocation8 + $0x4] sm:$0xf]
    %v102 = vld [vmem:[#allocation8 + $0x8] sm:$0xf]
    %v103 = vld [vmem:[#allocation8 + $0xc] sm:$0xf]
    %v106 = vunpack.c.l.b16 %v94
    %v107 = vunpack.c.l.b16 %v95
    %v108 = vpack.c.b16 %v107, %v106
    %v113 = vunpack.c.l.b16 %v100
    %v114 = vunpack.c.l.b16 %v101
    %v115 = vunpack.c.l.b16 %v102
    %v116 = vunpack.c.l.b16 %v103
    %v117 = vpack.c.b16 %v114, %v113
    %v118 = vpack.c.b16 %v116, %v115
    %vm121 = vcmask 261120
    %v123 = vsel %vm121, %v108, 0
    %125 = vmatprep.subr.bf16.mxu0 0
    %126 = vmatpush1.bf16.msra.mxu0 %v117
    %127 = vmatprep.subr.bf16.mxu0 0
    %128 = vmatpush1.bf16.msra.mxu0 %v118
    %129 = vmatprep.subr.bf16.mxu0 0
    %130 = vmatpush1.bf16.msra.mxu0 0
    %131 = vmatprep.subr.bf16.mxu0 0
    %132 = vmatpush1.bf16.msra.mxu0 0
    %133 = vmatprep.subr.bf16.mxu0 0
    %134 = vmatpush1.bf16.msra.mxu0 0
    %135 = vmatprep.subr.bf16.mxu0 0
    %136 = vmatpush1.bf16.msra.mxu0 0
    %137 = vmatprep.subr.bf16.mxu0 0
    %138 = vmatpush1.bf16.msra.mxu0 0
    %139 = vmatprep.subr.bf16.mxu0 0
    %140 = vmatpush1.bf16.msra.mxu0 0
    %141 = vmatprep.subr.bf16.mxu0 0
    %142 = vmatpush1.bf16.msra.mxu0 0
    %143 = vmatprep.subr.bf16.mxu0 0
    %144 = vmatpush1.bf16.msra.mxu0 0
    %145 = vmatprep.subr.bf16.mxu0 0
    %146 = vmatpush1.bf16.msra.mxu0 0
    %147 = vmatprep.subr.bf16.mxu0 0
    %148 = vmatpush1.bf16.msra.mxu0 0
    %149 = vmatprep.subr.bf16.mxu0 0
    %150 = vmatpush1.bf16.msra.mxu0 0
    %151 = vmatprep.subr.bf16.mxu0 0
    %152 = vmatpush1.bf16.msra.mxu0 0
    %153 = vmatprep.subr.bf16.mxu0 0
    %154 = vmatpush1.bf16.msra.mxu0 0
    %155 = vmatprep.subr.bf16.mxu0 0
    %156 = vmatpush1.bf16.msra.mxu0 0
    %157 = vmatprep.mubr.bf16.mxu0 0
    %158 = vmatmul.mubr.bf16.gmra.mrb[0].mxu0 %v123
    %v159 = vpop.f32.mrb[0].mxu0
    %v160 = vadd.f32 0.0, %v159
    %v161 = vpop.f32.mrb[0].mxu0
    %v162 = vpop.f32.mrb[0].mxu0
    %v163 = vadd.f32 0.0, %v162
    %v164 = vpop.f32.mrb[0].mxu0
    %165 = vdwg.mxu0
    %v168 = vunpack.c.l.b16 %v90
    %v169 = vunpack.c.l.b16 %v91
    %v170 = vpack.c.b16 %v169, %v168
    %v175 = vunpack.c.l.b16 %v96
    %v176 = vunpack.c.l.b16 %v97
    %v177 = vunpack.c.l.b16 %v98
    %v178 = vunpack.c.l.b16 %v99
    %v179 = vpack.c.b16 %v176, %v175
    %v180 = vpack.c.b16 %v178, %v177
    %v184 = vsel %vm121, %v170, 0
    %186 = vmatprep.subr.bf16.mxu0 0
    %187 = vmatpush1.bf16.msra.mxu0 %v179
    %188 = vmatprep.subr.bf16.mxu0 0
    %189 = vmatpush1.bf16.msra.mxu0 %v180
    %190 = vmatprep.subr.bf16.mxu0 0
    %191 = vmatpush1.bf16.msra.mxu0 0
    %192 = vmatprep.subr.bf16.mxu0 0
    %193 = vmatpush1.bf16.msra.mxu0 0
    %194 = vmatprep.subr.bf16.mxu0 0
    %195 = vmatpush1.bf16.msra.mxu0 0
    %196 = vmatprep.subr.bf16.mxu0 0
    %197 = vmatpush1.bf16.msra.mxu0 0
    %198 = vmatprep.subr.bf16.mxu0 0
    %199 = vmatpush1.bf16.msra.mxu0 0
    %200 = vmatprep.subr.bf16.mxu0 0
    %201 = vmatpush1.bf16.msra.mxu0 0
    %202 = vmatprep.subr.bf16.mxu0 0
    %203 = vmatpush1.bf16.msra.mxu0 0
    %204 = vmatprep.subr.bf16.mxu0 0
    %205 = vmatpush1.bf16.msra.mxu0 0
    %206 = vmatprep.subr.bf16.mxu0 0
    %207 = vmatpush1.bf16.msra.mxu0 0
    %208 = vmatprep.subr.bf16.mxu0 0
    %209 = vmatpush1.bf16.msra.mxu0 0
    %210 = vmatprep.subr.bf16.mxu0 0
    %211 = vmatpush1.bf16.msra.mxu0 0
    %212 = vmatprep.subr.bf16.mxu0 0
    %213 = vmatpush1.bf16.msra.mxu0 0
    %214 = vmatprep.subr.bf16.mxu0 0
    %215 = vmatpush1.bf16.msra.mxu0 0
    %216 = vmatprep.subr.bf16.mxu0 0
    %217 = vmatpush1.bf16.msra.mxu0 0
    %218 = vmatprep.mubr.bf16.mxu0 0
    %219 = vmatmul.mubr.bf16.gmra.mrb[0].mxu0 %v184
    %v220 = vpop.f32.mrb[0].mxu0
    %v221 = vadd.f32 %v160, %v220
    %v222 = vpop.f32.mrb[0].mxu0
    %v223 = vpop.f32.mrb[0].mxu0
    %v224 = vadd.f32 %v163, %v223
    %v225 = vpop.f32.mrb[0].mxu0
    %226 = vdwg.mxu0
    %v227 = vld [vmem:[#allocation10] sm:$0x1]
    %v229 = vlaneseq
    %v230 = vshrl.u32 %v229, 7
    %v231 = vsub.s32 0, %v230
    %v232 = vrot.slane %v227, %v231
    %v234 = vadd.f32 %v221, %v232
    %v235 = vadd.f32 %v224, %v232
    %236 = vmax.xlane.f32.xlu0 %v234
    %v237 = vpop.xlane.xlu0 %236
    %238 = vmax.xlane.f32.xlu0 %v235
    %v239 = vpop.xlane.xlu0 %238
    %v240 = vsub.f32 %v234, %v237
    %v241 = vsub.f32 %v235, %v239
    %v242 = vmul.f32 %v240, 1.442695
    %v243 = vpow.pop %v242
    %v244 = vmul.f32 %v241, 1.442695
    %v245 = vpow.pop %v244
    %246 = vadd.xlane.f32.xlu0 %v243
    %v247 = vpop.xlane.xlu0 %246
    %248 = vadd.xlane.f32.xlu0 %v245
    %v249 = vpop.xlane.xlu0 %248
    %v250 = vlog2.pop %v247
    %v251 = vmul.f32 %v250, 0.6931472
    %v252 = vlog2.pop %v249
    %v253 = vmul.f32 %v252, 0.6931472
    %v254 = vsub.f32 %v240, %v251
    %v255 = vsub.f32 %v241, %v253
    %256 = vst [vmem:[#allocation11] sm:$0xff] %v254
    %257 = vst [vmem:[#allocation11 + $0x8] sm:$0xff] %v255
    // Predicated region
    $region42: #{ctc_lstm_forward.5} parent=1 // pred_check
      _
    $region43: #{ctc_lstm_forward.5} parent=1 // pred_check_branch
      %259 = sbr.rel (0) target = $region45
    $region44: #{ctc_lstm_forward.5} parent=1 // pred_region
      %s261 = ssub.s32 256, 256
      %262 = vsyncadd [#allocation4], %s261
      %s263 = sshll.u32 [#allocation11], 4
      %s264 = int_to_ptr.vmem [resolvable:$true] %s263
      %269 = dma.vmem_to_hbm [thread:$0]  %s264, 256, %s5, [#allocation4], 128, 128, 8
    $region45: #{ctc_lstm_forward.5} parent=1 // pred_fallthru
      _
    // Predicated region
    $region46: #{ctc_lstm_forward.5} parent=1 // pred_check
      _
    $region47: #{ctc_lstm_forward.5} parent=1 // pred_check_branch
      %271 = sbr.rel (0) target = $region49
    $region48: #{ctc_lstm_forward.5} parent=1 // pred_region
      %272 = dma.done [#allocation4], 256
    $region49: #{ctc_lstm_forward.5} parent=1 // pred_fallthru
      _
    %273 = vsyncpa [#allocation3], 1
    %274 = vsyncpa [#allocation6], 1
    %275 = vsyncpa [#allocation9], 1
    %276 = vsyncpa [#allocation4], 1

// kernel: ctc_lstm_forward.4
$region0: #{ctc_lstm_forward.4}
  #allocation0 [shape = 'u32[]', space=smem, size = 0x4, offset = 0x4, fixed_abs, tag = 'smem constant byte address 0x4 - core index']
  #allocation1 [shape = 'u32[144,128]{1,0:T(1,128)}', space=vmem, size = 0x12000, scoped, tag = 'internal scratch']
  #allocation2 [shape = 'f32[2,32]{1,0:T(2,128)}', space=vmem, size = 0x400, scoped, tag = 'scratch operand']
  #allocation3 [shape = 'f32[2,32]{1,0:T(2,128)}', space=vmem, size = 0x400, scoped, tag = 'scratch operand']
  #allocation4 [shape = 'f32[2,32]{1,0:T(2,128)}', space=vmem, size = 0x400, scoped, tag = 'scratch operand']
  #allocation5 [shape = 'f32[2,32]{1,0:T(2,128)}', space=vmem, size = 0x400, scoped, tag = 'scratch operand']
  %s0 = inlined_call_operand.hbm [shape: bf16[8,2,128], index: 0, kind: input, shape index: {}]
  %s1 = inlined_call_operand.hbm [shape: bf16[8,2,128], index: 1, kind: input, shape index: {}]
  %s2 = inlined_call_operand.hbm [shape: bf16[32,128], index: 2, kind: input, shape index: {}]
  %s3 = inlined_call_operand.hbm [shape: bf16[32,128], index: 3, kind: input, shape index: {}]
  %s4 = inlined_call_operand.hbm [shape: bf16[8,2,32], index: 4, kind: output, shape index: {0}]
  %s5 = inlined_call_operand.hbm [shape: bf16[8,2,32], index: 5, kind: output, shape index: {1}]
  %6 = xla_tuple %s4, %s5
  %s7 = sld [smem:[#allocation0]]
  $region54: #{ctc_lstm_forward.4} parent=0
    _
  %s9 = ssub.s32 1, %s7
  %s10 = scalar_select 0, %s9, %s7
  $region1: #{ctc_lstm_forward.4} parent=0
    #allocation6 [shape = 'u8[4096]{0}', space=vmem, size = 0x1000, scoped, tag = 'input window, operand 0, single buffered']
    #allocation7 [shape = 's32[1]{0}', space=sflag, size = 0x4, scoped, tag = 'scoped memory for ctc_lstm_forward.4']
    #allocation8 [shape = 's32[1]{0}', space=sflag, size = 0x4, scoped, tag = 'scoped memory for ctc_lstm_forward.4']
    #allocation9 [shape = 'u8[4096]{0}', space=vmem, size = 0x1000, scoped, tag = 'input window, operand 1, single buffered']
    #allocation10 [shape = 's32[1]{0}', space=sflag, size = 0x4, scoped, tag = 'scoped memory for ctc_lstm_forward.4']
    #allocation11 [shape = 'u8[8192]{0}', space=vmem, size = 0x2000, scoped, tag = 'input window, operand 2, single buffered']
    #allocation12 [shape = 'u8[8192]{0}', space=vmem, size = 0x2000, scoped, tag = 'input window, operand 3, single buffered']
    #allocation13 [shape = 's32[1]{0}', space=sflag, size = 0x4, scoped, tag = 'scoped memory for ctc_lstm_forward.4']
    #allocation14 [shape = 'u8[4096]{0}', space=vmem, size = 0x1000, scoped, tag = 'output window, operand 0, single buffered']
    #allocation15 [shape = 'u8[4096]{0}', space=vmem, size = 0x1000, scoped, tag = 'output window, operand 1, single buffered']
    #allocation16 [shape = 's32[1]{0}', space=sflag, size = 0x4, scoped, tag = 'scoped memory for ctc_lstm_forward.4']
    %11 = vsyncpa [#allocation7], 0
    %12 = vsyncpa [#allocation10], 0
    %13 = vsyncpa [#allocation13], 0
    %14 = vsyncpa [#allocation8], 0
    %15 = vsyncpa [#allocation16], 0
    // Predicated region
    $region2: #{ctc_lstm_forward.4} parent=1 // pred_check
      _
    $region3: #{ctc_lstm_forward.4} parent=1 // pred_check_branch
      %17 = sbr.rel (0) target = $region5
    $region4: #{ctc_lstm_forward.4} parent=1 // pred_region
      %s19 = ssub.s32 128, 128
      %20 = vsyncadd [#allocation7], %s19
      %s21 = sshll.u32 [#allocation6], 4
      %s22 = int_to_ptr.vmem [resolvable:$true] %s21
      %27 = dma.hbm_to_vmem [thread:$0]  %s0, 128, %s22, [#allocation7], 16, 16, 1
    $region5: #{ctc_lstm_forward.4} parent=1 // pred_fallthru
      _
    // Predicated region
    $region6: #{ctc_lstm_forward.4} parent=1 // pred_check
      _
    $region7: #{ctc_lstm_forward.4} parent=1 // pred_check_branch
      %29 = sbr.rel (0) target = $region9
    $region8: #{ctc_lstm_forward.4} parent=1 // pred_region
      %s30 = ssub.s32 0, 0
      %s31 = smul.u32 8, %s30
      %s33 = ssub.s32 128, 128
      %34 = vsyncadd [#allocation10], %s33
      %s35 = smul.addr %s31, 16
      %s36 = scalar_lea.hbm %s1, %s35
      %s37 = sshll.u32 [#allocation9], 4
      %s38 = int_to_ptr.vmem [resolvable:$true] %s37
      %43 = dma.hbm_to_vmem [thread:$0]  %s36, 128, %s38, [#allocation10], 16, 16, 1
    $region9: #{ctc_lstm_forward.4} parent=1 // pred_fallthru
      _
    // Predicated region
    $region10: #{ctc_lstm_forward.4} parent=1 // pred_check
      _
    $region11: #{ctc_lstm_forward.4} parent=1 // pred_check_branch
      %45 = sbr.rel (0) target = $region13
    $region12: #{ctc_lstm_forward.4} parent=1 // pred_region
      %s47 = ssub.s32 256, 256
      %48 = vsyncadd [#allocation10], %s47
      %s49 = sshll.u32 [#allocation11], 4
      %s50 = int_to_ptr.vmem [resolvable:$true] %s49
      %55 = dma.hbm_to_vmem [thread:$0]  %s2, 256, %s50, [#allocation10], 64, 64, 4
    $region13: #{ctc_lstm_forward.4} parent=1 // pred_fallthru
      _
    // Predicated region
    $region14: #{ctc_lstm_forward.4} parent=1 // pred_check
      _
    $region15: #{ctc_lstm_forward.4} parent=1 // pred_check_branch
      %57 = sbr.rel (0) target = $region17
    $region16: #{ctc_lstm_forward.4} parent=1 // pred_region
      %s59 = ssub.s32 256, 256
      %60 = vsyncadd [#allocation13], %s59
      %s61 = sshll.u32 [#allocation12], 4
      %s62 = int_to_ptr.vmem [resolvable:$true] %s61
      %67 = dma.hbm_to_vmem [thread:$0]  %s3, 256, %s62, [#allocation13], 64, 64, 4
    $region17: #{ctc_lstm_forward.4} parent=1 // pred_fallthru
      _
    // Predicated region
    $region18: #{ctc_lstm_forward.4} parent=1 // pred_check
      _
    $region19: #{ctc_lstm_forward.4} parent=1 // pred_check_branch
      %69 = sbr.rel (0) target = $region21
    $region20: #{ctc_lstm_forward.4} parent=1 // pred_region
      %70 = dma.done [#allocation7], 128
    $region21: #{ctc_lstm_forward.4} parent=1 // pred_fallthru
      _
    // Predicated region
    $region22: #{ctc_lstm_forward.4} parent=1 // pred_check
      _
    $region23: #{ctc_lstm_forward.4} parent=1 // pred_check_branch
      %72 = sbr.rel (0) target = $region25
    $region24: #{ctc_lstm_forward.4} parent=1 // pred_region
      %73 = dma.done [#allocation10], 128
    $region25: #{ctc_lstm_forward.4} parent=1 // pred_fallthru
      _
    // Predicated region
    $region26: #{ctc_lstm_forward.4} parent=1 // pred_check
      _
    $region27: #{ctc_lstm_forward.4} parent=1 // pred_check_branch
      %75 = sbr.rel (0) target = $region29
    $region28: #{ctc_lstm_forward.4} parent=1 // pred_region
      %76 = dma.done [#allocation10], 256
    $region29: #{ctc_lstm_forward.4} parent=1 // pred_fallthru
      _
    // Predicated region
    $region30: #{ctc_lstm_forward.4} parent=1 // pred_check
      _
    $region31: #{ctc_lstm_forward.4} parent=1 // pred_check_branch
      %78 = sbr.rel (0) target = $region33
    $region32: #{ctc_lstm_forward.4} parent=1 // pred_region
      %79 = dma.done [#allocation13], 256
    $region33: #{ctc_lstm_forward.4} parent=1 // pred_fallthru
      _
    %s80 = ssub.s32 0, 0
    %s81 = smul.u32 8, %s80
    %s82 = ssub.s32 0, 0
    %s83 = smul.u32 8, %s82
    %p86 = scmp.eq.s32.totalorder 0, 0
    // Predicated region
    $region34: #{ctc_lstm_forward.4} parent=1 // pred_check
      %p87 = pneg %p86
    $region35: #{ctc_lstm_forward.4} parent=1 // pred_check_branch
      %89 = sbr.rel (%p87) target = $region37
    $region36: #{ctc_lstm_forward.4} parent=1 // pred_region
      %vm90 = vcmask 254976
      %91 = vst.msk [vmem:[#allocation2] sm:$0x3] %vm90, 0.0
      %92 = vst.msk [vmem:[#allocation3] sm:$0x3] %vm90, 0.0
      %93 = vst.msk [vmem:[#allocation4] sm:$0x3] %vm90, 0.0
      %94 = vst.msk [vmem:[#allocation5] sm:$0x3] %vm90, 0.0
    $region37: #{ctc_lstm_forward.4} parent=1 // pred_fallthru
      _
    %v95 = vld [vmem:[#allocation11] sm:$0xf]
    %v96 = vld [vmem:[#allocation11 + $0x4] sm:$0xf]
    %v97 = vld [vmem:[#allocation11 + $0x8] sm:$0xf]
    %v98 = vld [vmem:[#allocation11 + $0xc] sm:$0xf]
    %v99 = vld [vmem:[#allocation12] sm:$0xf]
    %v100 = vld [vmem:[#allocation12 + $0x4] sm:$0xf]
    %v101 = vld [vmem:[#allocation12 + $0x8] sm:$0xf]
    %v102 = vld [vmem:[#allocation12 + $0xc] sm:$0xf]
    %v103 = vld [vmem:[#allocation6] sm:$0x1]
    %v104 = vld [vmem:[#allocation2] sm:$0x3]
    %v105 = vld [vmem:[#allocation3] sm:$0x3]
    %v106 = vpack.c.bf16 %v104, %v104
    %v111 = vunpack.c.l.b16 %v95
    %v112 = vunpack.c.l.b16 %v96
    %v113 = vunpack.c.l.b16 %v97
    %v114 = vunpack.c.l.b16 %v98
    %v115 = vpack.c.b16 %v112, %v111
    %v116 = vpack.c.b16 %v114, %v113
    %vm119 = vcmask 261120
    %v121 = vsel %vm119, %v106, 0
    %123 = vmatprep.subr.bf16.mxu0 0
    %124 = vmatpush1.bf16.msra.mxu0 %v115
    %125 = vmatprep.subr.bf16.mxu0 0
    %126 = vmatpush1.bf16.msra.mxu0 %v116
    %127 = vmatprep.subr.bf16.mxu0 0
    %128 = vmatpush1.bf16.msra.mxu0 0
    %129 = vmatprep.subr.bf16.mxu0 0
    %130 = vmatpush1.bf16.msra.mxu0 0
    %131 = vmatprep.subr.bf16.mxu0 0
    %132 = vmatpush1.bf16.msra.mxu0 0
    %133 = vmatprep.subr.bf16.mxu0 0
    %134 = vmatpush1.bf16.msra.mxu0 0
    %135 = vmatprep.subr.bf16.mxu0 0
    %136 = vmatpush1.bf16.msra.mxu0 0
    %137 = vmatprep.subr.bf16.mxu0 0
    %138 = vmatpush1.bf16.msra.mxu0 0
    %139 = vmatprep.subr.bf16.mxu0 0
    %140 = vmatpush1.bf16.msra.mxu0 0
    %141 = vmatprep.subr.bf16.mxu0 0
    %142 = vmatpush1.bf16.msra.mxu0 0
    %143 = vmatprep.subr.bf16.mxu0 0
    %144 = vmatpush1.bf16.msra.mxu0 0
    %145 = vmatprep.subr.bf16.mxu0 0
    %146 = vmatpush1.bf16.msra.mxu0 0
    %147 = vmatprep.subr.bf16.mxu0 0
    %148 = vmatpush1.bf16.msra.mxu0 0
    %149 = vmatprep.subr.bf16.mxu0 0
    %150 = vmatpush1.bf16.msra.mxu0 0
    %151 = vmatprep.subr.bf16.mxu0 0
    %152 = vmatpush1.bf16.msra.mxu0 0
    %153 = vmatprep.subr.bf16.mxu0 0
    %154 = vmatpush1.bf16.msra.mxu0 0
    %155 = vmatprep.mubr.bf16.mxu0 0
    %156 = vmatmul.mubr.bf16.gmra.mrb[0].mxu0 %v121
    %v157 = vpop.f32.mrb[0].mxu0
    %v158 = vadd.f32 0.0, %v157
    %v159 = vpop.f32.mrb[0].mxu0
    %v160 = vpop.f32.mrb[0].mxu0
    %v161 = vpop.f32.mrb[0].mxu0
    %162 = vdwg.mxu0
    %v163 = vunpack.c.l.bf16 %v103
    %v164 = vadd.f32 %v163, %v158
    %v165 = vpack.c.bf16 %v164, %v164
    %v166 = vxor.u32 %v165, 2147516416
    %v168 = vmul.bf16 %v166, 1069105081
    %v169 = vpow.bf16.pop %v168
    %v170 = vadd.bf16 %v169, 1065369472
    %v171 = vrcp.bf16.pop %v170
    %v172 = vmul.bf16 1065369472, %v171
    %v173 = vtanh.bf16.pop %v165
    %v174 = vunpack.c.l.bf16 %v172
    %176 = vrot.lane.b32.xlu0 %v105, 32
    %v177 = vpop.permute.xlu0 %176
    %v179 = vmul.f32 %v174, %v177
    %181 = vrot.lane.b32.xlu0 %v173, 64
    %v182 = vpop.permute.xlu0 %181
    %v184 = vmul.bf16 %v172, %v182
    %v185 = vunpack.c.l.bf16 %v184
    %187 = vrot.lane.b32.xlu0 %v185, 32
    %v188 = vpop.permute.xlu0 %187
    %v190 = vadd.f32 %v179, %v188
    %v191 = vpack.c.bf16 %v190, %v190
    %v192 = vtanh.bf16.pop %v191
    %194 = vrot.lane.b32.xlu0 %v192, 64
    %v195 = vpop.permute.xlu0 %194
    %v197 = vmul.bf16 %v172, %v195
    %v198 = vunpack.c.l.bf16 %v197
    %200 = vrot.lane.b32.xlu0 %v198, 32
    %v201 = vpop.permute.xlu0 %200
    %vm203 = vcmask 254976
    %204 = vst.msk [vmem:[#allocation2] sm:$0x3] %vm203, %v201
    %206 = vrot.lane.b32.xlu0 %v190, 96
    %v207 = vpop.permute.xlu0 %206
    %209 = vst.msk [vmem:[#allocation3] sm:$0x3] %vm203, %v207
    %v212 = vunpack.c.l.s4 1966171168
    %v213 = vunpack.c.0.s8 %v212
    %v214 = vlaneseq
    %v215 = vshrl.u32 %v214, 7
    %v216 = vsub.s32 %v213, %v215
    %v217 = vrot.slane %v197, %v216
    %v219 = vunpack.c.l.s4 1966171168
    %v220 = vunpack.c.0.s8 %v219
    %v221 = vlaneseq
    %v222 = vshrl.u32 %v221, 7
    %v223 = vsub.s32 %v220, %v222
    %v224 = vrot.slane %v217, %v223
    %225 = vrot.lane.b32.xlu0 %v224, 32
    %v226 = vpop.permute.xlu0 %225
    %vm228 = vcmask 253952
    %229 = vst.msk [vmem:[#allocation14] sm:$0x1] %vm228, %v226
    %s230 = scalar_lea.vmem [#allocation9], 7
    %v231 = vld [vmem:[%s230] sm:$0x1]
    %v232 = vld [vmem:[#allocation4] sm:$0x3]
    %v233 = vld [vmem:[#allocation5] sm:$0x3]
    %v234 = vpack.c.bf16 %v232, %v232
    %v239 = vunpack.c.l.b16 %v99
    %v240 = vunpack.c.l.b16 %v100
    %v241 = vunpack.c.l.b16 %v101
    %v242 = vunpack.c.l.b16 %v102
    %v243 = vpack.c.b16 %v240, %v239
    %v244 = vpack.c.b16 %v242, %v241
    %v248 = vsel %vm119, %v234, 0
    %250 = vmatprep.subr.bf16.mxu0 0
    %251 = vmatpush1.bf16.msra.mxu0 %v243
    %252 = vmatprep.subr.bf16.mxu0 0
    %253 = vmatpush1.bf16.msra.mxu0 %v244
    %254 = vmatprep.subr.bf16.mxu0 0
    %255 = vmatpush1.bf16.msra.mxu0 0
    %256 = vmatprep.subr.bf16.mxu0 0
    %257 = vmatpush1.bf16.msra.mxu0 0
    %258 = vmatprep.subr.bf16.mxu0 0
    %259 = vmatpush1.bf16.msra.mxu0 0
    %260 = vmatprep.subr.bf16.mxu0 0
    %261 = vmatpush1.bf16.msra.mxu0 0
    %262 = vmatprep.subr.bf16.mxu0 0
    %263 = vmatpush1.bf16.msra.mxu0 0
    %264 = vmatprep.subr.bf16.mxu0 0
    %265 = vmatpush1.bf16.msra.mxu0 0
    %266 = vmatprep.subr.bf16.mxu0 0
    %267 = vmatpush1.bf16.msra.mxu0 0
    %268 = vmatprep.subr.bf16.mxu0 0
    %269 = vmatpush1.bf16.msra.mxu0 0
    %270 = vmatprep.subr.bf16.mxu0 0
    %271 = vmatpush1.bf16.msra.mxu0 0
    %272 = vmatprep.subr.bf16.mxu0 0
    %273 = vmatpush1.bf16.msra.mxu0 0
    %274 = vmatprep.subr.bf16.mxu0 0
    %275 = vmatpush1.bf16.msra.mxu0 0
    %276 = vmatprep.subr.bf16.mxu0 0
    %277 = vmatpush1.bf16.msra.mxu0 0
    %278 = vmatprep.subr.bf16.mxu0 0
    %279 = vmatpush1.bf16.msra.mxu0 0
    %280 = vmatprep.subr.bf16.mxu0 0
    %281 = vmatpush1.bf16.msra.mxu0 0
    %282 = vmatprep.mubr.bf16.mxu0 0
    %283 = vmatmul.mubr.bf16.gmra.mrb[0].mxu0 %v248
    %v284 = vpop.f32.mrb[0].mxu0
    %v285 = vadd.f32 0.0, %v284
    %v286 = vpop.f32.mrb[0].mxu0
    %v287 = vpop.f32.mrb[0].mxu0
    %v288 = vpop.f32.mrb[0].mxu0
    %289 = vdwg.mxu0
    %v290 = vunpack.c.l.bf16 %v231
    %v291 = vadd.f32 %v290, %v285
    %v292 = vpack.c.bf16 %v291, %v291
    %v293 = vxor.u32 %v292, 2147516416
    %v295 = vmul.bf16 %v293, 1069105081
    %v296 = vpow.bf16.pop %v295
    %v297 = vadd.bf16 %v296, 1065369472
    %v298 = vrcp.bf16.pop %v297
    %v299 = vmul.bf16 1065369472, %v298
    %v300 = vtanh.bf16.pop %v292
    %v301 = vunpack.c.l.bf16 %v299
    %303 = vrot.lane.b32.xlu0 %v233, 32
    %v304 = vpop.permute.xlu0 %303
    %v306 = vmul.f32 %v301, %v304
    %308 = vrot.lane.b32.xlu0 %v300, 64
    %v309 = vpop.permute.xlu0 %308
    %v311 = vmul.bf16 %v299, %v309
    %v312 = vunpack.c.l.bf16 %v311
    %314 = vrot.lane.b32.xlu0 %v312, 32
    %v315 = vpop.permute.xlu0 %314
    %v317 = vadd.f32 %v306, %v315
    %v318 = vpack.c.bf16 %v317, %v317
    %v319 = vtanh.bf16.pop %v318
    %321 = vrot.lane.b32.xlu0 %v319, 64
    %v322 = vpop.permute.xlu0 %321
    %v324 = vmul.bf16 %v299, %v322
    %v325 = vunpack.c.l.bf16 %v324
    %327 = vrot.lane.b32.xlu0 %v325, 32
    %v328 = vpop.permute.xlu0 %327
    %330 = vst.msk [vmem:[#allocation4] sm:$0x3] %vm203, %v328
    %332 = vrot.lane.b32.xlu0 %v317, 96
    %v333 = vpop.permute.xlu0 %332
    %335 = vst.msk [vmem:[#allocation5] sm:$0x3] %vm203, %v333
    %v338 = vunpack.c.l.s4 1966171168
    %v339 = vunpack.c.0.s8 %v338
    %v340 = vlaneseq
    %v341 = vshrl.u32 %v340, 7
    %v342 = vsub.s32 %v339, %v341
    %v343 = vrot.slane %v324, %v342
    %v345 = vunpack.c.l.s4 1966171168
    %v346 = vunpack.c.0.s8 %v345
    %v347 = vlaneseq
    %v348 = vshrl.u32 %v347, 7
    %v349 = vsub.s32 %v346, %v348
    %v350 = vrot.slane %v343, %v349
    %351 = vrot.lane.b32.xlu0 %v350, 32
    %v352 = vpop.permute.xlu0 %351
    %s354 = scalar_lea.vmem [#allocation15], 7
    %355 = vst.msk [vmem:[%s354] sm:$0x1] %vm228, %v352
    %s356 = scalar_lea.vmem [#allocation6], 1
    %v357 = vld [vmem:[%s356] sm:$0x1]
    %v358 = vld [vmem:[#allocation2] sm:$0x3]
    %v359 = vld [vmem:[#allocation3] sm:$0x3]
    %v360 = vpack.c.bf16 %v358, %v358
    %v362 = vsel %vm119, %v360, 0
    %364 = vmatprep.subr.bf16.mxu0 0
    %365 = vmatpush1.bf16.msra.mxu0 %v115
    %366 = vmatprep.subr.bf16.mxu0 0
    %367 = vmatpush1.bf16.msra.mxu0 %v116
    %368 = vmatprep.subr.bf16.mxu0 0
    %369 = vmatpush1.bf16.msra.mxu0 0
    %370 = vmatprep.subr.bf16.mxu0 0
    %371 = vmatpush1.bf16.msra.mxu0 0
    %372 = vmatprep.subr.bf16.mxu0 0
    %373 = vmatpush1.bf16.msra.mxu0 0
    %374 = vmatprep.subr.bf16.mxu0 0
    %375 = vmatpush1.bf16.msra.mxu0 0
    %376 = vmatprep.subr.bf16.mxu0 0
    %377 = vmatpush1.bf16.msra.mxu0 0
    %378 = vmatprep.subr.bf16.mxu0 0
    %379 = vmatpush1.bf16.msra.mxu0 0
    %380 = vmatprep.subr.bf16.mxu0 0
    %381 = vmatpush1.bf16.msra.mxu0 0
    %382 = vmatprep.subr.bf16.mxu0 0
    %383 = vmatpush1.bf16.msra.mxu0 0
    %384 = vmatprep.subr.bf16.mxu0 0
    %385 = vmatpush1.bf16.msra.mxu0 0
    %386 = vmatprep.subr.bf16.mxu0 0
    %387 = vmatpush1.bf16.msra.mxu0 0
    %388 = vmatprep.subr.bf16.mxu0 0
    %389 = vmatpush1.bf16.msra.mxu0 0
    %390 = vmatprep.subr.bf16.mxu0 0
    %391 = vmatpush1.bf16.msra.mxu0 0
    %392 = vmatprep.subr.bf16.mxu0 0
    %393 = vmatpush1.bf16.msra.mxu0 0
    %394 = vmatprep.subr.bf16.mxu0 0
    %395 = vmatpush1.bf16.msra.mxu0 0
    %396 = vmatprep.mubr.bf16.mxu0 0
    %397 = vmatmul.mubr.bf16.gmra.mrb[0].mxu0 %v362
    %v398 = vpop.f32.mrb[0].mxu0
    %v399 = vadd.f32 0.0, %v398
    %v400 = vpop.f32.mrb[0].mxu0
    %v401 = vpop.f32.mrb[0].mxu0
    %v402 = vpop.f32.mrb[0].mxu0
    %403 = vdwg.mxu0
    %v404 = vunpack.c.l.bf16 %v357
    %v405 = vadd.f32 %v404, %v399
    %v406 = vpack.c.bf16 %v405, %v405
    %v407 = vxor.u32 %v406, 2147516416
    %v409 = vmul.bf16 %v407, 1069105081
    %v410 = vpow.bf16.pop %v409
    %v411 = vadd.bf16 %v410, 1065369472
    %v412 = vrcp.bf16.pop %v411
    %v413 = vmul.bf16 1065369472, %v412
    %v414 = vtanh.bf16.pop %v406
    %v415 = vunpack.c.l.bf16 %v413
    %417 = vrot.lane.b32.xlu0 %v359, 32
    %v418 = vpop.permute.xlu0 %417
    %v420 = vmul.f32 %v415, %v418
    %422 = vrot.lane.b32.xlu0 %v414, 64
    %v423 = vpop.permute.xlu0 %422
    %v425 = vmul.bf16 %v413, %v423
    %v426 = vunpack.c.l.bf16 %v425
    %428 = vrot.lane.b32.xlu0 %v426, 32
    %v429 = vpop.permute.xlu0 %428
    %v431 = vadd.f32 %v420, %v429
    %v432 = vpack.c.bf16 %v431, %v431
    %v433 = vtanh.bf16.pop %v432
    %435 = vrot.lane.b32.xlu0 %v433, 64
    %v436 = vpop.permute.xlu0 %435
    %v438 = vmul.bf16 %v413, %v436
    %v439 = vunpack.c.l.bf16 %v438
    %441 = vrot.lane.b32.xlu0 %v439, 32
    %v442 = vpop.permute.xlu0 %441
    %444 = vst.msk [vmem:[#allocation2] sm:$0x3] %vm203, %v442
    %446 = vrot.lane.b32.xlu0 %v431, 96
    %v447 = vpop.permute.xlu0 %446
    %449 = vst.msk [vmem:[#allocation3] sm:$0x3] %vm203, %v447
    %v452 = vunpack.c.l.s4 1966171168
    %v453 = vunpack.c.0.s8 %v452
    %v454 = vlaneseq
    %v455 = vshrl.u32 %v454, 7
    %v456 = vsub.s32 %v453, %v455
    %v457 = vrot.slane %v438, %v456
    %v459 = vunpack.c.l.s4 1966171168
    %v460 = vunpack.c.0.s8 %v459
    %v461 = vlaneseq
    %v462 = vshrl.u32 %v461, 7
    %v463 = vsub.s32 %v460, %v462
    %v464 = vrot.slane %v457, %v463
    %465 = vrot.lane.b32.xlu0 %v464, 32
    %v466 = vpop.permute.xlu0 %465
    %s468 = scalar_lea.vmem [#allocation14], 1
    %469 = vst.msk [vmem:[%s468] sm:$0x1] %vm228, %v466
    %s470 = scalar_lea.vmem [#allocation9], 6
    %v471 = vld [vmem:[%s470] sm:$0x1]
    %v472 = vld [vmem:[#allocation4] sm:$0x3]
    %v473 = vld [vmem:[#allocation5] sm:$0x3]
    %v474 = vpack.c.bf16 %v472, %v472
    %v476 = vsel %vm119, %v474, 0
    %478 = vmatprep.subr.bf16.mxu0 0
    %479 = vmatpush1.bf16.msra.mxu0 %v243
    %480 = vmatprep.subr.bf16.mxu0 0
    %481 = vmatpush1.bf16.msra.mxu0 %v244
    %482 = vmatprep.subr.bf16.mxu0 0
    %483 = vmatpush1.bf16.msra.mxu0 0
    %484 = vmatprep.subr.bf16.mxu0 0
    %485 = vmatpush1.bf16.msra.mxu0 0
    %486 = vmatprep.subr.bf16.mxu0 0
    %487 = vmatpush1.bf16.msra.mxu0 0
    %488 = vmatprep.subr.bf16.mxu0 0
    %489 = vmatpush1.bf16.msra.mxu0 0
    %490 = vmatprep.subr.bf16.mxu0 0
    %491 = vmatpush1.bf16.msra.mxu0 0
    %492 = vmatprep.subr.bf16.mxu0 0
    %493 = vmatpush1.bf16.msra.mxu0 0
    %494 = vmatprep.subr.bf16.mxu0 0
    %495 = vmatpush1.bf16.msra.mxu0 0
    %496 = vmatprep.subr.bf16.mxu0 0
    %497 = vmatpush1.bf16.msra.mxu0 0
    %498 = vmatprep.subr.bf16.mxu0 0
    %499 = vmatpush1.bf16.msra.mxu0 0
    %500 = vmatprep.subr.bf16.mxu0 0
    %501 = vmatpush1.bf16.msra.mxu0 0
    %502 = vmatprep.subr.bf16.mxu0 0
    %503 = vmatpush1.bf16.msra.mxu0 0
    %504 = vmatprep.subr.bf16.mxu0 0
    %505 = vmatpush1.bf16.msra.mxu0 0
    %506 = vmatprep.subr.bf16.mxu0 0
    %507 = vmatpush1.bf16.msra.mxu0 0
    %508 = vmatprep.subr.bf16.mxu0 0
    %509 = vmatpush1.bf16.msra.mxu0 0
    %510 = vmatprep.mubr.bf16.mxu0 0
    %511 = vmatmul.mubr.bf16.gmra.mrb[0].mxu0 %v476
    %v512 = vpop.f32.mrb[0].mxu0
    %v513 = vadd.f32 0.0, %v512
    %v514 = vpop.f32.mrb[0].mxu0
    %v515 = vpop.f32.mrb[0].mxu0
    %v516 = vpop.f32.mrb[0].mxu0
    %517 = vdwg.mxu0
    %v518 = vunpack.c.l.bf16 %v471
    %v519 = vadd.f32 %v518, %v513
    %v520 = vpack.c.bf16 %v519, %v519
    %v521 = vxor.u32 %v520, 2147516416
    %v523 = vmul.bf16 %v521, 1069105081
    %v524 = vpow.bf16.pop %v523
    %v525 = vadd.bf16 %v524, 1065369472
    %v526 = vrcp.bf16.pop %v525
    %v527 = vmul.bf16 1065369472, %v526
    %v528 = vtanh.bf16.pop %v520
    %v529 = vunpack.c.l.bf16 %v527
    %531 = vrot.lane.b32.xlu0 %v473, 32
    %v532 = vpop.permute.xlu0 %531
    %v534 = vmul.f32 %v529, %v532
    %536 = vrot.lane.b32.xlu0 %v528, 64
    %v537 = vpop.permute.xlu0 %536
    %v539 = vmul.bf16 %v527, %v537
    %v540 = vunpack.c.l.bf16 %v539
    %542 = vrot.lane.b32.xlu0 %v540, 32
    %v543 = vpop.permute.xlu0 %542
    %v545 = vadd.f32 %v534, %v543
    %v546 = vpack.c.bf16 %v545, %v545
    %v547 = vtanh.bf16.pop %v546
    %549 = vrot.lane.b32.xlu0 %v547, 64
    %v550 = vpop.permute.xlu0 %549
    %v552 = vmul.bf16 %v527, %v550
    %v553 = vunpack.c.l.bf16 %v552
    %555 = vrot.lane.b32.xlu0 %v553, 32
    %v556 = vpop.permute.xlu0 %555
    %558 = vst.msk [vmem:[#allocation4] sm:$0x3] %vm203, %v556
    %560 = vrot.lane.b32.xlu0 %v545, 96
    %v561 = vpop.permute.xlu0 %560
    %563 = vst.msk [vmem:[#allocation5] sm:$0x3] %vm203, %v561
    %v566 = vunpack.c.l.s4 1966171168
    %v567 = vunpack.c.0.s8 %v566
    %v568 = vlaneseq
    %v569 = vshrl.u32 %v568, 7
    %v570 = vsub.s32 %v567, %v569
    %v571 = vrot.slane %v552, %v570
    %v573 = vunpack.c.l.s4 1966171168
    %v574 = vunpack.c.0.s8 %v573
    %v575 = vlaneseq
    %v576 = vshrl.u32 %v575, 7
    %v577 = vsub.s32 %v574, %v576
    %v578 = vrot.slane %v571, %v577
    %579 = vrot.lane.b32.xlu0 %v578, 32
    %v580 = vpop.permute.xlu0 %579
    %s582 = scalar_lea.vmem [#allocation15], 6
    %583 = vst.msk [vmem:[%s582] sm:$0x1] %vm228, %v580
    %s584 = scalar_lea.vmem [#allocation6], 2
    %v585 = vld [vmem:[%s584] sm:$0x1]
    %v586 = vld [vmem:[#allocation2] sm:$0x3]
    %v587 = vld [vmem:[#allocation3] sm:$0x3]
    %v588 = vpack.c.bf16 %v586, %v586
    %v590 = vsel %vm119, %v588, 0
    %592 = vmatprep.subr.bf16.mxu0 0
    %593 = vmatpush1.bf16.msra.mxu0 %v115
    %594 = vmatprep.subr.bf16.mxu0 0
    %595 = vmatpush1.bf16.msra.mxu0 %v116
    %596 = vmatprep.subr.bf16.mxu0 0
    %597 = vmatpush1.bf16.msra.mxu0 0
    %598 = vmatprep.subr.bf16.mxu0 0
    %599 = vmatpush1.bf16.msra.mxu0 0
    %600 = vmatprep.subr.bf16.mxu0 0
    %601 = vmatpush1.bf16.msra.mxu0 0
    %602 = vmatprep.subr.bf16.mxu0 0
    %603 = vmatpush1.bf16.msra.mxu0 0
    %604 = vmatprep.subr.bf16.mxu0 0
    %605 = vmatpush1.bf16.msra.mxu0 0
    %606 = vmatprep.subr.bf16.mxu0 0
    %607 = vmatpush1.bf16.msra.mxu0 0
    %608 = vmatprep.subr.bf16.mxu0 0
    %609 = vmatpush1.bf16.msra.mxu0 0
    %610 = vmatprep.subr.bf16.mxu0 0
    %611 = vmatpush1.bf16.msra.mxu0 0
    %612 = vmatprep.subr.bf16.mxu0 0
    %613 = vmatpush1.bf16.msra.mxu0 0
    %614 = vmatprep.subr.bf16.mxu0 0
    %615 = vmatpush1.bf16.msra.mxu0 0
    %616 = vmatprep.subr.bf16.mxu0 0
    %617 = vmatpush1.bf16.msra.mxu0 0
    %618 = vmatprep.subr.bf16.mxu0 0
    %619 = vmatpush1.bf16.msra.mxu0 0
    %620 = vmatprep.subr.bf16.mxu0 0
    %621 = vmatpush1.bf16.msra.mxu0 0
    %622 = vmatprep.subr.bf16.mxu0 0
    %623 = vmatpush1.bf16.msra.mxu0 0
    %624 = vmatprep.mubr.bf16.mxu0 0
    %625 = vmatmul.mubr.bf16.gmra.mrb[0].mxu0 %v590
    %v626 = vpop.f32.mrb[0].mxu0
    %v627 = vadd.f32 0.0, %v626
    %v628 = vpop.f32.mrb[0].mxu0
    %v629 = vpop.f32.mrb[0].mxu0
    %v630 = vpop.f32.mrb[0].mxu0
    %631 = vdwg.mxu0
    %v632 = vunpack.c.l.bf16 %v585
    %v633 = vadd.f32 %v632, %v627
    %v634 = vpack.c.bf16 %v633, %v633
    %v635 = vxor.u32 %v634, 2147516416
    %v637 = vmul.bf16 %v635, 1069105081
    %v638 = vpow.bf16.pop %v637
    %v639 = vadd.bf16 %v638, 1065369472
    %v640 = vrcp.bf16.pop %v639
    %v641 = vmul.bf16 1065369472, %v640
    %v642 = vtanh.bf16.pop %v634
    %v643 = vunpack.c.l.bf16 %v641
    %645 = vrot.lane.b32.xlu0 %v587, 32
    %v646 = vpop.permute.xlu0 %645
    %v648 = vmul.f32 %v643, %v646
    %650 = vrot.lane.b32.xlu0 %v642, 64
    %v651 = vpop.permute.xlu0 %650
    %v653 = vmul.bf16 %v641, %v651
    %v654 = vunpack.c.l.bf16 %v653
    %656 = vrot.lane.b32.xlu0 %v654, 32
    %v657 = vpop.permute.xlu0 %656
    %v659 = vadd.f32 %v648, %v657
    %v660 = vpack.c.bf16 %v659, %v659
    %v661 = vtanh.bf16.pop %v660
    %663 = vrot.lane.b32.xlu0 %v661, 64
    %v664 = vpop.permute.xlu0 %663
    %v666 = vmul.bf16 %v641, %v664
    %v667 = vunpack.c.l.bf16 %v666
    %669 = vrot.lane.b32.xlu0 %v667, 32
    %v670 = vpop.permute.xlu0 %669
    %672 = vst.msk [vmem:[#allocation2] sm:$0x3] %vm203, %v670
    %674 = vrot.lane.b32.xlu0 %v659, 96
    %v675 = vpop.permute.xlu0 %674
    %677 = vst.msk [vmem:[#allocation3] sm:$0x3] %vm203, %v675
    %v680 = vunpack.c.l.s4 1966171168
    %v681 = vunpack.c.0.s8 %v680
    %v682 = vlaneseq
    %v683 = vshrl.u32 %v682, 7
    %v684 = vsub.s32 %v681, %v683
    %v685 = vrot.slane %v666, %v684
    %v687 = vunpack.c.l.s4 1966171168
    %v688 = vunpack.c.0.s8 %v687
    %v689 = vlaneseq
    %v690 = vshrl.u32 %v689, 7
    %v691 = vsub.s32 %v688, %v690
    %v692 = vrot.slane %v685, %v691
    %693 = vrot.lane.b32.xlu0 %v692, 32
    %v694 = vpop.permute.xlu0 %693
    %s696 = scalar_lea.vmem [#allocation14], 2
    %697 = vst.msk [vmem:[%s696] sm:$0x1] %vm228, %v694
    %s698 = scalar_lea.vmem [#allocation9], 5
    %v699 = vld [vmem:[%s698] sm:$0x1]
    %v700 = vld [vmem:[#allocation4] sm:$0x3]
    %v701 = vld [vmem:[#allocation5] sm:$0x3]
    %v702 = vpack.c.bf16 %v700, %v700
    %v704 = vsel %vm119, %v702, 0
    %706 = vmatprep.subr.bf16.mxu0 0
    %707 = vmatpush1.bf16.msra.mxu0 %v243
    %708 = vmatprep.subr.bf16.mxu0 0
    %709 = vmatpush1.bf16.msra.mxu0 %v244
    %710 = vmatprep.subr.bf16.mxu0 0
    %711 = vmatpush1.bf16.msra.mxu0 0
    %712 = vmatprep.subr.bf16.mxu0 0
    %713 = vmatpush1.bf16.msra.mxu0 0
    %714 = vmatprep.subr.bf16.mxu0 0
    %715 = vmatpush1.bf16.msra.mxu0 0
    %716 = vmatprep.subr.bf16.mxu0 0
    %717 = vmatpush1.bf16.msra.mxu0 0
    %718 = vmatprep.subr.bf16.mxu0 0
    %719 = vmatpush1.bf16.msra.mxu0 0
    %720 = vmatprep.subr.bf16.mxu0 0
    %721 = vmatpush1.bf16.msra.mxu0 0
    %722 = vmatprep.subr.bf16.mxu0 0
    %723 = vmatpush1.bf16.msra.mxu0 0
    %724 = vmatprep.subr.bf16.mxu0 0
    %725 = vmatpush1.bf16.msra.mxu0 0
    %726 = vmatprep.subr.bf16.mxu0 0
    %727 = vmatpush1.bf16.msra.mxu0 0
    %728 = vmatprep.subr.bf16.mxu0 0
    %729 = vmatpush1.bf16.msra.mxu0 0
    %730 = vmatprep.subr.bf16.mxu0 0
    %731 = vmatpush1.bf16.msra.mxu0 0
    %732 = vmatprep.subr.bf16.mxu0 0
    %733 = vmatpush1.bf16.msra.mxu0 0
    %734 = vmatprep.subr.bf16.mxu0 0
    %735 = vmatpush1.bf16.msra.mxu0 0
    %736 = vmatprep.subr.bf16.mxu0 0
    %737 = vmatpush1.bf16.msra.mxu0 0
    %738 = vmatprep.mubr.bf16.mxu0 0
    %739 = vmatmul.mubr.bf16.gmra.mrb[0].mxu0 %v704
    %v740 = vpop.f32.mrb[0].mxu0
    %v741 = vadd.f32 0.0, %v740
    %v742 = vpop.f32.mrb[0].mxu0
    %v743 = vpop.f32.mrb[0].mxu0
    %v744 = vpop.f32.mrb[0].mxu0
    %745 = vdwg.mxu0
    %v746 = vunpack.c.l.bf16 %v699
    %v747 = vadd.f32 %v746, %v741
    %v748 = vpack.c.bf16 %v747, %v747
    %v749 = vxor.u32 %v748, 2147516416
    %v751 = vmul.bf16 %v749, 1069105081
    %v752 = vpow.bf16.pop %v751
    %v753 = vadd.bf16 %v752, 1065369472
    %v754 = vrcp.bf16.pop %v753
    %v755 = vmul.bf16 1065369472, %v754
    %v756 = vtanh.bf16.pop %v748
    %v757 = vunpack.c.l.bf16 %v755
    %759 = vrot.lane.b32.xlu0 %v701, 32
    %v760 = vpop.permute.xlu0 %759
    %v762 = vmul.f32 %v757, %v760
    %764 = vrot.lane.b32.xlu0 %v756, 64
    %v765 = vpop.permute.xlu0 %764
    %v767 = vmul.bf16 %v755, %v765
    %v768 = vunpack.c.l.bf16 %v767
    %770 = vrot.lane.b32.xlu0 %v768, 32
    %v771 = vpop.permute.xlu0 %770
    %v773 = vadd.f32 %v762, %v771
    %v774 = vpack.c.bf16 %v773, %v773
    %v775 = vtanh.bf16.pop %v774
    %777 = vrot.lane.b32.xlu0 %v775, 64
    %v778 = vpop.permute.xlu0 %777
    %v780 = vmul.bf16 %v755, %v778
    %v781 = vunpack.c.l.bf16 %v780
    %783 = vrot.lane.b32.xlu0 %v781, 32
    %v784 = vpop.permute.xlu0 %783
    %786 = vst.msk [vmem:[#allocation4] sm:$0x3] %vm203, %v784
    %788 = vrot.lane.b32.xlu0 %v773, 96
    %v789 = vpop.permute.xlu0 %788
    %791 = vst.msk [vmem:[#allocation5] sm:$0x3] %vm203, %v789
    %v794 = vunpack.c.l.s4 1966171168
    %v795 = vunpack.c.0.s8 %v794
    %v796 = vlaneseq
    %v797 = vshrl.u32 %v796, 7
    %v798 = vsub.s32 %v795, %v797
    %v799 = vrot.slane %v780, %v798
    %v801 = vunpack.c.l.s4 1966171168
    %v802 = vunpack.c.0.s8 %v801
    %v803 = vlaneseq
    %v804 = vshrl.u32 %v803, 7
    %v805 = vsub.s32 %v802, %v804
    %v806 = vrot.slane %v799, %v805
    %807 = vrot.lane.b32.xlu0 %v806, 32
    %v808 = vpop.permute.xlu0 %807
    %s810 = scalar_lea.vmem [#allocation15], 5
    %811 = vst.msk [vmem:[%s810] sm:$0x1] %vm228, %v808
    %s812 = scalar_lea.vmem [#allocation6], 3
    %v813 = vld [vmem:[%s812] sm:$0x1]
    %v814 = vld [vmem:[#allocation2] sm:$0x3]
    %v815 = vld [vmem:[#allocation3] sm:$0x3]
    %v816 = vpack.c.bf16 %v814, %v814
    %v818 = vsel %vm119, %v816, 0
    %820 = vmatprep.subr.bf16.mxu0 0
    %821 = vmatpush1.bf16.msra.mxu0 %v115
    %822 = vmatprep.subr.bf16.mxu0 0
    %823 = vmatpush1.bf16.msra.mxu0 %v116
    %824 = vmatprep.subr.bf16.mxu0 0
    %825 = vmatpush1.bf16.msra.mxu0 0
    %826 = vmatprep.subr.bf16.mxu0 0
    %827 = vmatpush1.bf16.msra.mxu0 0
    %828 = vmatprep.subr.bf16.mxu0 0
    %829 = vmatpush1.bf16.msra.mxu0 0
    %830 = vmatprep.subr.bf16.mxu0 0
    %831 = vmatpush1.bf16.msra.mxu0 0
    %832 = vmatprep.subr.bf16.mxu0 0
    %833 = vmatpush1.bf16.msra.mxu0 0
    %834 = vmatprep.subr.bf16.mxu0 0
    %835 = vmatpush1.bf16.msra.mxu0 0
    %836 = vmatprep.subr.bf16.mxu0 0
    %837 = vmatpush1.bf16.msra.mxu0 0
    %838 = vmatprep.subr.bf16.mxu0 0
    %839 = vmatpush1.bf16.msra.mxu0 0
    %840 = vmatprep.subr.bf16.mxu0 0
    %841 = vmatpush1.bf16.msra.mxu0 0
    %842 = vmatprep.subr.bf16.mxu0 0
    %843 = vmatpush1.bf16.msra.mxu0 0
    %844 = vmatprep.subr.bf16.mxu0 0
    %845 = vmatpush1.bf16.msra.mxu0 0
    %846 = vmatprep.subr.bf16.mxu0 0
    %847 = vmatpush1.bf16.msra.mxu0 0
    %848 = vmatprep.subr.bf16.mxu0 0
    %849 = vmatpush1.bf16.msra.mxu0 0
    %850 = vmatprep.subr.bf16.mxu0 0
    %851 = vmatpush1.bf16.msra.mxu0 0
    %852 = vmatprep.mubr.bf16.mxu0 0
    %853 = vmatmul.mubr.bf16.gmra.mrb[0].mxu0 %v818
    %v854 = vpop.f32.mrb[0].mxu0
    %v855 = vadd.f32 0.0, %v854
    %v856 = vpop.f32.mrb[0].mxu0
    %v857 = vpop.f32.mrb[0].mxu0
    %v858 = vpop.f32.mrb[0].mxu0
    %859 = vdwg.mxu0
    %v860 = vunpack.c.l.bf16 %v813
    %v861 = vadd.f32 %v860, %v855
    %v862 = vpack.c.bf16 %v861, %v861
    %v863 = vxor.u32 %v862, 2147516416
    %v865 = vmul.bf16 %v863, 1069105081
    %v866 = vpow.bf16.pop %v865
    %v867 = vadd.bf16 %v866, 1065369472
    %v868 = vrcp.bf16.pop %v867
    %v869 = vmul.bf16 1065369472, %v868
    %v870 = vtanh.bf16.pop %v862
    %v871 = vunpack.c.l.bf16 %v869
    %873 = vrot.lane.b32.xlu0 %v815, 32
    %v874 = vpop.permute.xlu0 %873
    %v876 = vmul.f32 %v871, %v874
    %878 = vrot.lane.b32.xlu0 %v870, 64
    %v879 = vpop.permute.xlu0 %878
    %v881 = vmul.bf16 %v869, %v879
    %v882 = vunpack.c.l.bf16 %v881
    %884 = vrot.lane.b32.xlu0 %v882, 32
    %v885 = vpop.permute.xlu0 %884
    %v887 = vadd.f32 %v876, %v885
    %v888 = vpack.c.bf16 %v887, %v887
    %v889 = vtanh.bf16.pop %v888
    %891 = vrot.lane.b32.xlu0 %v889, 64
    %v892 = vpop.permute.xlu0 %891
    %v894 = vmul.bf16 %v869, %v892
    %v895 = vunpack.c.l.bf16 %v894
    %897 = vrot.lane.b32.xlu0 %v895, 32
    %v898 = vpop.permute.xlu0 %897
    %900 = vst.msk [vmem:[#allocation2] sm:$0x3] %vm203, %v898
    %902 = vrot.lane.b32.xlu0 %v887, 96
    %v903 = vpop.permute.xlu0 %902
    %905 = vst.msk [vmem:[#allocation3] sm:$0x3] %vm203, %v903
    %v908 = vunpack.c.l.s4 1966171168
    %v909 = vunpack.c.0.s8 %v908
    %v910 = vlaneseq
    %v911 = vshrl.u32 %v910, 7
    %v912 = vsub.s32 %v909, %v911
    %v913 = vrot.slane %v894, %v912
    %v915 = vunpack.c.l.s4 1966171168
    %v916 = vunpack.c.0.s8 %v915
    %v917 = vlaneseq
    %v918 = vshrl.u32 %v917, 7
    %v919 = vsub.s32 %v916, %v918
    %v920 = vrot.slane %v913, %v919
    %921 = vrot.lane.b32.xlu0 %v920, 32
    %v922 = vpop.permute.xlu0 %921
    %s924 = scalar_lea.vmem [#allocation14], 3
    %925 = vst.msk [vmem:[%s924] sm:$0x1] %vm228, %v922
    %s926 = scalar_lea.vmem [#allocation9], 4
    %v927 = vld [vmem:[%s926] sm:$0x1]
    %v928 = vld [vmem:[#allocation4] sm:$0x3]
    %v929 = vld [vmem:[#allocation5] sm:$0x3]
    %v930 = vpack.c.bf16 %v928, %v928
    %v932 = vsel %vm119, %v930, 0
    %934 = vmatprep.subr.bf16.mxu0 0
    %935 = vmatpush1.bf16.msra.mxu0 %v243
    %936 = vmatprep.subr.bf16.mxu0 0
    %937 = vmatpush1.bf16.msra.mxu0 %v244
    %938 = vmatprep.subr.bf16.mxu0 0
    %939 = vmatpush1.bf16.msra.mxu0 0
    %940 = vmatprep.subr.bf16.mxu0 0
    %941 = vmatpush1.bf16.msra.mxu0 0
    %942 = vmatprep.subr.bf16.mxu0 0
    %943 = vmatpush1.bf16.msra.mxu0 0
    %944 = vmatprep.subr.bf16.mxu0 0
    %945 = vmatpush1.bf16.msra.mxu0 0
    %946 = vmatprep.subr.bf16.mxu0 0
    %947 = vmatpush1.bf16.msra.mxu0 0
    %948 = vmatprep.subr.bf16.mxu0 0
    %949 = vmatpush1.bf16.msra.mxu0 0
    %950 = vmatprep.subr.bf16.mxu0 0
    %951 = vmatpush1.bf16.msra.mxu0 0
    %952 = vmatprep.subr.bf16.mxu0 0
    %953 = vmatpush1.bf16.msra.mxu0 0
    %954 = vmatprep.subr.bf16.mxu0 0
    %955 = vmatpush1.bf16.msra.mxu0 0
    %956 = vmatprep.subr.bf16.mxu0 0
    %957 = vmatpush1.bf16.msra.mxu0 0
    %958 = vmatprep.subr.bf16.mxu0 0
    %959 = vmatpush1.bf16.msra.mxu0 0
    %960 = vmatprep.subr.bf16.mxu0 0
    %961 = vmatpush1.bf16.msra.mxu0 0
    %962 = vmatprep.subr.bf16.mxu0 0
    %963 = vmatpush1.bf16.msra.mxu0 0
    %964 = vmatprep.subr.bf16.mxu0 0
    %965 = vmatpush1.bf16.msra.mxu0 0
    %966 = vmatprep.mubr.bf16.mxu0 0
    %967 = vmatmul.mubr.bf16.gmra.mrb[0].mxu0 %v932
    %v968 = vpop.f32.mrb[0].mxu0
    %v969 = vadd.f32 0.0, %v968
    %v970 = vpop.f32.mrb[0].mxu0
    %v971 = vpop.f32.mrb[0].mxu0
    %v972 = vpop.f32.mrb[0].mxu0
    %973 = vdwg.mxu0
    %v974 = vunpack.c.l.bf16 %v927
    %v975 = vadd.f32 %v974, %v969
    %v976 = vpack.c.bf16 %v975, %v975
    %v977 = vxor.u32 %v976, 2147516416
    %v979 = vmul.bf16 %v977, 1069105081
    %v980 = vpow.bf16.pop %v979
    %v981 = vadd.bf16 %v980, 1065369472
    %v982 = vrcp.bf16.pop %v981
    %v983 = vmul.bf16 1065369472, %v982
    %v984 = vtanh.bf16.pop %v976
    %v985 = vunpack.c.l.bf16 %v983
    %987 = vrot.lane.b32.xlu0 %v929, 32
    %v988 = vpop.permute.xlu0 %987
    %v990 = vmul.f32 %v985, %v988
    %992 = vrot.lane.b32.xlu0 %v984, 64
    %v993 = vpop.permute.xlu0 %992
    %v995 = vmul.bf16 %v983, %v993
    %v996 = vunpack.c.l.bf16 %v995
    %998 = vrot.lane.b32.xlu0 %v996, 32
    %v999 = vpop.permute.xlu0 %998
    %v1001 = vadd.f32 %v990, %v999
    %v1002 = vpack.c.bf16 %v1001, %v1001
    %v1003 = vtanh.bf16.pop %v1002
    %1005 = vrot.lane.b32.xlu0 %v1003, 64
    %v1006 = vpop.permute.xlu0 %1005
    %v1008 = vmul.bf16 %v983, %v1006
    %v1009 = vunpack.c.l.bf16 %v1008
    %1011 = vrot.lane.b32.xlu0 %v1009, 32
    %v1012 = vpop.permute.xlu0 %1011
    %1014 = vst.msk [vmem:[#allocation4] sm:$0x3] %vm203, %v1012
    %1016 = vrot.lane.b32.xlu0 %v1001, 96
    %v1017 = vpop.permute.xlu0 %1016
    %1019 = vst.msk [vmem:[#allocation5] sm:$0x3] %vm203, %v1017
    %v1022 = vunpack.c.l.s4 1966171168
    %v1023 = vunpack.c.0.s8 %v1022
    %v1024 = vlaneseq
    %v1025 = vshrl.u32 %v1024, 7
    %v1026 = vsub.s32 %v1023, %v1025
    %v1027 = vrot.slane %v1008, %v1026
    %v1029 = vunpack.c.l.s4 1966171168
    %v1030 = vunpack.c.0.s8 %v1029
    %v1031 = vlaneseq
    %v1032 = vshrl.u32 %v1031, 7
    %v1033 = vsub.s32 %v1030, %v1032
    %v1034 = vrot.slane %v1027, %v1033
    %1035 = vrot.lane.b32.xlu0 %v1034, 32
    %v1036 = vpop.permute.xlu0 %1035
    %s1038 = scalar_lea.vmem [#allocation15], 4
    %1039 = vst.msk [vmem:[%s1038] sm:$0x1] %vm228, %v1036
    %s1040 = scalar_lea.vmem [#allocation6], 4
    %v1041 = vld [vmem:[%s1040] sm:$0x1]
    %v1042 = vld [vmem:[#allocation2] sm:$0x3]
    %v1043 = vld [vmem:[#allocation3] sm:$0x3]
    %v1044 = vpack.c.bf16 %v1042, %v1042
    %v1046 = vsel %vm119, %v1044, 0
    %1048 = vmatprep.subr.bf16.mxu0 0
    %1049 = vmatpush1.bf16.msra.mxu0 %v115
    %1050 = vmatprep.subr.bf16.mxu0 0
    %1051 = vmatpush1.bf16.msra.mxu0 %v116
    %1052 = vmatprep.subr.bf16.mxu0 0
    %1053 = vmatpush1.bf16.msra.mxu0 0
    %1054 = vmatprep.subr.bf16.mxu0 0
    %1055 = vmatpush1.bf16.msra.mxu0 0
    %1056 = vmatprep.subr.bf16.mxu0 0
    %1057 = vmatpush1.bf16.msra.mxu0 0
    %1058 = vmatprep.subr.bf16.mxu0 0
    %1059 = vmatpush1.bf16.msra.mxu0 0
    %1060 = vmatprep.subr.bf16.mxu0 0
    %1061 = vmatpush1.bf16.msra.mxu0 0
    %1062 = vmatprep.subr.bf16.mxu0 0
    %1063 = vmatpush1.bf16.msra.mxu0 0
    %1064 = vmatprep.subr.bf16.mxu0 0
    %1065 = vmatpush1.bf16.msra.mxu0 0
    %1066 = vmatprep.subr.bf16.mxu0 0
    %1067 = vmatpush1.bf16.msra.mxu0 0
    %1068 = vmatprep.subr.bf16.mxu0 0
    %1069 = vmatpush1.bf16.msra.mxu0 0
    %1070 = vmatprep.subr.bf16.mxu0 0
    %1071 = vmatpush1.bf16.msra.mxu0 0
    %1072 = vmatprep.subr.bf16.mxu0 0
    %1073 = vmatpush1.bf16.msra.mxu0 0
    %1074 = vmatprep.subr.bf16.mxu0 0
    %1075 = vmatpush1.bf16.msra.mxu0 0
    %1076 = vmatprep.subr.bf16.mxu0 0
    %1077 = vmatpush1.bf16.msra.mxu0 0
    %1078 = vmatprep.subr.bf16.mxu0 0
    %1079 = vmatpush1.bf16.msra.mxu0 0
    %1080 = vmatprep.mubr.bf16.mxu0 0
    %1081 = vmatmul.mubr.bf16.gmra.mrb[0].mxu0 %v1046
    %v1082 = vpop.f32.mrb[0].mxu0
    %v1083 = vadd.f32 0.0, %v1082
    %v1084 = vpop.f32.mrb[0].mxu0
    %v1085 = vpop.f32.mrb[0].mxu0
    %v1086 = vpop.f32.mrb[0].mxu0
    %1087 = vdwg.mxu0
    %v1088 = vunpack.c.l.bf16 %v1041
    %v1089 = vadd.f32 %v1088, %v1083
    %v1090 = vpack.c.bf16 %v1089, %v1089
    %v1091 = vxor.u32 %v1090, 2147516416
    %v1093 = vmul.bf16 %v1091, 1069105081
    %v1094 = vpow.bf16.pop %v1093
    %v1095 = vadd.bf16 %v1094, 1065369472
    %v1096 = vrcp.bf16.pop %v1095
    %v1097 = vmul.bf16 1065369472, %v1096
    %v1098 = vtanh.bf16.pop %v1090
    %v1099 = vunpack.c.l.bf16 %v1097
    %1101 = vrot.lane.b32.xlu0 %v1043, 32
    %v1102 = vpop.permute.xlu0 %1101
    %v1104 = vmul.f32 %v1099, %v1102
    %1106 = vrot.lane.b32.xlu0 %v1098, 64
    %v1107 = vpop.permute.xlu0 %1106
    %v1109 = vmul.bf16 %v1097, %v1107
    %v1110 = vunpack.c.l.bf16 %v1109
    %1112 = vrot.lane.b32.xlu0 %v1110, 32
    %v1113 = vpop.permute.xlu0 %1112
    %v1115 = vadd.f32 %v1104, %v1113
    %v1116 = vpack.c.bf16 %v1115, %v1115
    %v1117 = vtanh.bf16.pop %v1116
    %1119 = vrot.lane.b32.xlu0 %v1117, 64
    %v1120 = vpop.permute.xlu0 %1119
    %v1122 = vmul.bf16 %v1097, %v1120
    %v1123 = vunpack.c.l.bf16 %v1122
    %1125 = vrot.lane.b32.xlu0 %v1123, 32
    %v1126 = vpop.permute.xlu0 %1125
    %1128 = vst.msk [vmem:[#allocation2] sm:$0x3] %vm203, %v1126
    %1130 = vrot.lane.b32.xlu0 %v1115, 96
    %v1131 = vpop.permute.xlu0 %1130
    %1133 = vst.msk [vmem:[#allocation3] sm:$0x3] %vm203, %v1131
    %v1136 = vunpack.c.l.s4 1966171168
    %v1137 = vunpack.c.0.s8 %v1136
    %v1138 = vlaneseq
    %v1139 = vshrl.u32 %v1138, 7
    %v1140 = vsub.s32 %v1137, %v1139
    %v1141 = vrot.slane %v1122, %v1140
    %v1143 = vunpack.c.l.s4 1966171168
    %v1144 = vunpack.c.0.s8 %v1143
    %v1145 = vlaneseq
    %v1146 = vshrl.u32 %v1145, 7
    %v1147 = vsub.s32 %v1144, %v1146
    %v1148 = vrot.slane %v1141, %v1147
    %1149 = vrot.lane.b32.xlu0 %v1148, 32
    %v1150 = vpop.permute.xlu0 %1149
    %s1152 = scalar_lea.vmem [#allocation14], 4
    %1153 = vst.msk [vmem:[%s1152] sm:$0x1] %vm228, %v1150
    %s1154 = scalar_lea.vmem [#allocation9], 3
    %v1155 = vld [vmem:[%s1154] sm:$0x1]
    %v1156 = vld [vmem:[#allocation4] sm:$0x3]
    %v1157 = vld [vmem:[#allocation5] sm:$0x3]
    %v1158 = vpack.c.bf16 %v1156, %v1156
    %v1160 = vsel %vm119, %v1158, 0
    %1162 = vmatprep.subr.bf16.mxu0 0
    %1163 = vmatpush1.bf16.msra.mxu0 %v243
    %1164 = vmatprep.subr.bf16.mxu0 0
    %1165 = vmatpush1.bf16.msra.mxu0 %v244
    %1166 = vmatprep.subr.bf16.mxu0 0
    %1167 = vmatpush1.bf16.msra.mxu0 0
    %1168 = vmatprep.subr.bf16.mxu0 0
    %1169 = vmatpush1.bf16.msra.mxu0 0
    %1170 = vmatprep.subr.bf16.mxu0 0
    %1171 = vmatpush1.bf16.msra.mxu0 0
    %1172 = vmatprep.subr.bf16.mxu0 0
    %1173 = vmatpush1.bf16.msra.mxu0 0
    %1174 = vmatprep.subr.bf16.mxu0 0
    %1175 = vmatpush1.bf16.msra.mxu0 0
    %1176 = vmatprep.subr.bf16.mxu0 0
    %1177 = vmatpush1.bf16.msra.mxu0 0
    %1178 = vmatprep.subr.bf16.mxu0 0
    %1179 = vmatpush1.bf16.msra.mxu0 0
    %1180 = vmatprep.subr.bf16.mxu0 0
    %1181 = vmatpush1.bf16.msra.mxu0 0
    %1182 = vmatprep.subr.bf16.mxu0 0
    %1183 = vmatpush1.bf16.msra.mxu0 0
    %1184 = vmatprep.subr.bf16.mxu0 0
    %1185 = vmatpush1.bf16.msra.mxu0 0
    %1186 = vmatprep.subr.bf16.mxu0 0
    %1187 = vmatpush1.bf16.msra.mxu0 0
    %1188 = vmatprep.subr.bf16.mxu0 0
    %1189 = vmatpush1.bf16.msra.mxu0 0
    %1190 = vmatprep.subr.bf16.mxu0 0
    %1191 = vmatpush1.bf16.msra.mxu0 0
    %1192 = vmatprep.subr.bf16.mxu0 0
    %1193 = vmatpush1.bf16.msra.mxu0 0
    %1194 = vmatprep.mubr.bf16.mxu0 0
    %1195 = vmatmul.mubr.bf16.gmra.mrb[0].mxu0 %v1160
    %v1196 = vpop.f32.mrb[0].mxu0
    %v1197 = vadd.f32 0.0, %v1196
    %v1198 = vpop.f32.mrb[0].mxu0
    %v1199 = vpop.f32.mrb[0].mxu0
    %v1200 = vpop.f32.mrb[0].mxu0
    %1201 = vdwg.mxu0
    %v1202 = vunpack.c.l.bf16 %v1155
    %v1203 = vadd.f32 %v1202, %v1197
    %v1204 = vpack.c.bf16 %v1203, %v1203
    %v1205 = vxor.u32 %v1204, 2147516416
    %v1207 = vmul.bf16 %v1205, 1069105081
    %v1208 = vpow.bf16.pop %v1207
    %v1209 = vadd.bf16 %v1208, 1065369472
    %v1210 = vrcp.bf16.pop %v1209
    %v1211 = vmul.bf16 1065369472, %v1210
    %v1212 = vtanh.bf16.pop %v1204
    %v1213 = vunpack.c.l.bf16 %v1211
    %1215 = vrot.lane.b32.xlu0 %v1157, 32
    %v1216 = vpop.permute.xlu0 %1215
    %v1218 = vmul.f32 %v1213, %v1216
    %1220 = vrot.lane.b32.xlu0 %v1212, 64
    %v1221 = vpop.permute.xlu0 %1220
    %v1223 = vmul.bf16 %v1211, %v1221
    %v1224 = vunpack.c.l.bf16 %v1223
    %1226 = vrot.lane.b32.xlu0 %v1224, 32
    %v1227 = vpop.permute.xlu0 %1226
    %v1229 = vadd.f32 %v1218, %v1227
    %v1230 = vpack.c.bf16 %v1229, %v1229
    %v1231 = vtanh.bf16.pop %v1230
    %1233 = vrot.lane.b32.xlu0 %v1231, 64
    %v1234 = vpop.permute.xlu0 %1233
    %v1236 = vmul.bf16 %v1211, %v1234
    %v1237 = vunpack.c.l.bf16 %v1236
    %1239 = vrot.lane.b32.xlu0 %v1237, 32
    %v1240 = vpop.permute.xlu0 %1239
    %1242 = vst.msk [vmem:[#allocation4] sm:$0x3] %vm203, %v1240
    %1244 = vrot.lane.b32.xlu0 %v1229, 96
    %v1245 = vpop.permute.xlu0 %1244
    %1247 = vst.msk [vmem:[#allocation5] sm:$0x3] %vm203, %v1245
    %v1250 = vunpack.c.l.s4 1966171168
    %v1251 = vunpack.c.0.s8 %v1250
    %v1252 = vlaneseq
    %v1253 = vshrl.u32 %v1252, 7
    %v1254 = vsub.s32 %v1251, %v1253
    %v1255 = vrot.slane %v1236, %v1254
    %v1257 = vunpack.c.l.s4 1966171168
    %v1258 = vunpack.c.0.s8 %v1257
    %v1259 = vlaneseq
    %v1260 = vshrl.u32 %v1259, 7
    %v1261 = vsub.s32 %v1258, %v1260
    %v1262 = vrot.slane %v1255, %v1261
    %1263 = vrot.lane.b32.xlu0 %v1262, 32
    %v1264 = vpop.permute.xlu0 %1263
    %s1266 = scalar_lea.vmem [#allocation15], 3
    %1267 = vst.msk [vmem:[%s1266] sm:$0x1] %vm228, %v1264
    %s1268 = scalar_lea.vmem [#allocation6], 5
    %v1269 = vld [vmem:[%s1268] sm:$0x1]
    %v1270 = vld [vmem:[#allocation2] sm:$0x3]
    %v1271 = vld [vmem:[#allocation3] sm:$0x3]
    %v1272 = vpack.c.bf16 %v1270, %v1270
    %v1274 = vsel %vm119, %v1272, 0
    %1276 = vmatprep.subr.bf16.mxu0 0
    %1277 = vmatpush1.bf16.msra.mxu0 %v115
    %1278 = vmatprep.subr.bf16.mxu0 0
    %1279 = vmatpush1.bf16.msra.mxu0 %v116
    %1280 = vmatprep.subr.bf16.mxu0 0
    %1281 = vmatpush1.bf16.msra.mxu0 0
    %1282 = vmatprep.subr.bf16.mxu0 0
    %1283 = vmatpush1.bf16.msra.mxu0 0
    %1284 = vmatprep.subr.bf16.mxu0 0
    %1285 = vmatpush1.bf16.msra.mxu0 0
    %1286 = vmatprep.subr.bf16.mxu0 0
    %1287 = vmatpush1.bf16.msra.mxu0 0
    %1288 = vmatprep.subr.bf16.mxu0 0
    %1289 = vmatpush1.bf16.msra.mxu0 0
    %1290 = vmatprep.subr.bf16.mxu0 0
    %1291 = vmatpush1.bf16.msra.mxu0 0
    %1292 = vmatprep.subr.bf16.mxu0 0
    %1293 = vmatpush1.bf16.msra.mxu0 0
    %1294 = vmatprep.subr.bf16.mxu0 0
    %1295 = vmatpush1.bf16.msra.mxu0 0
    %1296 = vmatprep.subr.bf16.mxu0 0
    %1297 = vmatpush1.bf16.msra.mxu0 0
    %1298 = vmatprep.subr.bf16.mxu0 0
    %1299 = vmatpush1.bf16.msra.mxu0 0
    %1300 = vmatprep.subr.bf16.mxu0 0
    %1301 = vmatpush1.bf16.msra.mxu0 0
    %1302 = vmatprep.subr.bf16.mxu0 0
    %1303 = vmatpush1.bf16.msra.mxu0 0
    %1304 = vmatprep.subr.bf16.mxu0 0
    %1305 = vmatpush1.bf16.msra.mxu0 0
    %1306 = vmatprep.subr.bf16.mxu0 0
    %1307 = vmatpush1.bf16.msra.mxu0 0
    %1308 = vmatprep.mubr.bf16.mxu0 0
    %1309 = vmatmul.mubr.bf16.gmra.mrb[0].mxu0 %v1274
    %v1310 = vpop.f32.mrb[0].mxu0
    %v1311 = vadd.f32 0.0, %v1310
    %v1312 = vpop.f32.mrb[0].mxu0
    %v1313 = vpop.f32.mrb[0].mxu0
    %v1314 = vpop.f32.mrb[0].mxu0
    %1315 = vdwg.mxu0
    %v1316 = vunpack.c.l.bf16 %v1269
    %v1317 = vadd.f32 %v1316, %v1311
    %v1318 = vpack.c.bf16 %v1317, %v1317
    %v1319 = vxor.u32 %v1318, 2147516416
    %v1321 = vmul.bf16 %v1319, 1069105081
    %v1322 = vpow.bf16.pop %v1321
    %v1323 = vadd.bf16 %v1322, 1065369472
    %v1324 = vrcp.bf16.pop %v1323
    %v1325 = vmul.bf16 1065369472, %v1324
    %v1326 = vtanh.bf16.pop %v1318
    %v1327 = vunpack.c.l.bf16 %v1325
    %1329 = vrot.lane.b32.xlu0 %v1271, 32
    %v1330 = vpop.permute.xlu0 %1329
    %v1332 = vmul.f32 %v1327, %v1330
    %1334 = vrot.lane.b32.xlu0 %v1326, 64
    %v1335 = vpop.permute.xlu0 %1334
    %v1337 = vmul.bf16 %v1325, %v1335
    %v1338 = vunpack.c.l.bf16 %v1337
    %1340 = vrot.lane.b32.xlu0 %v1338, 32
    %v1341 = vpop.permute.xlu0 %1340
    %v1343 = vadd.f32 %v1332, %v1341
    %v1344 = vpack.c.bf16 %v1343, %v1343
    %v1345 = vtanh.bf16.pop %v1344
    %1347 = vrot.lane.b32.xlu0 %v1345, 64
    %v1348 = vpop.permute.xlu0 %1347
    %v1350 = vmul.bf16 %v1325, %v1348
    %v1351 = vunpack.c.l.bf16 %v1350
    %1353 = vrot.lane.b32.xlu0 %v1351, 32
    %v1354 = vpop.permute.xlu0 %1353
    %1356 = vst.msk [vmem:[#allocation2] sm:$0x3] %vm203, %v1354
    %1358 = vrot.lane.b32.xlu0 %v1343, 96
    %v1359 = vpop.permute.xlu0 %1358
    %1361 = vst.msk [vmem:[#allocation3] sm:$0x3] %vm203, %v1359
    %v1364 = vunpack.c.l.s4 1966171168
    %v1365 = vunpack.c.0.s8 %v1364
    %v1366 = vlaneseq
    %v1367 = vshrl.u32 %v1366, 7
    %v1368 = vsub.s32 %v1365, %v1367
    %v1369 = vrot.slane %v1350, %v1368
    %v1371 = vunpack.c.l.s4 1966171168
    %v1372 = vunpack.c.0.s8 %v1371
    %v1373 = vlaneseq
    %v1374 = vshrl.u32 %v1373, 7
    %v1375 = vsub.s32 %v1372, %v1374
    %v1376 = vrot.slane %v1369, %v1375
    %1377 = vrot.lane.b32.xlu0 %v1376, 32
    %v1378 = vpop.permute.xlu0 %1377
    %s1380 = scalar_lea.vmem [#allocation14], 5
    %1381 = vst.msk [vmem:[%s1380] sm:$0x1] %vm228, %v1378
    %s1382 = scalar_lea.vmem [#allocation9], 2
    %v1383 = vld [vmem:[%s1382] sm:$0x1]
    %v1384 = vld [vmem:[#allocation4] sm:$0x3]
    %v1385 = vld [vmem:[#allocation5] sm:$0x3]
    %v1386 = vpack.c.bf16 %v1384, %v1384
    %v1388 = vsel %vm119, %v1386, 0
    %1390 = vmatprep.subr.bf16.mxu0 0
    %1391 = vmatpush1.bf16.msra.mxu0 %v243
    %1392 = vmatprep.subr.bf16.mxu0 0
    %1393 = vmatpush1.bf16.msra.mxu0 %v244
    %1394 = vmatprep.subr.bf16.mxu0 0
    %1395 = vmatpush1.bf16.msra.mxu0 0
    %1396 = vmatprep.subr.bf16.mxu0 0
    %1397 = vmatpush1.bf16.msra.mxu0 0
    %1398 = vmatprep.subr.bf16.mxu0 0
    %1399 = vmatpush1.bf16.msra.mxu0 0
    %1400 = vmatprep.subr.bf16.mxu0 0
    %1401 = vmatpush1.bf16.msra.mxu0 0
    %1402 = vmatprep.subr.bf16.mxu0 0
    %1403 = vmatpush1.bf16.msra.mxu0 0
    %1404 = vmatprep.subr.bf16.mxu0 0
    %1405 = vmatpush1.bf16.msra.mxu0 0
    %1406 = vmatprep.subr.bf16.mxu0 0
    %1407 = vmatpush1.bf16.msra.mxu0 0
    %1408 = vmatprep.subr.bf16.mxu0 0
    %1409 = vmatpush1.bf16.msra.mxu0 0
    %1410 = vmatprep.subr.bf16.mxu0 0
    %1411 = vmatpush1.bf16.msra.mxu0 0
    %1412 = vmatprep.subr.bf16.mxu0 0
    %1413 = vmatpush1.bf16.msra.mxu0 0
    %1414 = vmatprep.subr.bf16.mxu0 0
    %1415 = vmatpush1.bf16.msra.mxu0 0
    %1416 = vmatprep.subr.bf16.mxu0 0
    %1417 = vmatpush1.bf16.msra.mxu0 0
    %1418 = vmatprep.subr.bf16.mxu0 0
    %1419 = vmatpush1.bf16.msra.mxu0 0
    %1420 = vmatprep.subr.bf16.mxu0 0
    %1421 = vmatpush1.bf16.msra.mxu0 0
    %1422 = vmatprep.mubr.bf16.mxu0 0
    %1423 = vmatmul.mubr.bf16.gmra.mrb[0].mxu0 %v1388
    %v1424 = vpop.f32.mrb[0].mxu0
    %v1425 = vadd.f32 0.0, %v1424
    %v1426 = vpop.f32.mrb[0].mxu0
    %v1427 = vpop.f32.mrb[0].mxu0
    %v1428 = vpop.f32.mrb[0].mxu0
    %1429 = vdwg.mxu0
    %v1430 = vunpack.c.l.bf16 %v1383
    %v1431 = vadd.f32 %v1430, %v1425
    %v1432 = vpack.c.bf16 %v1431, %v1431
    %v1433 = vxor.u32 %v1432, 2147516416
    %v1435 = vmul.bf16 %v1433, 1069105081
    %v1436 = vpow.bf16.pop %v1435
    %v1437 = vadd.bf16 %v1436, 1065369472
    %v1438 = vrcp.bf16.pop %v1437
    %v1439 = vmul.bf16 1065369472, %v1438
    %v1440 = vtanh.bf16.pop %v1432
    %v1441 = vunpack.c.l.bf16 %v1439
    %1443 = vrot.lane.b32.xlu0 %v1385, 32
    %v1444 = vpop.permute.xlu0 %1443
    %v1446 = vmul.f32 %v1441, %v1444
    %1448 = vrot.lane.b32.xlu0 %v1440, 64
    %v1449 = vpop.permute.xlu0 %1448
    %v1451 = vmul.bf16 %v1439, %v1449
    %v1452 = vunpack.c.l.bf16 %v1451
    %1454 = vrot.lane.b32.xlu0 %v1452, 32
    %v1455 = vpop.permute.xlu0 %1454
    %v1457 = vadd.f32 %v1446, %v1455
    %v1458 = vpack.c.bf16 %v1457, %v1457
    %v1459 = vtanh.bf16.pop %v1458
    %1461 = vrot.lane.b32.xlu0 %v1459, 64
    %v1462 = vpop.permute.xlu0 %1461
    %v1464 = vmul.bf16 %v1439, %v1462
    %v1465 = vunpack.c.l.bf16 %v1464
    %1467 = vrot.lane.b32.xlu0 %v1465, 32
    %v1468 = vpop.permute.xlu0 %1467
    %1470 = vst.msk [vmem:[#allocation4] sm:$0x3] %vm203, %v1468
    %1472 = vrot.lane.b32.xlu0 %v1457, 96
    %v1473 = vpop.permute.xlu0 %1472
    %1475 = vst.msk [vmem:[#allocation5] sm:$0x3] %vm203, %v1473
    %v1478 = vunpack.c.l.s4 1966171168
    %v1479 = vunpack.c.0.s8 %v1478
    %v1480 = vlaneseq
    %v1481 = vshrl.u32 %v1480, 7
    %v1482 = vsub.s32 %v1479, %v1481
    %v1483 = vrot.slane %v1464, %v1482
    %v1485 = vunpack.c.l.s4 1966171168
    %v1486 = vunpack.c.0.s8 %v1485
    %v1487 = vlaneseq
    %v1488 = vshrl.u32 %v1487, 7
    %v1489 = vsub.s32 %v1486, %v1488
    %v1490 = vrot.slane %v1483, %v1489
    %1491 = vrot.lane.b32.xlu0 %v1490, 32
    %v1492 = vpop.permute.xlu0 %1491
    %s1494 = scalar_lea.vmem [#allocation15], 2
    %1495 = vst.msk [vmem:[%s1494] sm:$0x1] %vm228, %v1492
    %s1496 = scalar_lea.vmem [#allocation6], 6
    %v1497 = vld [vmem:[%s1496] sm:$0x1]
    %v1498 = vld [vmem:[#allocation2] sm:$0x3]
    %v1499 = vld [vmem:[#allocation3] sm:$0x3]
    %v1500 = vpack.c.bf16 %v1498, %v1498
    %v1502 = vsel %vm119, %v1500, 0
    %1504 = vmatprep.subr.bf16.mxu0 0
    %1505 = vmatpush1.bf16.msra.mxu0 %v115
    %1506 = vmatprep.subr.bf16.mxu0 0
    %1507 = vmatpush1.bf16.msra.mxu0 %v116
    %1508 = vmatprep.subr.bf16.mxu0 0
    %1509 = vmatpush1.bf16.msra.mxu0 0
    %1510 = vmatprep.subr.bf16.mxu0 0
    %1511 = vmatpush1.bf16.msra.mxu0 0
    %1512 = vmatprep.subr.bf16.mxu0 0
    %1513 = vmatpush1.bf16.msra.mxu0 0
    %1514 = vmatprep.subr.bf16.mxu0 0
    %1515 = vmatpush1.bf16.msra.mxu0 0
    %1516 = vmatprep.subr.bf16.mxu0 0
    %1517 = vmatpush1.bf16.msra.mxu0 0
    %1518 = vmatprep.subr.bf16.mxu0 0
    %1519 = vmatpush1.bf16.msra.mxu0 0
    %1520 = vmatprep.subr.bf16.mxu0 0
    %1521 = vmatpush1.bf16.msra.mxu0 0
    %1522 = vmatprep.subr.bf16.mxu0 0
    %1523 = vmatpush1.bf16.msra.mxu0 0
    %1524 = vmatprep.subr.bf16.mxu0 0
    %1525 = vmatpush1.bf16.msra.mxu0 0
    %1526 = vmatprep.subr.bf16.mxu0 0
    %1527 = vmatpush1.bf16.msra.mxu0 0
    %1528 = vmatprep.subr.bf16.mxu0 0
    %1529 = vmatpush1.bf16.msra.mxu0 0
    %1530 = vmatprep.subr.bf16.mxu0 0
    %1531 = vmatpush1.bf16.msra.mxu0 0
    %1532 = vmatprep.subr.bf16.mxu0 0
    %1533 = vmatpush1.bf16.msra.mxu0 0
    %1534 = vmatprep.subr.bf16.mxu0 0
    %1535 = vmatpush1.bf16.msra.mxu0 0
    %1536 = vmatprep.mubr.bf16.mxu0 0
    %1537 = vmatmul.mubr.bf16.gmra.mrb[0].mxu0 %v1502
    %v1538 = vpop.f32.mrb[0].mxu0
    %v1539 = vadd.f32 0.0, %v1538
    %v1540 = vpop.f32.mrb[0].mxu0
    %v1541 = vpop.f32.mrb[0].mxu0
    %v1542 = vpop.f32.mrb[0].mxu0
    %1543 = vdwg.mxu0
    %v1544 = vunpack.c.l.bf16 %v1497
    %v1545 = vadd.f32 %v1544, %v1539
    %v1546 = vpack.c.bf16 %v1545, %v1545
    %v1547 = vxor.u32 %v1546, 2147516416
    %v1549 = vmul.bf16 %v1547, 1069105081
    %v1550 = vpow.bf16.pop %v1549
    %v1551 = vadd.bf16 %v1550, 1065369472
    %v1552 = vrcp.bf16.pop %v1551
    %v1553 = vmul.bf16 1065369472, %v1552
    %v1554 = vtanh.bf16.pop %v1546
    %v1555 = vunpack.c.l.bf16 %v1553
    %1557 = vrot.lane.b32.xlu0 %v1499, 32
    %v1558 = vpop.permute.xlu0 %1557
    %v1560 = vmul.f32 %v1555, %v1558
    %1562 = vrot.lane.b32.xlu0 %v1554, 64
    %v1563 = vpop.permute.xlu0 %1562
    %v1565 = vmul.bf16 %v1553, %v1563
    %v1566 = vunpack.c.l.bf16 %v1565
    %1568 = vrot.lane.b32.xlu0 %v1566, 32
    %v1569 = vpop.permute.xlu0 %1568
    %v1571 = vadd.f32 %v1560, %v1569
    %v1572 = vpack.c.bf16 %v1571, %v1571
    %v1573 = vtanh.bf16.pop %v1572
    %1575 = vrot.lane.b32.xlu0 %v1573, 64
    %v1576 = vpop.permute.xlu0 %1575
    %v1578 = vmul.bf16 %v1553, %v1576
    %v1579 = vunpack.c.l.bf16 %v1578
    %1581 = vrot.lane.b32.xlu0 %v1579, 32
    %v1582 = vpop.permute.xlu0 %1581
    %1584 = vst.msk [vmem:[#allocation2] sm:$0x3] %vm203, %v1582
    %1586 = vrot.lane.b32.xlu0 %v1571, 96
    %v1587 = vpop.permute.xlu0 %1586
    %1589 = vst.msk [vmem:[#allocation3] sm:$0x3] %vm203, %v1587
    %v1592 = vunpack.c.l.s4 1966171168
    %v1593 = vunpack.c.0.s8 %v1592
    %v1594 = vlaneseq
    %v1595 = vshrl.u32 %v1594, 7
    %v1596 = vsub.s32 %v1593, %v1595
    %v1597 = vrot.slane %v1578, %v1596
    %v1599 = vunpack.c.l.s4 1966171168
    %v1600 = vunpack.c.0.s8 %v1599
    %v1601 = vlaneseq
    %v1602 = vshrl.u32 %v1601, 7
    %v1603 = vsub.s32 %v1600, %v1602
    %v1604 = vrot.slane %v1597, %v1603
    %1605 = vrot.lane.b32.xlu0 %v1604, 32
    %v1606 = vpop.permute.xlu0 %1605
    %s1608 = scalar_lea.vmem [#allocation14], 6
    %1609 = vst.msk [vmem:[%s1608] sm:$0x1] %vm228, %v1606
    %s1610 = scalar_lea.vmem [#allocation9], 1
    %v1611 = vld [vmem:[%s1610] sm:$0x1]
    %v1612 = vld [vmem:[#allocation4] sm:$0x3]
    %v1613 = vld [vmem:[#allocation5] sm:$0x3]
    %v1614 = vpack.c.bf16 %v1612, %v1612
    %v1616 = vsel %vm119, %v1614, 0
    %1618 = vmatprep.subr.bf16.mxu0 0
    %1619 = vmatpush1.bf16.msra.mxu0 %v243
    %1620 = vmatprep.subr.bf16.mxu0 0
    %1621 = vmatpush1.bf16.msra.mxu0 %v244
    %1622 = vmatprep.subr.bf16.mxu0 0
    %1623 = vmatpush1.bf16.msra.mxu0 0
    %1624 = vmatprep.subr.bf16.mxu0 0
    %1625 = vmatpush1.bf16.msra.mxu0 0
    %1626 = vmatprep.subr.bf16.mxu0 0
    %1627 = vmatpush1.bf16.msra.mxu0 0
    %1628 = vmatprep.subr.bf16.mxu0 0
    %1629 = vmatpush1.bf16.msra.mxu0 0
    %1630 = vmatprep.subr.bf16.mxu0 0
    %1631 = vmatpush1.bf16.msra.mxu0 0
    %1632 = vmatprep.subr.bf16.mxu0 0
    %1633 = vmatpush1.bf16.msra.mxu0 0
    %1634 = vmatprep.subr.bf16.mxu0 0
    %1635 = vmatpush1.bf16.msra.mxu0 0
    %1636 = vmatprep.subr.bf16.mxu0 0
    %1637 = vmatpush1.bf16.msra.mxu0 0
    %1638 = vmatprep.subr.bf16.mxu0 0
    %1639 = vmatpush1.bf16.msra.mxu0 0
    %1640 = vmatprep.subr.bf16.mxu0 0
    %1641 = vmatpush1.bf16.msra.mxu0 0
    %1642 = vmatprep.subr.bf16.mxu0 0
    %1643 = vmatpush1.bf16.msra.mxu0 0
    %1644 = vmatprep.subr.bf16.mxu0 0
    %1645 = vmatpush1.bf16.msra.mxu0 0
    %1646 = vmatprep.subr.bf16.mxu0 0
    %1647 = vmatpush1.bf16.msra.mxu0 0
    %1648 = vmatprep.subr.bf16.mxu0 0
    %1649 = vmatpush1.bf16.msra.mxu0 0
    %1650 = vmatprep.mubr.bf16.mxu0 0
    %1651 = vmatmul.mubr.bf16.gmra.mrb[0].mxu0 %v1616
    %v1652 = vpop.f32.mrb[0].mxu0
    %v1653 = vadd.f32 0.0, %v1652
    %v1654 = vpop.f32.mrb[0].mxu0
    %v1655 = vpop.f32.mrb[0].mxu0
    %v1656 = vpop.f32.mrb[0].mxu0
    %1657 = vdwg.mxu0
    %v1658 = vunpack.c.l.bf16 %v1611
    %v1659 = vadd.f32 %v1658, %v1653
    %v1660 = vpack.c.bf16 %v1659, %v1659
    %v1661 = vxor.u32 %v1660, 2147516416
    %v1663 = vmul.bf16 %v1661, 1069105081
    %v1664 = vpow.bf16.pop %v1663
    %v1665 = vadd.bf16 %v1664, 1065369472
    %v1666 = vrcp.bf16.pop %v1665
    %v1667 = vmul.bf16 1065369472, %v1666
    %v1668 = vtanh.bf16.pop %v1660
    %v1669 = vunpack.c.l.bf16 %v1667
    %1671 = vrot.lane.b32.xlu0 %v1613, 32
    %v1672 = vpop.permute.xlu0 %1671
    %v1674 = vmul.f32 %v1669, %v1672
    %1676 = vrot.lane.b32.xlu0 %v1668, 64
    %v1677 = vpop.permute.xlu0 %1676
    %v1679 = vmul.bf16 %v1667, %v1677
    %v1680 = vunpack.c.l.bf16 %v1679
    %1682 = vrot.lane.b32.xlu0 %v1680, 32
    %v1683 = vpop.permute.xlu0 %1682
    %v1685 = vadd.f32 %v1674, %v1683
    %v1686 = vpack.c.bf16 %v1685, %v1685
    %v1687 = vtanh.bf16.pop %v1686
    %1689 = vrot.lane.b32.xlu0 %v1687, 64
    %v1690 = vpop.permute.xlu0 %1689
    %v1692 = vmul.bf16 %v1667, %v1690
    %v1693 = vunpack.c.l.bf16 %v1692
    %1695 = vrot.lane.b32.xlu0 %v1693, 32
    %v1696 = vpop.permute.xlu0 %1695
    %1698 = vst.msk [vmem:[#allocation4] sm:$0x3] %vm203, %v1696
    %1700 = vrot.lane.b32.xlu0 %v1685, 96
    %v1701 = vpop.permute.xlu0 %1700
    %1703 = vst.msk [vmem:[#allocation5] sm:$0x3] %vm203, %v1701
    %v1706 = vunpack.c.l.s4 1966171168
    %v1707 = vunpack.c.0.s8 %v1706
    %v1708 = vlaneseq
    %v1709 = vshrl.u32 %v1708, 7
    %v1710 = vsub.s32 %v1707, %v1709
    %v1711 = vrot.slane %v1692, %v1710
    %v1713 = vunpack.c.l.s4 1966171168
    %v1714 = vunpack.c.0.s8 %v1713
    %v1715 = vlaneseq
    %v1716 = vshrl.u32 %v1715, 7
    %v1717 = vsub.s32 %v1714, %v1716
    %v1718 = vrot.slane %v1711, %v1717
    %1719 = vrot.lane.b32.xlu0 %v1718, 32
    %v1720 = vpop.permute.xlu0 %1719
    %s1722 = scalar_lea.vmem [#allocation15], 1
    %1723 = vst.msk [vmem:[%s1722] sm:$0x1] %vm228, %v1720
    %s1724 = scalar_lea.vmem [#allocation6], 7
    %v1725 = vld [vmem:[%s1724] sm:$0x1]
    %v1726 = vld [vmem:[#allocation2] sm:$0x3]
    %v1727 = vld [vmem:[#allocation3] sm:$0x3]
    %v1728 = vpack.c.bf16 %v1726, %v1726
    %v1730 = vsel %vm119, %v1728, 0
    %1732 = vmatprep.subr.bf16.mxu0 0
    %1733 = vmatpush1.bf16.msra.mxu0 %v115
    %1734 = vmatprep.subr.bf16.mxu0 0
    %1735 = vmatpush1.bf16.msra.mxu0 %v116
    %1736 = vmatprep.subr.bf16.mxu0 0
    %1737 = vmatpush1.bf16.msra.mxu0 0
    %1738 = vmatprep.subr.bf16.mxu0 0
    %1739 = vmatpush1.bf16.msra.mxu0 0
    %1740 = vmatprep.subr.bf16.mxu0 0
    %1741 = vmatpush1.bf16.msra.mxu0 0
    %1742 = vmatprep.subr.bf16.mxu0 0
    %1743 = vmatpush1.bf16.msra.mxu0 0
    %1744 = vmatprep.subr.bf16.mxu0 0
    %1745 = vmatpush1.bf16.msra.mxu0 0
    %1746 = vmatprep.subr.bf16.mxu0 0
    %1747 = vmatpush1.bf16.msra.mxu0 0
    %1748 = vmatprep.subr.bf16.mxu0 0
    %1749 = vmatpush1.bf16.msra.mxu0 0
    %1750 = vmatprep.subr.bf16.mxu0 0
    %1751 = vmatpush1.bf16.msra.mxu0 0
    %1752 = vmatprep.subr.bf16.mxu0 0
    %1753 = vmatpush1.bf16.msra.mxu0 0
    %1754 = vmatprep.subr.bf16.mxu0 0
    %1755 = vmatpush1.bf16.msra.mxu0 0
    %1756 = vmatprep.subr.bf16.mxu0 0
    %1757 = vmatpush1.bf16.msra.mxu0 0
    %1758 = vmatprep.subr.bf16.mxu0 0
    %1759 = vmatpush1.bf16.msra.mxu0 0
    %1760 = vmatprep.subr.bf16.mxu0 0
    %1761 = vmatpush1.bf16.msra.mxu0 0
    %1762 = vmatprep.subr.bf16.mxu0 0
    %1763 = vmatpush1.bf16.msra.mxu0 0
    %1764 = vmatprep.mubr.bf16.mxu0 0
    %1765 = vmatmul.mubr.bf16.gmra.mrb[0].mxu0 %v1730
    %v1766 = vpop.f32.mrb[0].mxu0
    %v1767 = vadd.f32 0.0, %v1766
    %v1768 = vpop.f32.mrb[0].mxu0
    %v1769 = vpop.f32.mrb[0].mxu0
    %v1770 = vpop.f32.mrb[0].mxu0
    %1771 = vdwg.mxu0
    %v1772 = vunpack.c.l.bf16 %v1725
    %v1773 = vadd.f32 %v1772, %v1767
    %v1774 = vpack.c.bf16 %v1773, %v1773
    %v1775 = vxor.u32 %v1774, 2147516416
    %v1777 = vmul.bf16 %v1775, 1069105081
    %v1778 = vpow.bf16.pop %v1777
    %v1779 = vadd.bf16 %v1778, 1065369472
    %v1780 = vrcp.bf16.pop %v1779
    %v1781 = vmul.bf16 1065369472, %v1780
    %v1782 = vtanh.bf16.pop %v1774
    %v1783 = vunpack.c.l.bf16 %v1781
    %1785 = vrot.lane.b32.xlu0 %v1727, 32
    %v1786 = vpop.permute.xlu0 %1785
    %v1788 = vmul.f32 %v1783, %v1786
    %1790 = vrot.lane.b32.xlu0 %v1782, 64
    %v1791 = vpop.permute.xlu0 %1790
    %v1793 = vmul.bf16 %v1781, %v1791
    %v1794 = vunpack.c.l.bf16 %v1793
    %1796 = vrot.lane.b32.xlu0 %v1794, 32
    %v1797 = vpop.permute.xlu0 %1796
    %v1799 = vadd.f32 %v1788, %v1797
    %v1800 = vpack.c.bf16 %v1799, %v1799
    %v1801 = vtanh.bf16.pop %v1800
    %1803 = vrot.lane.b32.xlu0 %v1801, 64
    %v1804 = vpop.permute.xlu0 %1803
    %v1806 = vmul.bf16 %v1781, %v1804
    %v1807 = vunpack.c.l.bf16 %v1806
    %1809 = vrot.lane.b32.xlu0 %v1807, 32
    %v1810 = vpop.permute.xlu0 %1809
    %1812 = vst.msk [vmem:[#allocation2] sm:$0x3] %vm203, %v1810
    %1814 = vrot.lane.b32.xlu0 %v1799, 96
    %v1815 = vpop.permute.xlu0 %1814
    %1817 = vst.msk [vmem:[#allocation3] sm:$0x3] %vm203, %v1815
    %v1820 = vunpack.c.l.s4 1966171168
    %v1821 = vunpack.c.0.s8 %v1820
    %v1822 = vlaneseq
    %v1823 = vshrl.u32 %v1822, 7
    %v1824 = vsub.s32 %v1821, %v1823
    %v1825 = vrot.slane %v1806, %v1824
    %v1827 = vunpack.c.l.s4 1966171168
    %v1828 = vunpack.c.0.s8 %v1827
    %v1829 = vlaneseq
    %v1830 = vshrl.u32 %v1829, 7
    %v1831 = vsub.s32 %v1828, %v1830
    %v1832 = vrot.slane %v1825, %v1831
    %1833 = vrot.lane.b32.xlu0 %v1832, 32
    %v1834 = vpop.permute.xlu0 %1833
    %s1836 = scalar_lea.vmem [#allocation14], 7
    %1837 = vst.msk [vmem:[%s1836] sm:$0x1] %vm228, %v1834
    %v1838 = vld [vmem:[#allocation9] sm:$0x1]
    %v1839 = vld [vmem:[#allocation4] sm:$0x3]
    %v1840 = vld [vmem:[#allocation5] sm:$0x3]
    %v1841 = vpack.c.bf16 %v1839, %v1839
    %v1843 = vsel %vm119, %v1841, 0
    %1845 = vmatprep.subr.bf16.mxu0 0
    %1846 = vmatpush1.bf16.msra.mxu0 %v243
    %1847 = vmatprep.subr.bf16.mxu0 0
    %1848 = vmatpush1.bf16.msra.mxu0 %v244
    %1849 = vmatprep.subr.bf16.mxu0 0
    %1850 = vmatpush1.bf16.msra.mxu0 0
    %1851 = vmatprep.subr.bf16.mxu0 0
    %1852 = vmatpush1.bf16.msra.mxu0 0
    %1853 = vmatprep.subr.bf16.mxu0 0
    %1854 = vmatpush1.bf16.msra.mxu0 0
    %1855 = vmatprep.subr.bf16.mxu0 0
    %1856 = vmatpush1.bf16.msra.mxu0 0
    %1857 = vmatprep.subr.bf16.mxu0 0
    %1858 = vmatpush1.bf16.msra.mxu0 0
    %1859 = vmatprep.subr.bf16.mxu0 0
    %1860 = vmatpush1.bf16.msra.mxu0 0
    %1861 = vmatprep.subr.bf16.mxu0 0
    %1862 = vmatpush1.bf16.msra.mxu0 0
    %1863 = vmatprep.subr.bf16.mxu0 0
    %1864 = vmatpush1.bf16.msra.mxu0 0
    %1865 = vmatprep.subr.bf16.mxu0 0
    %1866 = vmatpush1.bf16.msra.mxu0 0
    %1867 = vmatprep.subr.bf16.mxu0 0
    %1868 = vmatpush1.bf16.msra.mxu0 0
    %1869 = vmatprep.subr.bf16.mxu0 0
    %1870 = vmatpush1.bf16.msra.mxu0 0
    %1871 = vmatprep.subr.bf16.mxu0 0
    %1872 = vmatpush1.bf16.msra.mxu0 0
    %1873 = vmatprep.subr.bf16.mxu0 0
    %1874 = vmatpush1.bf16.msra.mxu0 0
    %1875 = vmatprep.subr.bf16.mxu0 0
    %1876 = vmatpush1.bf16.msra.mxu0 0
    %1877 = vmatprep.mubr.bf16.mxu0 0
    %1878 = vmatmul.mubr.bf16.gmra.mrb[0].mxu0 %v1843
    %v1879 = vpop.f32.mrb[0].mxu0
    %v1880 = vadd.f32 0.0, %v1879
    %v1881 = vpop.f32.mrb[0].mxu0
    %v1882 = vpop.f32.mrb[0].mxu0
    %v1883 = vpop.f32.mrb[0].mxu0
    %1884 = vdwg.mxu0
    %v1885 = vunpack.c.l.bf16 %v1838
    %v1886 = vadd.f32 %v1885, %v1880
    %v1887 = vpack.c.bf16 %v1886, %v1886
    %v1888 = vxor.u32 %v1887, 2147516416
    %v1890 = vmul.bf16 %v1888, 1069105081
    %v1891 = vpow.bf16.pop %v1890
    %v1892 = vadd.bf16 %v1891, 1065369472
    %v1893 = vrcp.bf16.pop %v1892
    %v1894 = vmul.bf16 1065369472, %v1893
    %v1895 = vtanh.bf16.pop %v1887
    %v1896 = vunpack.c.l.bf16 %v1894
    %1898 = vrot.lane.b32.xlu0 %v1840, 32
    %v1899 = vpop.permute.xlu0 %1898
    %v1901 = vmul.f32 %v1896, %v1899
    %1903 = vrot.lane.b32.xlu0 %v1895, 64
    %v1904 = vpop.permute.xlu0 %1903
    %v1906 = vmul.bf16 %v1894, %v1904
    %v1907 = vunpack.c.l.bf16 %v1906
    %1909 = vrot.lane.b32.xlu0 %v1907, 32
    %v1910 = vpop.permute.xlu0 %1909
    %v1912 = vadd.f32 %v1901, %v1910
    %v1913 = vpack.c.bf16 %v1912, %v1912
    %v1914 = vtanh.bf16.pop %v1913
    %1916 = vrot.lane.b32.xlu0 %v1914, 64
    %v1917 = vpop.permute.xlu0 %1916
    %v1919 = vmul.bf16 %v1894, %v1917
    %v1920 = vunpack.c.l.bf16 %v1919
    %1922 = vrot.lane.b32.xlu0 %v1920, 32
    %v1923 = vpop.permute.xlu0 %1922
    %1925 = vst.msk [vmem:[#allocation4] sm:$0x3] %vm203, %v1923
    %1927 = vrot.lane.b32.xlu0 %v1912, 96
    %v1928 = vpop.permute.xlu0 %1927
    %1930 = vst.msk [vmem:[#allocation5] sm:$0x3] %vm203, %v1928
    %v1933 = vunpack.c.l.s4 1966171168
    %v1934 = vunpack.c.0.s8 %v1933
    %v1935 = vlaneseq
    %v1936 = vshrl.u32 %v1935, 7
    %v1937 = vsub.s32 %v1934, %v1936
    %v1938 = vrot.slane %v1919, %v1937
    %v1940 = vunpack.c.l.s4 1966171168
    %v1941 = vunpack.c.0.s8 %v1940
    %v1942 = vlaneseq
    %v1943 = vshrl.u32 %v1942, 7
    %v1944 = vsub.s32 %v1941, %v1943
    %v1945 = vrot.slane %v1938, %v1944
    %1946 = vrot.lane.b32.xlu0 %v1945, 32
    %v1947 = vpop.permute.xlu0 %1946
    %1949 = vst.msk [vmem:[#allocation15] sm:$0x1] %vm228, %v1947
    // Predicated region
    $region38: #{ctc_lstm_forward.4} parent=1 // pred_check
      _
    $region39: #{ctc_lstm_forward.4} parent=1 // pred_check_branch
      %1951 = sbr.rel (0) target = $region41
    $region40: #{ctc_lstm_forward.4} parent=1 // pred_region
      %s1953 = ssub.s32 128, 128
      %1954 = vsyncadd [#allocation8], %s1953
      %s1955 = sshll.u32 [#allocation14], 4
      %s1956 = int_to_ptr.vmem [resolvable:$true] %s1955
      %1961 = dma.vmem_to_hbm [thread:$0]  %s1956, 128, %s4, [#allocation8], 16, 16, 1
    $region41: #{ctc_lstm_forward.4} parent=1 // pred_fallthru
      _
    // Predicated region
    $region42: #{ctc_lstm_forward.4} parent=1 // pred_check
      _
    $region43: #{ctc_lstm_forward.4} parent=1 // pred_check_branch
      %1963 = sbr.rel (0) target = $region45
    $region44: #{ctc_lstm_forward.4} parent=1 // pred_region
      %s1964 = ssub.s32 0, 0
      %s1965 = smul.u32 8, %s1964
      %s1967 = ssub.s32 128, 128
      %1968 = vsyncadd [#allocation16], %s1967
      %s1969 = smul.addr %s1965, 16
      %s1970 = scalar_lea.hbm %s5, %s1969
      %s1971 = sshll.u32 [#allocation15], 4
      %s1972 = int_to_ptr.vmem [resolvable:$true] %s1971
      %1977 = dma.vmem_to_hbm [thread:$0]  %s1972, 128, %s1970, [#allocation16], 16, 16, 1
    $region45: #{ctc_lstm_forward.4} parent=1 // pred_fallthru
      _
    // Predicated region
    $region46: #{ctc_lstm_forward.4} parent=1 // pred_check
      _
    $region47: #{ctc_lstm_forward.4} parent=1 // pred_check_branch
      %1979 = sbr.rel (0) target = $region49
    $region48: #{ctc_lstm_forward.4} parent=1 // pred_region
      %1980 = dma.done [#allocation8], 128
    $region49: #{ctc_lstm_forward.4} parent=1 // pred_fallthru
      _
    // Predicated region
    $region50: #{ctc_lstm_forward.4} parent=1 // pred_check
      _
    $region51: #{ctc_lstm_forward.4} parent=1 // pred_check_branch
      %1982 = sbr.rel (0) target = $region53
    $region52: #{ctc_lstm_forward.4} parent=1 // pred_region
      %1983 = dma.done [#allocation16], 128
    $region53: #{ctc_lstm_forward.4} parent=1 // pred_fallthru
      _
    %1984 = vsyncpa [#allocation7], 1
    %1985 = vsyncpa [#allocation10], 1
    %1986 = vsyncpa [#allocation13], 1
    %1987 = vsyncpa [#allocation8], 1
    %1988 = vsyncpa [#allocation16], 1

</llo_original>
